<compile_context>
chip_gen: v7x
topology: tpu7x:2x2x1
jax: 0.10.0
libtpu: 0.0.40
codegen_flags: <defaults>
</compile_context>

<pallas_src>
import functools
import numpy as np
import jax
import jax.numpy as jnp
from jax import lax
from jax.experimental import pallas as pl
from jax.experimental.pallas import tpu as pltpu

CONFIG = dict(num_codebooks=2, codebook_size=64, latent_dim=32,
              commitment_beta=0.25, ema_decay=0.99, ema_eps=1e-5)

_BIG = 1e30                # padded codebook columns can never win the argmin
_MAX_TILE_TOKENS = 2048    # tokens per grid step (512 was grid-step-overhead dominated at D=32)


def hadamard(n):
    """Sylvester Hadamard matrix (n must be a power of 2) -- stands in for scipy.linalg.hadamard."""
    assert n > 0 and (n & (n - 1)) == 0, "latent_dim must be a power of 2 for hadamard()"
    h = np.array([[1.0]], dtype=np.float32)
    while h.shape[0] < n:
        h = np.block([[h, h], [h, -h]]).astype(np.float32)
    return h


def _round_up(x, m):
    return (x + m - 1) // m * m


def _cdiv(a, b):
    return -(-a // b)


def _rq_kernel(nc, Kp, G, D, N, log_same, log_diff, closed2,
               xcl_ref, xrm_ref, rot_ref, wd_ref, wqh_ref, wql_ref, w2_ref,
               qsum_ref, idx_ref, stats_ref):
    f32 = jnp.float32
    dflt = lax.Precision.DEFAULT
    pid = pl.program_id(0)
    tR, LANE = xcl_ref.shape                   # packed rows per tile, LANE = G*D lanes

    # rotation in packed layout: blockdiag(rotation x G) keeps the G interleaved tokens independent
    x_rot = jnp.dot(xcl_ref[...], rot_ref[...], precision=dflt, preferred_element_type=f32)

    residual = x_rot
    qsum = jnp.zeros_like(x_rot)

    iota_k = lax.broadcasted_iota(jnp.int32, (tR, Kp), 1)
    col_iota = lax.broadcasted_iota(jnp.int32, (tR, G), 1)

    idx_per_book = []
    enc_sums = [jnp.zeros((tR, Kp), f32) for _ in range(G)] if not closed2 else None

    for i in range(nc):                        # static unroll; nc is small
        # argmin-equivalent distance  ||w||^2 - 2*r.w  for all G packed tokens at once
        rw = jnp.dot(residual, wd_ref[i], precision=dflt, preferred_element_type=f32)  # [tR, G*Kp]
        w2 = w2_ref[i]                         # [1, Kp]  (padded codes = 1e30)
        quant = jnp.zeros((tR, LANE), f32)
        idx_cols = jnp.zeros((tR, G), jnp.int32)
        for g in range(G):                     # static unroll over the lane groups
            dist_g = w2 - 2.0 * rw[:, g * Kp:(g + 1) * Kp]    # [tR, Kp]  128-aligned lane slice
            dmin = jnp.min(dist_g, axis=1, keepdims=True)
            idx_g = jnp.min(jnp.where(dist_g == dmin, iota_k, Kp),
                            axis=1, keepdims=True)            # first-occurrence argmin  [tR, 1]
            enc_g = (iota_k == idx_g).astype(f32)             # one-hot [tR, Kp]
            # exact codebook-row gather: w = w_hi + w_lo, both single bf16 passes (DEFAULT);
            # enc and w_hi are bf16-exact, so the gathered rows match f32 to ~2^-18.
            quant = quant + jnp.dot(enc_g, wqh_ref[i, g], precision=dflt,
                                    preferred_element_type=f32)
            quant = quant + jnp.dot(enc_g, wql_ref[i, g], precision=dflt,
                                    preferred_element_type=f32)
            idx_cols = jnp.where(col_iota == g, idx_g, idx_cols)
            if not closed2:
                enc_sums[g] = enc_sums[g] + enc_g
        qsum = qsum + quant
        residual = residual - quant
        idx_ref[i] = idx_cols
        idx_per_book.append(idx_cols)

    qsum_ref[...] = qsum                       # lane-dense [tR, 128] store

    # ---- per-tile scalar partials --------------------------------------------------------
    row_iota = lax.broadcasted_iota(jnp.int32, (tR, G), 0)
    tok_valid = (pid * tR + row_iota) * G + col_iota < N       # mask padded tokens

    if closed2:
        # closed-form entropy for nc == 2: avg_probs rows are a single 1 (same index) or two 0.5s
        same = idx_per_book[0] == idx_per_book[1]
        ent_tok = jnp.where(same, jnp.float32(log_same), jnp.float32(log_diff))
        ent_t = jnp.sum(jnp.where(tok_valid, ent_tok, 0.0), keepdims=True)       # (1, 1)
    else:
        ent_t = jnp.zeros((1, 1), f32)
        for g in range(G):
            avg = enc_sums[g] * (1.0 / nc)
            e_g = jnp.sum(avg * jnp.log(avg + 1e-10), axis=1, keepdims=True)     # [tR, 1]
            ent_t = ent_t + jnp.sum(jnp.where(tok_valid[:, g:g + 1], e_g, 0.0), keepdims=True)

    # MSE numerator against the raw row-major NCHW flattening (reproduces torch .view(x.shape)),
    # computed in the packed lane-dense layout with a single global-element-index mask.
    rowl = lax.broadcasted_iota(jnp.int32, (tR, LANE), 0)
    lane = lax.broadcasted_iota(jnp.int32, (tR, LANE), 1)
    elem_valid = (pid * tR + rowl) * LANE + lane < N * D
    diff = jnp.where(elem_valid, qsum - xrm_ref[...], 0.0)
    sq_t = jnp.sum(diff * diff, keepdims=True)                                   # (1, 1)

    ridx = lax.broadcasted_iota(jnp.int32, (8, 128), 0)
    stats_ref[...] = ((ridx == 0).astype(f32) * sq_t + (ridx == 1).astype(f32) * ent_t)


def residual_quantize(x, rotation, books, config):
    """Forward pass of ResidualQuantizer.
    Returns (loss, quant_out, (perplexity, encoding_list, encoding_index_list))."""
    B, C, H, W = x.shape
    nc, K, D = books.shape
    assert C == D, "channel dim must equal latent_dim"
    N = B * H * W
    beta = config['commitment_beta']

    x = x.astype(jnp.float32)
    books = books.astype(jnp.float32)
    rotation = rotation.astype(jnp.float32)

    # ---- packing geometry: G tokens per 128-lane row (lane-dense everywhere) -------------
    if D >= 128:
        assert D % 128 == 0
        G = 1
    else:
        assert 128 % D == 0, "latent_dim must divide 128"
        G = 128 // D
    LANE = G * D
    Kp = _round_up(K, 128)

    grp = 8 * G                                               # token granularity (8 packed rows)
    tN = min(_MAX_TILE_TOKENS, _round_up(_cdiv(N, 2), grp))   # big tiles, aim for >= 2 grid steps
    Np = _round_up(N, tN)
    tR, Rp = tN // G, Np // G
    nT = Rp // tR

    # ---- operand prep ---------------------------------------------------------------------
    # TODO(synk): the NCHW->channel-last transpose below is one extra XLA HBM pass over x; folding
    # it into the kernel needs an in-kernel [C, tHW] relayout that is not worth the lowering risk.
    x_cl = jnp.transpose(x, (0, 2, 3, 1)).reshape(N, D)       # channel-last tokens
    x_rm = x.reshape(N, D)                                    # raw row-major NCHW flattening (view)
    pad = Np - N
    if pad:
        x_cl = jnp.pad(x_cl, ((0, pad), (0, 0)))
        x_rm = jnp.pad(x_rm, ((0, pad), (0, 0)))
    x_cl_pk = x_cl.reshape(Rp, LANE)                          # packed (lane-dense) views
    x_rm_pk = x_rm.reshape(Rp, LANE)

    eyeG = jnp.eye(G, dtype=jnp.float32)
    rot_bd = jnp.kron(eyeG, rotation)                         # [LANE, LANE] blockdiag rotation

    books_p = jnp.pad(books, ((0, 0), (0, Kp - K), (0, 0)))   # zero-padded codes  [nc, Kp, D]
    books_hi = books_p.astype(jnp.bfloat16).astype(jnp.float32)
    books_lo = books_p - books_hi                             # hi/lo split for the exact gather
    # distance RHS: blockdiag(codebook^T x G)  -> [nc, LANE, G*Kp]
    wd = jnp.einsum('gh,ikd->igdhk', eyeG, books_p).reshape(nc, LANE, G * Kp)
    # quant-gather RHS per lane group: code k of group g lands in lanes [g*D, (g+1)*D)
    wq_hi = jnp.einsum('gh,ikd->igkhd', eyeG, books_hi).reshape(nc, G, Kp, LANE)
    wq_lo = jnp.einsum('gh,ikd->igkhd', eyeG, books_lo).reshape(nc, G, Kp, LANE)
    w2 = jnp.sum(books * books, axis=-1)                      # [nc, K]
    w2 = jnp.pad(w2, ((0, 0), (0, Kp - K)), constant_values=_BIG)[:, None, :]   # [nc, 1, Kp]

    log_same = float(np.log(np.float32(1.0) + np.float32(1e-10)))   # == 0.0 in f32
    log_diff = float(np.log(np.float32(0.5) + np.float32(1e-10)))
    closed2 = (nc == 2)

    kernel = functools.partial(_rq_kernel, nc, Kp, G, D, N, log_same, log_diff, closed2)
    out_shapes = (
        jax.ShapeDtypeStruct((Rp, LANE), jnp.float32),        # packed sum of quantized outputs
        jax.ShapeDtypeStruct((nc, Rp, G), jnp.int32),         # chosen codebook indices
        jax.ShapeDtypeStruct((nT * 8, 128), jnp.float32),     # per-tile partial sqerr / entropy
    )
    qsum_pk, idx_pk, stats = pl.pallas_call(
        kernel,
        out_shape=out_shapes,
        grid=(nT,),
        in_specs=[
            pl.BlockSpec((tR, LANE), lambda i: (i, 0)),
            pl.BlockSpec((tR, LANE), lambda i: (i, 0)),
            pl.BlockSpec((LANE, LANE), lambda i: (0, 0)),
            pl.BlockSpec((nc, LANE, G * Kp), lambda i: (0, 0, 0)),
            pl.BlockSpec((nc, G, Kp, LANE), lambda i: (0, 0, 0, 0)),
            pl.BlockSpec((nc, G, Kp, LANE), lambda i: (0, 0, 0, 0)),
            pl.BlockSpec((nc, 1, Kp), lambda i: (0, 0, 0)),
        ],
        out_specs=(
            pl.BlockSpec((tR, LANE), lambda i: (i, 0)),
            pl.BlockSpec((nc, tR, G), lambda i: (0, i, 0)),
            pl.BlockSpec((8, 128), lambda i: (i, 0)),
        ),
        compiler_params=pltpu.CompilerParams(
            dimension_semantics=("parallel",),
            vmem_limit_bytes=32 * 1024 * 1024),
    )(x_cl_pk, x_rm_pk, rot_bd, wd, wq_hi, wq_lo, w2)

    qsum = qsum_pk.reshape(Np, D)[:N]                         # channel-last [N, D]
    idx_all = idx_pk.reshape(nc, Np)[:, :N]                   # [nc, N] int32
    stats = stats.reshape(nT, 8, 128)
    sqerr = jnp.sum(stats[:, 0, 0])                           # sum((quant - x)^2), .view pairing
    ent = jnp.sum(stats[:, 1, 0])                             # sum(avg_probs * log(avg_probs+1e-10))

    mse = sqerr / (N * D)
    loss = mse * (1.0 + beta)        # codebook_loss + beta * commitment_loss (same scalar value)
    perplexity = jnp.exp(-ent)

    quant_view = qsum.reshape(B, C, H, W)                     # torch .view(x.shape) on the flat buffer
    quant_out = x + lax.stop_gradient(quant_view - x)         # straight-through estimator (values)
    # TODO(synk): no VJP is defined for this pallas_call; training would need a custom_vjp
    # reproducing the PyTorch detach / straight-through gradient structure.

    # encoding_list is part of the module's return contract; callers that only need EMA stats
    # should use encoding_index_list (the one-hot rebuild writes nc*N*K*4 bytes of HBM).
    encoding_list = [jax.nn.one_hot(idx_all[i], K, dtype=jnp.float32) for i in range(nc)]
    encoding_index_list = [idx_all[i][:, None] for i in range(nc)]
    return loss, quant_out, (perplexity, encoding_list, encoding_index_list)


def ema_update_state(x, rotation, books, ema_cluster_size, ema_w, encoding_index_list, config):
    """Functional (plain-JAX) equivalent of the in-place EMA / codebook.weight.data updates the
    PyTorch module performs when self.training=True.  Works from indices (no [N, K] one-hots)."""
    # TODO(synk): torch's in-place parameter mutation has no Pallas equivalent; kept functional.
    decay, eps = config['ema_decay'], config['ema_eps']
    nc, K, D = books.shape
    B, C, H, W = x.shape
    N = B * H * W
    x_cl = jnp.transpose(x.astype(jnp.float32), (0, 2, 3, 1)).reshape(N, D)
    residual = jnp.dot(x_cl, rotation, precision=lax.Precision.HIGHEST)
    new_books, new_cs, new_w = [], [], []
    for i in range(nc):
        idx = jnp.reshape(encoding_index_list[i], (N,))
        quant = jnp.take(books[i], idx, axis=0)
        residual = residual - quant
        counts = jnp.zeros((K,), jnp.float32).at[idx].add(1.0)
        cs = ema_cluster_size[i] * decay + (1.0 - decay) * counts
        n = jnp.sum(cs)
        cs = (cs + eps) / (n + K * eps) * n
        dw = jnp.zeros((K, D), jnp.float32).at[idx].add(residual)
        w_new = ema_w[i] * decay + (1.0 - decay) * dw
        new_books.append(w_new / cs[:, None])
        new_cs.append(cs)
        new_w.append(w_new)
    return jnp.stack(new_books), new_cs, new_w


def reference_forward(x, rotation, books, cfg):
    """Pure-JAX reference mirroring the PyTorch code (HIGHEST-precision dots)."""
    hp = lax.Precision.HIGHEST
    B, C, H, W = x.shape
    nc, K, D = books.shape
    N = B * H * W
    x_cl = jnp.transpose(x, (0, 2, 3, 1)).reshape(N, D)
    residual = jnp.dot(x_cl, rotation, precision=hp)
    qsum = jnp.zeros_like(residual)
    encs, inds = [], []
    for i in range(nc):
        w = books[i]
        dist = (jnp.sum(residual ** 2, axis=-1, keepdims=True)
                + jnp.sum(w ** 2, axis=-1)[None, :]
                - 2.0 * jnp.dot(residual, w.T, precision=hp))
        ind = jnp.argmin(dist, axis=1)
        enc = jax.nn.one_hot(ind, K, dtype=jnp.float32)
        quant = jnp.dot(enc, w, precision=hp)
        qsum = qsum + quant
        residual = residual - quant
        encs.append(enc)
        inds.append(ind)
    quant_view = qsum.reshape(x.shape)
    mse = jnp.mean((quant_view - x) ** 2)
    loss = mse * (1.0 + cfg['commitment_beta'])
    avg = jnp.mean(jnp.stack(encs), axis=0)
    perp = jnp.exp(-jnp.sum(avg * jnp.log(avg + 1e-10)))
    return loss, perp, jnp.stack(inds).astype(jnp.int32)


if __name__ == "__main__":
    cfg = CONFIG
    nc, K, D = cfg['num_codebooks'], cfg['codebook_size'], cfg['latent_dim']
    B, H, W = 2, 4, 4                       # x: [B, C=latent_dim, H, W]
    N = B * H * W
    key = jax.random.PRNGKey(0)
    k1, k2, k3 = jax.random.split(key, 3)

    x = jax.random.normal(k1, (B, D, H, W), jnp.float32)
    books = jax.random.uniform(k2, (nc, K, D), jnp.float32, -1.0 / K, 1.0 / K)
    ema_w0 = [jax.random.uniform(jax.random.fold_in(k3, i), (K, D), jnp.float32, -1.0 / K, 1.0 / K)
              for i in range(nc)]
    ema_cs0 = [jnp.ones((K,), jnp.float32) for _ in range(nc)]
    rotation = jnp.asarray(hadamard(D))

    loss, quant_out, (perp, enc_list, idx_list) = residual_quantize(x, rotation, books, cfg)
    jax.block_until_ready((loss, quant_out, perp))

    # training-mode EMA / codebook state update (functional glue, off the hot path)
    new_books, new_cs, new_w = ema_update_state(x, rotation, books, ema_cs0, ema_w0, idx_list, cfg)
    jax.block_until_ready(new_books)

    # --- correctness checks (silent on success) --------------------------------------------
    idx = jnp.stack([jnp.reshape(ii, (N,)) for ii in idx_list])                  # [nc, N]
    assert int(jnp.min(idx)) >= 0 and int(jnp.max(idx)) < K
    assert quant_out.shape == x.shape and quant_out.dtype == jnp.float32
    assert all(e.shape == (N, K) for e in enc_list)
    assert all(ii.shape == (N, 1) for ii in idx_list)

    # quant / .view path rebuilt from the kernel's own indices (tie-robust, exact gather)
    q_from_idx = sum(jnp.take(books[i], idx[i], axis=0) for i in range(nc)).reshape(x.shape)
    np.testing.assert_allclose(np.asarray(quant_out), np.asarray(q_from_idx),
                               rtol=1e-4, atol=5e-6)

    # loss recomputed from the kernel's indices (tie-robust)
    loss_chk = (1.0 + cfg['commitment_beta']) * jnp.mean((q_from_idx - x) ** 2)
    np.testing.assert_allclose(np.asarray(loss), np.asarray(loss_chk), rtol=1e-3, atol=1e-6)

    # perplexity: closed-form entropy vs the full formula on the kernel's indices (tie-robust)
    avg = jnp.mean(jnp.stack([jax.nn.one_hot(idx[i], K, dtype=jnp.float32) for i in range(nc)]),
                   axis=0)
    perp_chk = jnp.exp(-jnp.sum(avg * jnp.log(avg + 1e-10)))
    np.testing.assert_allclose(np.asarray(perp), np.asarray(perp_chk), rtol=1e-4)

    # independent full-precision reference; index choices may differ on near-ties (trimmed
    # distance + DEFAULT-precision dots), which barely moves the loss but rescales perplexity,
    # so the perplexity comparison is gated on matching indices.
    ref_loss, ref_perp, ref_idx = reference_forward(x, rotation, books, cfg)
    np.testing.assert_allclose(np.asarray(loss), np.asarray(ref_loss), rtol=1e-3, atol=1e-6)
    if np.array_equal(np.asarray(idx), np.asarray(ref_idx)):
        np.testing.assert_allclose(np.asarray(perp), np.asarray(ref_perp), rtol=1e-3)

    print("KERNEL_OK")
</pallas_src>

<mosaic_0001>
module attributes {stable_mosaic.version = 11 : i64} {
  func.func @_rq_kernel(%arg0: i32, %arg1: memref<8x128xf32, #tpu.memory_space<vmem>>, %arg2: memref<8x128xf32, #tpu.memory_space<vmem>>, %arg3: memref<128x128xf32, #tpu.memory_space<vmem>>, %arg4: memref<2x128x512xf32, #tpu.memory_space<vmem>>, %arg5: memref<2x4x128x128xf32, #tpu.memory_space<vmem>>, %arg6: memref<2x4x128x128xf32, #tpu.memory_space<vmem>>, %arg7: memref<2x1x128xf32, #tpu.memory_space<vmem>>, %arg8: memref<8x128xf32, #tpu.memory_space<vmem>>, %arg9: memref<2x8x4xi32, #tpu.memory_space<vmem>>, %arg10: memref<8x128xf32, #tpu.memory_space<vmem>>) attributes {dimension_semantics = [#tpu.dimension_semantics<parallel>], iteration_bounds = array<i64: 1>, scalar_prefetch = 0 : i64, scratch_operands = 0 : i64, tpu.core_type = #tpu.core_type<tc>, window_params = [{transform_indices = @transform_0, window_bounds = array<i64: 8, 128>}, {transform_indices = @transform_1, window_bounds = array<i64: 8, 128>}, {pipeline_mode = #tpu.pipeline_mode<synchronous>, transform_indices = @transform_2, window_bounds = array<i64: 128, 128>}, {pipeline_mode = #tpu.pipeline_mode<synchronous>, transform_indices = @transform_3, window_bounds = array<i64: 2, 128, 512>}, {pipeline_mode = #tpu.pipeline_mode<synchronous>, transform_indices = @transform_4, window_bounds = array<i64: 2, 4, 128, 128>}, {pipeline_mode = #tpu.pipeline_mode<synchronous>, transform_indices = @transform_5, window_bounds = array<i64: 2, 4, 128, 128>}, {pipeline_mode = #tpu.pipeline_mode<synchronous>, transform_indices = @transform_6, window_bounds = array<i64: 2, 1, 128>}, {transform_indices = @transform_7, window_bounds = array<i64: 8, 128>}, {transform_indices = @transform_8, window_bounds = array<i64: 2, 8, 4>}, {transform_indices = @transform_9, window_bounds = array<i64: 8, 128>}]} {
    %c0 = arith.constant 0 : index
    %c0_0 = arith.constant 0 : index
    %0 = vector.load %arg1[%c0, %c0_0] : memref<8x128xf32, #tpu.memory_space<vmem>>, vector<8x128xf32>
    %c0_1 = arith.constant 0 : index
    %c0_2 = arith.constant 0 : index
    %1 = vector.load %arg3[%c0_1, %c0_2] : memref<128x128xf32, #tpu.memory_space<vmem>>, vector<128x128xf32>
    %cst = arith.constant dense<0.000000e+00> : vector<8x128xf32>
    %2 = tpu.matmul %0, %1, %cst {dimension_numbers = #tpu.dot_dimension_numbers<[1], [0], [0], [1], [0, 0, 1, 1], [], []>} : vector<8x128xf32>, vector<128x128xf32>, vector<8x128xf32> -> vector<8x128xf32>
    %cst_3 = arith.constant 0.000000e+00 : f32
    %3 = vector.broadcast %cst_3 : f32 to vector<8x128xf32>
    %4 = tpu.iota {dimensions = array<i32: 1>} : vector<8x128xi32>
    %5 = tpu.iota {dimensions = array<i32: 1>} : vector<8x4xi32>
    %c0_4 = arith.constant 0 : index
    %c0_5 = arith.constant 0 : index
    %c0_6 = arith.constant 0 : index
    %6 = vector.load %arg4[%c0_4, %c0_5, %c0_6] : memref<2x128x512xf32, #tpu.memory_space<vmem>>, vector<1x128x512xf32>
    %7 = vector.shape_cast %6 : vector<1x128x512xf32> to vector<128x512xf32>
    %cst_7 = arith.constant dense<0.000000e+00> : vector<8x512xf32>
    %8 = tpu.matmul %2, %7, %cst_7 {dimension_numbers = #tpu.dot_dimension_numbers<[1], [0], [0], [1], [0, 0, 1, 1], [], []>} : vector<8x128xf32>, vector<128x512xf32>, vector<8x512xf32> -> vector<8x512xf32>
    %c0_8 = arith.constant 0 : index
    %c0_9 = arith.constant 0 : index
    %c0_10 = arith.constant 0 : index
    %9 = vector.load %arg7[%c0_8, %c0_9, %c0_10] : memref<2x1x128xf32, #tpu.memory_space<vmem>>, vector<1x1x128xf32>
    %10 = vector.shape_cast %9 : vector<1x1x128xf32> to vector<1x128xf32>
    %cst_11 = arith.constant 0.000000e+00 : f32
    %11 = vector.broadcast %cst_11 : f32 to vector<8x128xf32>
    %c0_i32 = arith.constant 0 : i32
    %12 = vector.broadcast %c0_i32 : i32 to vector<8x4xi32>
    %13 = vector.extract_strided_slice %8 {offsets = [0, 0], sizes = [8, 128], strides = [1, 1]} : vector<8x512xf32> to vector<8x128xf32>
    %cst_12 = arith.constant 2.000000e+00 : f32
    %14 = vector.broadcast %cst_12 : f32 to vector<8x128xf32>
    %15 = arith.mulf %14, %13 : vector<8x128xf32>
    %16 = vector.broadcast %10 : vector<1x128xf32> to vector<8x128xf32>
    %17 = arith.subf %16, %15 : vector<8x128xf32>
    %cst_13 = arith.constant dense<0x7F800000> : vector<8xf32>
    %18 = vector.multi_reduction <minimumf>, %17, %cst_13 [1] : vector<8x128xf32> to vector<8xf32>
    %19 = vector.shape_cast %18 : vector<8xf32> to vector<8x1xf32>
    %20 = vector.broadcast %19 : vector<8x1xf32> to vector<8x128xf32>
    %21 = arith.cmpf oeq, %17, %20 : vector<8x128xf32>
    %c128_i32 = arith.constant 128 : i32
    %22 = vector.broadcast %c128_i32 : i32 to vector<8x128xi32>
    %23 = arith.select %21, %4, %22 : vector<8x128xi1>, vector<8x128xi32>
    %cst_14 = arith.constant dense<2147483647> : vector<8xi32>
    %24 = vector.multi_reduction <minsi>, %23, %cst_14 [1] : vector<8x128xi32> to vector<8xi32>
    %25 = vector.shape_cast %24 : vector<8xi32> to vector<8x1xi32>
    %26 = vector.broadcast %25 : vector<8x1xi32> to vector<8x128xi32>
    %27 = arith.cmpi eq, %4, %26 : vector<8x128xi32>
    %28 = arith.extui %27 : vector<8x128xi1> to vector<8x128xi32>
    %29 = arith.sitofp %28 : vector<8x128xi32> to vector<8x128xf32>
    %c0_15 = arith.constant 0 : index
    %c0_16 = arith.constant 0 : index
    %c0_17 = arith.constant 0 : index
    %c0_18 = arith.constant 0 : index
    %30 = vector.load %arg5[%c0_15, %c0_16, %c0_17, %c0_18] : memref<2x4x128x128xf32, #tpu.memory_space<vmem>>, vector<1x1x128x128xf32>
    %31 = vector.shape_cast %30 : vector<1x1x128x128xf32> to vector<128x128xf32>
    %cst_19 = arith.constant dense<0.000000e+00> : vector<8x128xf32>
    %32 = tpu.matmul %29, %31, %cst_19 {dimension_numbers = #tpu.dot_dimension_numbers<[1], [0], [0], [1], [0, 0, 1, 1], [], []>} : vector<8x128xf32>, vector<128x128xf32>, vector<8x128xf32> -> vector<8x128xf32>
    %33 = arith.addf %11, %32 : vector<8x128xf32>
    %c0_20 = arith.constant 0 : index
    %c0_21 = arith.constant 0 : index
    %c0_22 = arith.constant 0 : index
    %c0_23 = arith.constant 0 : index
    %34 = vector.load %arg6[%c0_20, %c0_21, %c0_22, %c0_23] : memref<2x4x128x128xf32, #tpu.memory_space<vmem>>, vector<1x1x128x128xf32>
    %35 = vector.shape_cast %34 : vector<1x1x128x128xf32> to vector<128x128xf32>
    %cst_24 = arith.constant dense<0.000000e+00> : vector<8x128xf32>
    %36 = tpu.matmul %29, %35, %cst_24 {dimension_numbers = #tpu.dot_dimension_numbers<[1], [0], [0], [1], [0, 0, 1, 1], [], []>} : vector<8x128xf32>, vector<128x128xf32>, vector<8x128xf32> -> vector<8x128xf32>
    %37 = arith.addf %33, %36 : vector<8x128xf32>
    %c0_i32_25 = arith.constant 0 : i32
    %38 = vector.broadcast %c0_i32_25 : i32 to vector<8x4xi32>
    %39 = arith.cmpi eq, %5, %38 : vector<8x4xi32>
    %40 = vector.shape_cast %25 : vector<8x1xi32> to vector<8x1xi32>
    %41 = vector.broadcast %40 : vector<8x1xi32> to vector<8x4xi32>
    %42 = arith.select %39, %41, %12 : vector<8x4xi1>, vector<8x4xi32>
    %43 = vector.extract_strided_slice %8 {offsets = [0, 128], sizes = [8, 128], strides = [1, 1]} : vector<8x512xf32> to vector<8x128xf32>
    %cst_26 = arith.constant 2.000000e+00 : f32
    %44 = vector.broadcast %cst_26 : f32 to vector<8x128xf32>
    %45 = arith.mulf %44, %43 : vector<8x128xf32>
    %46 = vector.broadcast %10 : vector<1x128xf32> to vector<8x128xf32>
    %47 = arith.subf %46, %45 : vector<8x128xf32>
    %cst_27 = arith.constant dense<0x7F800000> : vector<8xf32>
    %48 = vector.multi_reduction <minimumf>, %47, %cst_27 [1] : vector<8x128xf32> to vector<8xf32>
    %49 = vector.shape_cast %48 : vector<8xf32> to vector<8x1xf32>
    %50 = vector.broadcast %49 : vector<8x1xf32> to vector<8x128xf32>
    %51 = arith.cmpf oeq, %47, %50 : vector<8x128xf32>
    %c128_i32_28 = arith.constant 128 : i32
    %52 = vector.broadcast %c128_i32_28 : i32 to vector<8x128xi32>
    %53 = arith.select %51, %4, %52 : vector<8x128xi1>, vector<8x128xi32>
    %cst_29 = arith.constant dense<2147483647> : vector<8xi32>
    %54 = vector.multi_reduction <minsi>, %53, %cst_29 [1] : vector<8x128xi32> to vector<8xi32>
    %55 = vector.shape_cast %54 : vector<8xi32> to vector<8x1xi32>
    %56 = vector.broadcast %55 : vector<8x1xi32> to vector<8x128xi32>
    %57 = arith.cmpi eq, %4, %56 : vector<8x128xi32>
    %58 = arith.extui %57 : vector<8x128xi1> to vector<8x128xi32>
    %59 = arith.sitofp %58 : vector<8x128xi32> to vector<8x128xf32>
    %c0_30 = arith.constant 0 : index
    %c1 = arith.constant 1 : index
    %c0_31 = arith.constant 0 : index
    %c0_32 = arith.constant 0 : index
    %60 = vector.load %arg5[%c0_30, %c1, %c0_31, %c0_32] : memref<2x4x128x128xf32, #tpu.memory_space<vmem>>, vector<1x1x128x128xf32>
    %61 = vector.shape_cast %60 : vector<1x1x128x128xf32> to vector<128x128xf32>
    %cst_33 = arith.constant dense<0.000000e+00> : vector<8x128xf32>
    %62 = tpu.matmul %59, %61, %cst_33 {dimension_numbers = #tpu.dot_dimension_numbers<[1], [0], [0], [1], [0, 0, 1, 1], [], []>} : vector<8x128xf32>, vector<128x128xf32>, vector<8x128xf32> -> vector<8x128xf32>
    %63 = arith.addf %37, %62 : vector<8x128xf32>
    %c0_34 = arith.constant 0 : index
    %c1_35 = arith.constant 1 : index
    %c0_36 = arith.constant 0 : index
    %c0_37 = arith.constant 0 : index
    %64 = vector.load %arg6[%c0_34, %c1_35, %c0_36, %c0_37] : memref<2x4x128x128xf32, #tpu.memory_space<vmem>>, vector<1x1x128x128xf32>
    %65 = vector.shape_cast %64 : vector<1x1x128x128xf32> to vector<128x128xf32>
    %cst_38 = arith.constant dense<0.000000e+00> : vector<8x128xf32>
    %66 = tpu.matmul %59, %65, %cst_38 {dimension_numbers = #tpu.dot_dimension_numbers<[1], [0], [0], [1], [0, 0, 1, 1], [], []>} : vector<8x128xf32>, vector<128x128xf32>, vector<8x128xf32> -> vector<8x128xf32>
    %67 = arith.addf %63, %66 : vector<8x128xf32>
    %c1_i32 = arith.constant 1 : i32
    %68 = vector.broadcast %c1_i32 : i32 to vector<8x4xi32>
    %69 = arith.cmpi eq, %5, %68 : vector<8x4xi32>
    %70 = vector.shape_cast %55 : vector<8x1xi32> to vector<8x1xi32>
    %71 = vector.broadcast %70 : vector<8x1xi32> to vector<8x4xi32>
    %72 = arith.select %69, %71, %42 : vector<8x4xi1>, vector<8x4xi32>
    %73 = vector.extract_strided_slice %8 {offsets = [0, 256], sizes = [8, 128], strides = [1, 1]} : vector<8x512xf32> to vector<8x128xf32>
    %cst_39 = arith.constant 2.000000e+00 : f32
    %74 = vector.broadcast %cst_39 : f32 to vector<8x128xf32>
    %75 = arith.mulf %74, %73 : vector<8x128xf32>
    %76 = vector.broadcast %10 : vector<1x128xf32> to vector<8x128xf32>
    %77 = arith.subf %76, %75 : vector<8x128xf32>
    %cst_40 = arith.constant dense<0x7F800000> : vector<8xf32>
    %78 = vector.multi_reduction <minimumf>, %77, %cst_40 [1] : vector<8x128xf32> to vector<8xf32>
    %79 = vector.shape_cast %78 : vector<8xf32> to vector<8x1xf32>
    %80 = vector.broadcast %79 : vector<8x1xf32> to vector<8x128xf32>
    %81 = arith.cmpf oeq, %77, %80 : vector<8x128xf32>
    %c128_i32_41 = arith.constant 128 : i32
    %82 = vector.broadcast %c128_i32_41 : i32 to vector<8x128xi32>
    %83 = arith.select %81, %4, %82 : vector<8x128xi1>, vector<8x128xi32>
    %cst_42 = arith.constant dense<2147483647> : vector<8xi32>
    %84 = vector.multi_reduction <minsi>, %83, %cst_42 [1] : vector<8x128xi32> to vector<8xi32>
    %85 = vector.shape_cast %84 : vector<8xi32> to vector<8x1xi32>
    %86 = vector.broadcast %85 : vector<8x1xi32> to vector<8x128xi32>
    %87 = arith.cmpi eq, %4, %86 : vector<8x128xi32>
    %88 = arith.extui %87 : vector<8x128xi1> to vector<8x128xi32>
    %89 = arith.sitofp %88 : vector<8x128xi32> to vector<8x128xf32>
    %c0_43 = arith.constant 0 : index
    %c2 = arith.constant 2 : index
    %c0_44 = arith.constant 0 : index
    %c0_45 = arith.constant 0 : index
    %90 = vector.load %arg5[%c0_43, %c2, %c0_44, %c0_45] : memref<2x4x128x128xf32, #tpu.memory_space<vmem>>, vector<1x1x128x128xf32>
    %91 = vector.shape_cast %90 : vector<1x1x128x128xf32> to vector<128x128xf32>
    %cst_46 = arith.constant dense<0.000000e+00> : vector<8x128xf32>
    %92 = tpu.matmul %89, %91, %cst_46 {dimension_numbers = #tpu.dot_dimension_numbers<[1], [0], [0], [1], [0, 0, 1, 1], [], []>} : vector<8x128xf32>, vector<128x128xf32>, vector<8x128xf32> -> vector<8x128xf32>
    %93 = arith.addf %67, %92 : vector<8x128xf32>
    %c0_47 = arith.constant 0 : index
    %c2_48 = arith.constant 2 : index
    %c0_49 = arith.constant 0 : index
    %c0_50 = arith.constant 0 : index
    %94 = vector.load %arg6[%c0_47, %c2_48, %c0_49, %c0_50] : memref<2x4x128x128xf32, #tpu.memory_space<vmem>>, vector<1x1x128x128xf32>
    %95 = vector.shape_cast %94 : vector<1x1x128x128xf32> to vector<128x128xf32>
    %cst_51 = arith.constant dense<0.000000e+00> : vector<8x128xf32>
    %96 = tpu.matmul %89, %95, %cst_51 {dimension_numbers = #tpu.dot_dimension_numbers<[1], [0], [0], [1], [0, 0, 1, 1], [], []>} : vector<8x128xf32>, vector<128x128xf32>, vector<8x128xf32> -> vector<8x128xf32>
    %97 = arith.addf %93, %96 : vector<8x128xf32>
    %c2_i32 = arith.constant 2 : i32
    %98 = vector.broadcast %c2_i32 : i32 to vector<8x4xi32>
    %99 = arith.cmpi eq, %5, %98 : vector<8x4xi32>
    %100 = vector.shape_cast %85 : vector<8x1xi32> to vector<8x1xi32>
    %101 = vector.broadcast %100 : vector<8x1xi32> to vector<8x4xi32>
    %102 = arith.select %99, %101, %72 : vector<8x4xi1>, vector<8x4xi32>
    %103 = vector.extract_strided_slice %8 {offsets = [0, 384], sizes = [8, 128], strides = [1, 1]} : vector<8x512xf32> to vector<8x128xf32>
    %cst_52 = arith.constant 2.000000e+00 : f32
    %104 = vector.broadcast %cst_52 : f32 to vector<8x128xf32>
    %105 = arith.mulf %104, %103 : vector<8x128xf32>
    %106 = vector.broadcast %10 : vector<1x128xf32> to vector<8x128xf32>
    %107 = arith.subf %106, %105 : vector<8x128xf32>
    %cst_53 = arith.constant dense<0x7F800000> : vector<8xf32>
    %108 = vector.multi_reduction <minimumf>, %107, %cst_53 [1] : vector<8x128xf32> to vector<8xf32>
    %109 = vector.shape_cast %108 : vector<8xf32> to vector<8x1xf32>
    %110 = vector.broadcast %109 : vector<8x1xf32> to vector<8x128xf32>
    %111 = arith.cmpf oeq, %107, %110 : vector<8x128xf32>
    %c128_i32_54 = arith.constant 128 : i32
    %112 = vector.broadcast %c128_i32_54 : i32 to vector<8x128xi32>
    %113 = arith.select %111, %4, %112 : vector<8x128xi1>, vector<8x128xi32>
    %cst_55 = arith.constant dense<2147483647> : vector<8xi32>
    %114 = vector.multi_reduction <minsi>, %113, %cst_55 [1] : vector<8x128xi32> to vector<8xi32>
    %115 = vector.shape_cast %114 : vector<8xi32> to vector<8x1xi32>
    %116 = vector.broadcast %115 : vector<8x1xi32> to vector<8x128xi32>
    %117 = arith.cmpi eq, %4, %116 : vector<8x128xi32>
    %118 = arith.extui %117 : vector<8x128xi1> to vector<8x128xi32>
    %119 = arith.sitofp %118 : vector<8x128xi32> to vector<8x128xf32>
    %c0_56 = arith.constant 0 : index
    %c3 = arith.constant 3 : index
    %c0_57 = arith.constant 0 : index
    %c0_58 = arith.constant 0 : index
    %120 = vector.load %arg5[%c0_56, %c3, %c0_57, %c0_58] : memref<2x4x128x128xf32, #tpu.memory_space<vmem>>, vector<1x1x128x128xf32>
    %121 = vector.shape_cast %120 : vector<1x1x128x128xf32> to vector<128x128xf32>
    %cst_59 = arith.constant dense<0.000000e+00> : vector<8x128xf32>
    %122 = tpu.matmul %119, %121, %cst_59 {dimension_numbers = #tpu.dot_dimension_numbers<[1], [0], [0], [1], [0, 0, 1, 1], [], []>} : vector<8x128xf32>, vector<128x128xf32>, vector<8x128xf32> -> vector<8x128xf32>
    %123 = arith.addf %97, %122 : vector<8x128xf32>
    %c0_60 = arith.constant 0 : index
    %c3_61 = arith.constant 3 : index
    %c0_62 = arith.constant 0 : index
    %c0_63 = arith.constant 0 : index
    %124 = vector.load %arg6[%c0_60, %c3_61, %c0_62, %c0_63] : memref<2x4x128x128xf32, #tpu.memory_space<vmem>>, vector<1x1x128x128xf32>
    %125 = vector.shape_cast %124 : vector<1x1x128x128xf32> to vector<128x128xf32>
    %cst_64 = arith.constant dense<0.000000e+00> : vector<8x128xf32>
    %126 = tpu.matmul %119, %125, %cst_64 {dimension_numbers = #tpu.dot_dimension_numbers<[1], [0], [0], [1], [0, 0, 1, 1], [], []>} : vector<8x128xf32>, vector<128x128xf32>, vector<8x128xf32> -> vector<8x128xf32>
    %127 = arith.addf %123, %126 : vector<8x128xf32>
    %c3_i32 = arith.constant 3 : i32
    %128 = vector.broadcast %c3_i32 : i32 to vector<8x4xi32>
    %129 = arith.cmpi eq, %5, %128 : vector<8x4xi32>
    %130 = vector.shape_cast %115 : vector<8x1xi32> to vector<8x1xi32>
    %131 = vector.broadcast %130 : vector<8x1xi32> to vector<8x4xi32>
    %132 = arith.select %129, %131, %102 : vector<8x4xi1>, vector<8x4xi32>
    %133 = arith.addf %3, %127 : vector<8x128xf32>
    %134 = arith.subf %2, %127 : vector<8x128xf32>
    %c0_65 = arith.constant 0 : index
    %c0_66 = arith.constant 0 : index
    %c0_67 = arith.constant 0 : index
    %135 = vector.load %arg9[%c0_65, %c0_66, %c0_67] : memref<2x8x4xi32, #tpu.memory_space<vmem>>, vector<1x8x4xi32>
    %136 = vector.shape_cast %135 : vector<1x8x4xi32> to vector<8x4xi32>
    %137 = vector.shape_cast %132 : vector<8x4xi32> to vector<1x8x4xi32>
    tpu.vector_store %arg9[%c0_65, %c0_66, %c0_67], %137 {strides = array<i32>} : memref<2x8x4xi32, #tpu.memory_space<vmem>>, vector<1x8x4xi32>,
    %c1_68 = arith.constant 1 : index
    %c0_69 = arith.constant 0 : index
    %c0_70 = arith.constant 0 : index
    %138 = vector.load %arg4[%c1_68, %c0_69, %c0_70] : memref<2x128x512xf32, #tpu.memory_space<vmem>>, vector<1x128x512xf32>
    %139 = vector.shape_cast %138 : vector<1x128x512xf32> to vector<128x512xf32>
    %cst_71 = arith.constant dense<0.000000e+00> : vector<8x512xf32>
    %140 = tpu.matmul %134, %139, %cst_71 {dimension_numbers = #tpu.dot_dimension_numbers<[1], [0], [0], [1], [0, 0, 1, 1], [], []>} : vector<8x128xf32>, vector<128x512xf32>, vector<8x512xf32> -> vector<8x512xf32>
    %c1_72 = arith.constant 1 : index
    %c0_73 = arith.constant 0 : index
    %c0_74 = arith.constant 0 : index
    %141 = vector.load %arg7[%c1_72, %c0_73, %c0_74] : memref<2x1x128xf32, #tpu.memory_space<vmem>>, vector<1x1x128xf32>
    %142 = vector.shape_cast %141 : vector<1x1x128xf32> to vector<1x128xf32>
    %cst_75 = arith.constant 0.000000e+00 : f32
    %143 = vector.broadcast %cst_75 : f32 to vector<8x128xf32>
    %c0_i32_76 = arith.constant 0 : i32
    %144 = vector.broadcast %c0_i32_76 : i32 to vector<8x4xi32>
    %145 = vector.extract_strided_slice %140 {offsets = [0, 0], sizes = [8, 128], strides = [1, 1]} : vector<8x512xf32> to vector<8x128xf32>
    %cst_77 = arith.constant 2.000000e+00 : f32
    %146 = vector.broadcast %cst_77 : f32 to vector<8x128xf32>
    %147 = arith.mulf %146, %145 : vector<8x128xf32>
    %148 = vector.broadcast %142 : vector<1x128xf32> to vector<8x128xf32>
    %149 = arith.subf %148, %147 : vector<8x128xf32>
    %cst_78 = arith.constant dense<0x7F800000> : vector<8xf32>
    %150 = vector.multi_reduction <minimumf>, %149, %cst_78 [1] : vector<8x128xf32> to vector<8xf32>
    %151 = vector.shape_cast %150 : vector<8xf32> to vector<8x1xf32>
    %152 = vector.broadcast %151 : vector<8x1xf32> to vector<8x128xf32>
    %153 = arith.cmpf oeq, %149, %152 : vector<8x128xf32>
    %c128_i32_79 = arith.constant 128 : i32
    %154 = vector.broadcast %c128_i32_79 : i32 to vector<8x128xi32>
    %155 = arith.select %153, %4, %154 : vector<8x128xi1>, vector<8x128xi32>
    %cst_80 = arith.constant dense<2147483647> : vector<8xi32>
    %156 = vector.multi_reduction <minsi>, %155, %cst_80 [1] : vector<8x128xi32> to vector<8xi32>
    %157 = vector.shape_cast %156 : vector<8xi32> to vector<8x1xi32>
    %158 = vector.broadcast %157 : vector<8x1xi32> to vector<8x128xi32>
    %159 = arith.cmpi eq, %4, %158 : vector<8x128xi32>
    %160 = arith.extui %159 : vector<8x128xi1> to vector<8x128xi32>
    %161 = arith.sitofp %160 : vector<8x128xi32> to vector<8x128xf32>
    %c1_81 = arith.constant 1 : index
    %c0_82 = arith.constant 0 : index
    %c0_83 = arith.constant 0 : index
    %c0_84 = arith.constant 0 : index
    %162 = vector.load %arg5[%c1_81, %c0_82, %c0_83, %c0_84] : memref<2x4x128x128xf32, #tpu.memory_space<vmem>>, vector<1x1x128x128xf32>
    %163 = vector.shape_cast %162 : vector<1x1x128x128xf32> to vector<128x128xf32>
    %cst_85 = arith.constant dense<0.000000e+00> : vector<8x128xf32>
    %164 = tpu.matmul %161, %163, %cst_85 {dimension_numbers = #tpu.dot_dimension_numbers<[1], [0], [0], [1], [0, 0, 1, 1], [], []>} : vector<8x128xf32>, vector<128x128xf32>, vector<8x128xf32> -> vector<8x128xf32>
    %165 = arith.addf %143, %164 : vector<8x128xf32>
    %c1_86 = arith.constant 1 : index
    %c0_87 = arith.constant 0 : index
    %c0_88 = arith.constant 0 : index
    %c0_89 = arith.constant 0 : index
    %166 = vector.load %arg6[%c1_86, %c0_87, %c0_88, %c0_89] : memref<2x4x128x128xf32, #tpu.memory_space<vmem>>, vector<1x1x128x128xf32>
    %167 = vector.shape_cast %166 : vector<1x1x128x128xf32> to vector<128x128xf32>
    %cst_90 = arith.constant dense<0.000000e+00> : vector<8x128xf32>
    %168 = tpu.matmul %161, %167, %cst_90 {dimension_numbers = #tpu.dot_dimension_numbers<[1], [0], [0], [1], [0, 0, 1, 1], [], []>} : vector<8x128xf32>, vector<128x128xf32>, vector<8x128xf32> -> vector<8x128xf32>
    %169 = arith.addf %165, %168 : vector<8x128xf32>
    %c0_i32_91 = arith.constant 0 : i32
    %170 = vector.broadcast %c0_i32_91 : i32 to vector<8x4xi32>
    %171 = arith.cmpi eq, %5, %170 : vector<8x4xi32>
    %172 = vector.shape_cast %157 : vector<8x1xi32> to vector<8x1xi32>
    %173 = vector.broadcast %172 : vector<8x1xi32> to vector<8x4xi32>
    %174 = arith.select %171, %173, %144 : vector<8x4xi1>, vector<8x4xi32>
    %175 = vector.extract_strided_slice %140 {offsets = [0, 128], sizes = [8, 128], strides = [1, 1]} : vector<8x512xf32> to vector<8x128xf32>
    %cst_92 = arith.constant 2.000000e+00 : f32
    %176 = vector.broadcast %cst_92 : f32 to vector<8x128xf32>
    %177 = arith.mulf %176, %175 : vector<8x128xf32>
    %178 = vector.broadcast %142 : vector<1x128xf32> to vector<8x128xf32>
    %179 = arith.subf %178, %177 : vector<8x128xf32>
    %cst_93 = arith.constant dense<0x7F800000> : vector<8xf32>
    %180 = vector.multi_reduction <minimumf>, %179, %cst_93 [1] : vector<8x128xf32> to vector<8xf32>
    %181 = vector.shape_cast %180 : vector<8xf32> to vector<8x1xf32>
    %182 = vector.broadcast %181 : vector<8x1xf32> to vector<8x128xf32>
    %183 = arith.cmpf oeq, %179, %182 : vector<8x128xf32>
    %c128_i32_94 = arith.constant 128 : i32
    %184 = vector.broadcast %c128_i32_94 : i32 to vector<8x128xi32>
    %185 = arith.select %183, %4, %184 : vector<8x128xi1>, vector<8x128xi32>
    %cst_95 = arith.constant dense<2147483647> : vector<8xi32>
    %186 = vector.multi_reduction <minsi>, %185, %cst_95 [1] : vector<8x128xi32> to vector<8xi32>
    %187 = vector.shape_cast %186 : vector<8xi32> to vector<8x1xi32>
    %188 = vector.broadcast %187 : vector<8x1xi32> to vector<8x128xi32>
    %189 = arith.cmpi eq, %4, %188 : vector<8x128xi32>
    %190 = arith.extui %189 : vector<8x128xi1> to vector<8x128xi32>
    %191 = arith.sitofp %190 : vector<8x128xi32> to vector<8x128xf32>
    %c1_96 = arith.constant 1 : index
    %c1_97 = arith.constant 1 : index
    %c0_98 = arith.constant 0 : index
    %c0_99 = arith.constant 0 : index
    %192 = vector.load %arg5[%c1_96, %c1_97, %c0_98, %c0_99] : memref<2x4x128x128xf32, #tpu.memory_space<vmem>>, vector<1x1x128x128xf32>
    %193 = vector.shape_cast %192 : vector<1x1x128x128xf32> to vector<128x128xf32>
    %cst_100 = arith.constant dense<0.000000e+00> : vector<8x128xf32>
    %194 = tpu.matmul %191, %193, %cst_100 {dimension_numbers = #tpu.dot_dimension_numbers<[1], [0], [0], [1], [0, 0, 1, 1], [], []>} : vector<8x128xf32>, vector<128x128xf32>, vector<8x128xf32> -> vector<8x128xf32>
    %195 = arith.addf %169, %194 : vector<8x128xf32>
    %c1_101 = arith.constant 1 : index
    %c1_102 = arith.constant 1 : index
    %c0_103 = arith.constant 0 : index
    %c0_104 = arith.constant 0 : index
    %196 = vector.load %arg6[%c1_101, %c1_102, %c0_103, %c0_104] : memref<2x4x128x128xf32, #tpu.memory_space<vmem>>, vector<1x1x128x128xf32>
    %197 = vector.shape_cast %196 : vector<1x1x128x128xf32> to vector<128x128xf32>
    %cst_105 = arith.constant dense<0.000000e+00> : vector<8x128xf32>
    %198 = tpu.matmul %191, %197, %cst_105 {dimension_numbers = #tpu.dot_dimension_numbers<[1], [0], [0], [1], [0, 0, 1, 1], [], []>} : vector<8x128xf32>, vector<128x128xf32>, vector<8x128xf32> -> vector<8x128xf32>
    %199 = arith.addf %195, %198 : vector<8x128xf32>
    %c1_i32_106 = arith.constant 1 : i32
    %200 = vector.broadcast %c1_i32_106 : i32 to vector<8x4xi32>
    %201 = arith.cmpi eq, %5, %200 : vector<8x4xi32>
    %202 = vector.shape_cast %187 : vector<8x1xi32> to vector<8x1xi32>
    %203 = vector.broadcast %202 : vector<8x1xi32> to vector<8x4xi32>
    %204 = arith.select %201, %203, %174 : vector<8x4xi1>, vector<8x4xi32>
    %205 = vector.extract_strided_slice %140 {offsets = [0, 256], sizes = [8, 128], strides = [1, 1]} : vector<8x512xf32> to vector<8x128xf32>
    %cst_107 = arith.constant 2.000000e+00 : f32
    %206 = vector.broadcast %cst_107 : f32 to vector<8x128xf32>
    %207 = arith.mulf %206, %205 : vector<8x128xf32>
    %208 = vector.broadcast %142 : vector<1x128xf32> to vector<8x128xf32>
    %209 = arith.subf %208, %207 : vector<8x128xf32>
    %cst_108 = arith.constant dense<0x7F800000> : vector<8xf32>
    %210 = vector.multi_reduction <minimumf>, %209, %cst_108 [1] : vector<8x128xf32> to vector<8xf32>
    %211 = vector.shape_cast %210 : vector<8xf32> to vector<8x1xf32>
    %212 = vector.broadcast %211 : vector<8x1xf32> to vector<8x128xf32>
    %213 = arith.cmpf oeq, %209, %212 : vector<8x128xf32>
    %c128_i32_109 = arith.constant 128 : i32
    %214 = vector.broadcast %c128_i32_109 : i32 to vector<8x128xi32>
    %215 = arith.select %213, %4, %214 : vector<8x128xi1>, vector<8x128xi32>
    %cst_110 = arith.constant dense<2147483647> : vector<8xi32>
    %216 = vector.multi_reduction <minsi>, %215, %cst_110 [1] : vector<8x128xi32> to vector<8xi32>
    %217 = vector.shape_cast %216 : vector<8xi32> to vector<8x1xi32>
    %218 = vector.broadcast %217 : vector<8x1xi32> to vector<8x128xi32>
    %219 = arith.cmpi eq, %4, %218 : vector<8x128xi32>
    %220 = arith.extui %219 : vector<8x128xi1> to vector<8x128xi32>
    %221 = arith.sitofp %220 : vector<8x128xi32> to vector<8x128xf32>
    %c1_111 = arith.constant 1 : index
    %c2_112 = arith.constant 2 : index
    %c0_113 = arith.constant 0 : index
    %c0_114 = arith.constant 0 : index
    %222 = vector.load %arg5[%c1_111, %c2_112, %c0_113, %c0_114] : memref<2x4x128x128xf32, #tpu.memory_space<vmem>>, vector<1x1x128x128xf32>
    %223 = vector.shape_cast %222 : vector<1x1x128x128xf32> to vector<128x128xf32>
    %cst_115 = arith.constant dense<0.000000e+00> : vector<8x128xf32>
    %224 = tpu.matmul %221, %223, %cst_115 {dimension_numbers = #tpu.dot_dimension_numbers<[1], [0], [0], [1], [0, 0, 1, 1], [], []>} : vector<8x128xf32>, vector<128x128xf32>, vector<8x128xf32> -> vector<8x128xf32>
    %225 = arith.addf %199, %224 : vector<8x128xf32>
    %c1_116 = arith.constant 1 : index
    %c2_117 = arith.constant 2 : index
    %c0_118 = arith.constant 0 : index
    %c0_119 = arith.constant 0 : index
    %226 = vector.load %arg6[%c1_116, %c2_117, %c0_118, %c0_119] : memref<2x4x128x128xf32, #tpu.memory_space<vmem>>, vector<1x1x128x128xf32>
    %227 = vector.shape_cast %226 : vector<1x1x128x128xf32> to vector<128x128xf32>
    %cst_120 = arith.constant dense<0.000000e+00> : vector<8x128xf32>
    %228 = tpu.matmul %221, %227, %cst_120 {dimension_numbers = #tpu.dot_dimension_numbers<[1], [0], [0], [1], [0, 0, 1, 1], [], []>} : vector<8x128xf32>, vector<128x128xf32>, vector<8x128xf32> -> vector<8x128xf32>
    %229 = arith.addf %225, %228 : vector<8x128xf32>
    %c2_i32_121 = arith.constant 2 : i32
    %230 = vector.broadcast %c2_i32_121 : i32 to vector<8x4xi32>
    %231 = arith.cmpi eq, %5, %230 : vector<8x4xi32>
    %232 = vector.shape_cast %217 : vector<8x1xi32> to vector<8x1xi32>
    %233 = vector.broadcast %232 : vector<8x1xi32> to vector<8x4xi32>
    %234 = arith.select %231, %233, %204 : vector<8x4xi1>, vector<8x4xi32>
    %235 = vector.extract_strided_slice %140 {offsets = [0, 384], sizes = [8, 128], strides = [1, 1]} : vector<8x512xf32> to vector<8x128xf32>
    %cst_122 = arith.constant 2.000000e+00 : f32
    %236 = vector.broadcast %cst_122 : f32 to vector<8x128xf32>
    %237 = arith.mulf %236, %235 : vector<8x128xf32>
    %238 = vector.broadcast %142 : vector<1x128xf32> to vector<8x128xf32>
    %239 = arith.subf %238, %237 : vector<8x128xf32>
    %cst_123 = arith.constant dense<0x7F800000> : vector<8xf32>
    %240 = vector.multi_reduction <minimumf>, %239, %cst_123 [1] : vector<8x128xf32> to vector<8xf32>
    %241 = vector.shape_cast %240 : vector<8xf32> to vector<8x1xf32>
    %242 = vector.broadcast %241 : vector<8x1xf32> to vector<8x128xf32>
    %243 = arith.cmpf oeq, %239, %242 : vector<8x128xf32>
    %c128_i32_124 = arith.constant 128 : i32
    %244 = vector.broadcast %c128_i32_124 : i32 to vector<8x128xi32>
    %245 = arith.select %243, %4, %244 : vector<8x128xi1>, vector<8x128xi32>
    %cst_125 = arith.constant dense<2147483647> : vector<8xi32>
    %246 = vector.multi_reduction <minsi>, %245, %cst_125 [1] : vector<8x128xi32> to vector<8xi32>
    %247 = vector.shape_cast %246 : vector<8xi32> to vector<8x1xi32>
    %248 = vector.broadcast %247 : vector<8x1xi32> to vector<8x128xi32>
    %249 = arith.cmpi eq, %4, %248 : vector<8x128xi32>
    %250 = arith.extui %249 : vector<8x128xi1> to vector<8x128xi32>
    %251 = arith.sitofp %250 : vector<8x128xi32> to vector<8x128xf32>
    %c1_126 = arith.constant 1 : index
    %c3_127 = arith.constant 3 : index
    %c0_128 = arith.constant 0 : index
    %c0_129 = arith.constant 0 : index
    %252 = vector.load %arg5[%c1_126, %c3_127, %c0_128, %c0_129] : memref<2x4x128x128xf32, #tpu.memory_space<vmem>>, vector<1x1x128x128xf32>
    %253 = vector.shape_cast %252 : vector<1x1x128x128xf32> to vector<128x128xf32>
    %cst_130 = arith.constant dense<0.000000e+00> : vector<8x128xf32>
    %254 = tpu.matmul %251, %253, %cst_130 {dimension_numbers = #tpu.dot_dimension_numbers<[1], [0], [0], [1], [0, 0, 1, 1], [], []>} : vector<8x128xf32>, vector<128x128xf32>, vector<8x128xf32> -> vector<8x128xf32>
    %255 = arith.addf %229, %254 : vector<8x128xf32>
    %c1_131 = arith.constant 1 : index
    %c3_132 = arith.constant 3 : index
    %c0_133 = arith.constant 0 : index
    %c0_134 = arith.constant 0 : index
    %256 = vector.load %arg6[%c1_131, %c3_132, %c0_133, %c0_134] : memref<2x4x128x128xf32, #tpu.memory_space<vmem>>, vector<1x1x128x128xf32>
    %257 = vector.shape_cast %256 : vector<1x1x128x128xf32> to vector<128x128xf32>
    %cst_135 = arith.constant dense<0.000000e+00> : vector<8x128xf32>
    %258 = tpu.matmul %251, %257, %cst_135 {dimension_numbers = #tpu.dot_dimension_numbers<[1], [0], [0], [1], [0, 0, 1, 1], [], []>} : vector<8x128xf32>, vector<128x128xf32>, vector<8x128xf32> -> vector<8x128xf32>
    %259 = arith.addf %255, %258 : vector<8x128xf32>
    %c3_i32_136 = arith.constant 3 : i32
    %260 = vector.broadcast %c3_i32_136 : i32 to vector<8x4xi32>
    %261 = arith.cmpi eq, %5, %260 : vector<8x4xi32>
    %262 = vector.shape_cast %247 : vector<8x1xi32> to vector<8x1xi32>
    %263 = vector.broadcast %262 : vector<8x1xi32> to vector<8x4xi32>
    %264 = arith.select %261, %263, %234 : vector<8x4xi1>, vector<8x4xi32>
    %265 = arith.addf %133, %259 : vector<8x128xf32>
    %c1_137 = arith.constant 1 : index
    %c0_138 = arith.constant 0 : index
    %c0_139 = arith.constant 0 : index
    %266 = vector.load %arg9[%c1_137, %c0_138, %c0_139] : memref<2x8x4xi32, #tpu.memory_space<vmem>>, vector<1x8x4xi32>
    %267 = vector.shape_cast %266 : vector<1x8x4xi32> to vector<8x4xi32>
    %268 = vector.shape_cast %264 : vector<8x4xi32> to vector<1x8x4xi32>
    tpu.vector_store %arg9[%c1_137, %c0_138, %c0_139], %268 {strides = array<i32>} : memref<2x8x4xi32, #tpu.memory_space<vmem>>, vector<1x8x4xi32>,
    %c0_140 = arith.constant 0 : index
    %c0_141 = arith.constant 0 : index
    %269 = vector.load %arg8[%c0_140, %c0_141] : memref<8x128xf32, #tpu.memory_space<vmem>>, vector<8x128xf32>
    tpu.vector_store %arg8[%c0_140, %c0_141], %265 {strides = array<i32>} : memref<8x128xf32, #tpu.memory_space<vmem>>, vector<8x128xf32>,
    %270 = tpu.iota {dimensions = array<i32: 0>} : vector<8x4xi32>
    %c8_i32 = arith.constant 8 : i32
    %271 = arith.muli %arg0, %c8_i32 : i32
    %272 = vector.broadcast %271 : i32 to vector<8x4xi32>
    %273 = arith.addi %272, %270 : vector<8x4xi32>
    %c4_i32 = arith.constant 4 : i32
    %274 = vector.broadcast %c4_i32 : i32 to vector<8x4xi32>
    %275 = arith.muli %273, %274 : vector<8x4xi32>
    %276 = arith.addi %275, %5 : vector<8x4xi32>
    %c32_i32 = arith.constant 32 : i32
    %277 = vector.broadcast %c32_i32 : i32 to vector<8x4xi32>
    %278 = arith.cmpi slt, %276, %277 : vector<8x4xi32>
    %279 = arith.cmpi eq, %132, %264 : vector<8x4xi32>
    %cst_142 = arith.constant 0.000000e+00 : f32
    %cst_143 = arith.constant -0.693147182 : f32
    %280 = vector.broadcast %cst_142 : f32 to vector<8x4xf32>
    %281 = vector.broadcast %cst_143 : f32 to vector<8x4xf32>
    %282 = arith.select %279, %280, %281 : vector<8x4xi1>, vector<8x4xf32>
    %cst_144 = arith.constant 0.000000e+00 : f32
    %283 = vector.broadcast %cst_144 : f32 to vector<8x4xf32>
    %284 = arith.select %278, %282, %283 : vector<8x4xi1>, vector<8x4xf32>
    %285 = vector.shape_cast %284 : vector<8x4xf32> to vector<1x8x4xf32>
    %cst_145 = arith.constant dense<0.000000e+00> : vector<1xf32>
    %286 = vector.multi_reduction <add>, %285, %cst_145 [1, 2] : vector<1x8x4xf32> to vector<1xf32>
    %287 = vector.shape_cast %286 : vector<1xf32> to vector<1x1x1xf32>
    %288 = vector.extract %287[0, 0, 0] : f32 from vector<1x1x1xf32>
    %289 = vector.broadcast %288 : f32 to vector<1x1xf32>
    %290 = tpu.iota {dimensions = array<i32: 0>} : vector<8x128xi32>
    %291 = tpu.iota {dimensions = array<i32: 1>} : vector<8x128xi32>
    %c8_i32_146 = arith.constant 8 : i32
    %292 = arith.muli %arg0, %c8_i32_146 : i32
    %293 = vector.broadcast %292 : i32 to vector<8x128xi32>
    %294 = arith.addi %293, %290 : vector<8x128xi32>
    %c128_i32_147 = arith.constant 128 : i32
    %295 = vector.broadcast %c128_i32_147 : i32 to vector<8x128xi32>
    %296 = arith.muli %294, %295 : vector<8x128xi32>
    %297 = arith.addi %296, %291 : vector<8x128xi32>
    %c1024_i32 = arith.constant 1024 : i32
    %298 = vector.broadcast %c1024_i32 : i32 to vector<8x128xi32>
    %299 = arith.cmpi slt, %297, %298 : vector<8x128xi32>
    %c0_148 = arith.constant 0 : index
    %c0_149 = arith.constant 0 : index
    %300 = vector.load %arg2[%c0_148, %c0_149] : memref<8x128xf32, #tpu.memory_space<vmem>>, vector<8x128xf32>
    %301 = arith.subf %265, %300 : vector<8x128xf32>
    %cst_150 = arith.constant 0.000000e+00 : f32
    %302 = vector.broadcast %cst_150 : f32 to vector<8x128xf32>
    %303 = arith.select %299, %301, %302 : vector<8x128xi1>, vector<8x128xf32>
    %304 = arith.mulf %303, %303 : vector<8x128xf32>
    %305 = vector.shape_cast %304 : vector<8x128xf32> to vector<1x8x128xf32>
    %cst_151 = arith.constant dense<0.000000e+00> : vector<1xf32>
    %306 = vector.multi_reduction <add>, %305, %cst_151 [1, 2] : vector<1x8x128xf32> to vector<1xf32>
    %307 = vector.shape_cast %306 : vector<1xf32> to vector<1x1x1xf32>
    %308 = vector.extract %307[0, 0, 0] : f32 from vector<1x1x1xf32>
    %309 = vector.broadcast %308 : f32 to vector<1x1xf32>
    %310 = tpu.iota {dimensions = array<i32: 0>} : vector<8x128xi32>
    %c0_i32_152 = arith.constant 0 : i32
    %311 = vector.broadcast %c0_i32_152 : i32 to vector<8x128xi32>
    %312 = arith.cmpi eq, %310, %311 : vector<8x128xi32>
    %313 = arith.extui %312 : vector<8x128xi1> to vector<8x128xi32>
    %314 = arith.sitofp %313 : vector<8x128xi32> to vector<8x128xf32>
    %315 = vector.broadcast %309 : vector<1x1xf32> to vector<8x128xf32>
    %316 = arith.mulf %314, %315 : vector<8x128xf32>
    %c1_i32_153 = arith.constant 1 : i32
    %317 = vector.broadcast %c1_i32_153 : i32 to vector<8x128xi32>
    %318 = arith.cmpi eq, %310, %317 : vector<8x128xi32>
    %319 = arith.extui %318 : vector<8x128xi1> to vector<8x128xi32>
    %320 = arith.sitofp %319 : vector<8x128xi32> to vector<8x128xf32>
    %321 = vector.broadcast %289 : vector<1x1xf32> to vector<8x128xf32>
    %322 = arith.mulf %320, %321 : vector<8x128xf32>
    %323 = arith.addf %316, %322 : vector<8x128xf32>
    %c0_154 = arith.constant 0 : index
    %c0_155 = arith.constant 0 : index
    %324 = vector.load %arg10[%c0_154, %c0_155] : memref<8x128xf32, #tpu.memory_space<vmem>>, vector<8x128xf32>
    tpu.vector_store %arg10[%c0_154, %c0_155], %323 {strides = array<i32>} : memref<8x128xf32, #tpu.memory_space<vmem>>, vector<8x128xf32>,
    return
  }
  func.func @transform_0(%arg0: i32) -> (i32, i32) {
    %c0_i32 = arith.constant 0 : i32
    %c0_i32_0 = arith.constant 0 : i32
    return %arg0, %c0_i32 : i32, i32
  }
  func.func @transform_1(%arg0: i32) -> (i32, i32) {
    %c0_i32 = arith.constant 0 : i32
    %c0_i32_0 = arith.constant 0 : i32
    return %arg0, %c0_i32 : i32, i32
  }
  func.func @transform_2(%arg0: i32) -> (i32, i32) {
    %c0_i32 = arith.constant 0 : i32
    %c0_i32_0 = arith.constant 0 : i32
    %c0_i32_1 = arith.constant 0 : i32
    return %c0_i32, %c0_i32_0 : i32, i32
  }
  func.func @transform_3(%arg0: i32) -> (i32, i32, i32) {
    %c0_i32 = arith.constant 0 : i32
    %c0_i32_0 = arith.constant 0 : i32
    %c0_i32_1 = arith.constant 0 : i32
    %c0_i32_2 = arith.constant 0 : i32
    return %c0_i32, %c0_i32_0, %c0_i32_1 : i32, i32, i32
  }
  func.func @transform_4(%arg0: i32) -> (i32, i32, i32, i32) {
    %c0_i32 = arith.constant 0 : i32
    %c0_i32_0 = arith.constant 0 : i32
    %c0_i32_1 = arith.constant 0 : i32
    %c0_i32_2 = arith.constant 0 : i32
    %c0_i32_3 = arith.constant 0 : i32
    return %c0_i32, %c0_i32_0, %c0_i32_1, %c0_i32_2 : i32, i32, i32, i32
  }
  func.func @transform_5(%arg0: i32) -> (i32, i32, i32, i32) {
    %c0_i32 = arith.constant 0 : i32
    %c0_i32_0 = arith.constant 0 : i32
    %c0_i32_1 = arith.constant 0 : i32
    %c0_i32_2 = arith.constant 0 : i32
    %c0_i32_3 = arith.constant 0 : i32
    return %c0_i32, %c0_i32_0, %c0_i32_1, %c0_i32_2 : i32, i32, i32, i32
  }
  func.func @transform_6(%arg0: i32) -> (i32, i32, i32) {
    %c0_i32 = arith.constant 0 : i32
    %c0_i32_0 = arith.constant 0 : i32
    %c0_i32_1 = arith.constant 0 : i32
    %c0_i32_2 = arith.constant 0 : i32
    return %c0_i32, %c0_i32_0, %c0_i32_1 : i32, i32, i32
  }
  func.func @transform_7(%arg0: i32) -> (i32, i32) {
    %c0_i32 = arith.constant 0 : i32
    %c0_i32_0 = arith.constant 0 : i32
    return %arg0, %c0_i32 : i32, i32
  }
  func.func @transform_8(%arg0: i32) -> (i32, i32, i32) {
    %c0_i32 = arith.constant 0 : i32
    %c0_i32_0 = arith.constant 0 : i32
    %c0_i32_1 = arith.constant 0 : i32
    return %c0_i32, %arg0, %c0_i32_0 : i32, i32, i32
  }
  func.func @transform_9(%arg0: i32) -> (i32, i32) {
    %c0_i32 = arith.constant 0 : i32
    %c0_i32_0 = arith.constant 0 : i32
    return %arg0, %c0_i32 : i32, i32
  }
}

</mosaic_0001>

<llo_original>
// kernel: tpu_custom_call.1
$region0: #{tpu_custom_call.1}
  #allocation0 [shape = 'u32[]', space=smem, size = 0x4, offset = 0x4, fixed_abs, tag = 'smem constant byte address 0x4 - core index']
  #allocation1 [shape = 'u32[144,128]{1,0:T(1,128)}', space=vmem, size = 0x12000, scoped, tag = 'internal scratch']
  %s0 = inlined_call_operand.hbm [shape: f32[8,128], index: 0, kind: input, shape index: {}]
  %s1 = inlined_call_operand.hbm [shape: f32[8,128], index: 1, kind: input, shape index: {}]
  %s2 = inlined_call_operand.hbm [shape: f32[128,128], index: 2, kind: input, shape index: {}]
  %s3 = inlined_call_operand.hbm [shape: f32[2,128,512], index: 3, kind: input, shape index: {}]
  %s4 = inlined_call_operand.hbm [shape: f32[2,4,128,128], index: 4, kind: input, shape index: {}]
  %s5 = inlined_call_operand.hbm [shape: f32[2,4,128,128], index: 5, kind: input, shape index: {}]
  %s6 = inlined_call_operand.vmem [shape: f32[2,1,128], index: 6, kind: input, shape index: {}]
  %s7 = inlined_call_operand.hbm [shape: f32[8,128], index: 7, kind: output, shape index: {0}]
  %s8 = inlined_call_operand.vmem [shape: s32[2,8,4], index: 8, kind: output, shape index: {1}]
  %s9 = inlined_call_operand.hbm [shape: f32[8,128], index: 9, kind: output, shape index: {2}]
  %10 = xla_tuple %s7, %s8, %s9
  %s11 = sld [smem:[#allocation0]]
  $region78: #{tpu_custom_call.1} parent=0
    _
  %s13 = ssub.s32 1, %s11
  %s14 = scalar_select 0, %s13, %s11
  $region1: #{tpu_custom_call.1} parent=0
    #allocation2 [shape = 'u8[4096]{0}', space=vmem, size = 0x1000, scoped, tag = 'input window, operand 0, single buffered']
    #allocation3 [shape = 's32[1]{0}', space=sflag, size = 0x4, scoped, tag = 'scoped memory for tpu_custom_call.1']
    #allocation4 [shape = 's32[1]{0}', space=sflag, size = 0x4, scoped, tag = 'scoped memory for tpu_custom_call.1']
    #allocation5 [shape = 'u8[4096]{0}', space=vmem, size = 0x1000, scoped, tag = 'input window, operand 1, single buffered']
    #allocation6 [shape = 's32[1]{0}', space=sflag, size = 0x4, scoped, tag = 'scoped memory for tpu_custom_call.1']
    #allocation7 [shape = 'u8[65536]{0}', space=vmem, size = 0x10000, scoped, tag = 'input window, operand 2, single buffered']
    #allocation8 [shape = 'u8[524288]{0}', space=vmem, size = 0x80000, scoped, tag = 'input window, operand 3, single buffered']
    #allocation9 [shape = 's32[1]{0}', space=sflag, size = 0x4, scoped, tag = 'scoped memory for tpu_custom_call.1']
    #allocation10 [shape = 'u8[524288]{0}', space=vmem, size = 0x80000, scoped, tag = 'input window, operand 4, single buffered']
    #allocation11 [shape = 'u8[524288]{0}', space=vmem, size = 0x80000, scoped, tag = 'input window, operand 5, single buffered']
    #allocation12 [shape = 's32[1]{0}', space=sflag, size = 0x4, scoped, tag = 'scoped memory for tpu_custom_call.1']
    #allocation13 [shape = 'u8[4096]{0}', space=vmem, size = 0x1000, scoped, tag = 'output window, operand 0, single buffered']
    #allocation14 [shape = 'u8[4096]{0}', space=vmem, size = 0x1000, scoped, tag = 'output window, operand 2, single buffered']
    #allocation15 [shape = 's32[1]{0}', space=sflag, size = 0x4, scoped, tag = 'scoped memory for tpu_custom_call.1']
    %15 = vsyncpa [#allocation3], 0
    %16 = vsyncpa [#allocation6], 0
    %17 = vsyncpa [#allocation9], 0
    %18 = vsyncpa [#allocation12], 0
    %19 = vsyncpa [#allocation4], 0
    %20 = vsyncpa [#allocation15], 0
    // Predicated region
    $region2: #{tpu_custom_call.1} parent=1 // pred_check
      _
    $region3: #{tpu_custom_call.1} parent=1 // pred_check_branch
      %22 = sbr.rel (0) target = $region5
    $region4: #{tpu_custom_call.1} parent=1 // pred_region
      %s24 = ssub.s32 128, 128
      %25 = vsyncadd [#allocation3], %s24
      %s27 = sshll.u32 [#allocation2], 4
      %s28 = int_to_ptr.vmem [resolvable:$true] %s27
      %30 = dma.hbm_to_vmem [thread:$0]  %s0, 128, %s28, [#allocation3]
    $region5: #{tpu_custom_call.1} parent=1 // pred_fallthru
      _
    // Predicated region
    $region6: #{tpu_custom_call.1} parent=1 // pred_check
      _
    $region7: #{tpu_custom_call.1} parent=1 // pred_check_branch
      %32 = sbr.rel (0) target = $region9
    $region8: #{tpu_custom_call.1} parent=1 // pred_region
      %s34 = ssub.s32 128, 128
      %35 = vsyncadd [#allocation6], %s34
      %s37 = sshll.u32 [#allocation5], 4
      %s38 = int_to_ptr.vmem [resolvable:$true] %s37
      %40 = dma.hbm_to_vmem [thread:$0]  %s1, 128, %s38, [#allocation6]
    $region9: #{tpu_custom_call.1} parent=1 // pred_fallthru
      _
    // Predicated region
    $region10: #{tpu_custom_call.1} parent=1 // pred_check
      _
    $region11: #{tpu_custom_call.1} parent=1 // pred_check_branch
      %42 = sbr.rel (0) target = $region13
    $region12: #{tpu_custom_call.1} parent=1 // pred_region
      %s44 = ssub.s32 2048, 2048
      %45 = vsyncadd [#allocation6], %s44
      %s46 = sshll.u32 [#allocation7], 4
      %s47 = int_to_ptr.vmem [resolvable:$true] %s46
      %52 = dma.hbm_to_vmem [thread:$0]  %s2, 2048, %s47, [#allocation6], 128, 128, 8
    $region13: #{tpu_custom_call.1} parent=1 // pred_fallthru
      _
    // Predicated region
    $region14: #{tpu_custom_call.1} parent=1 // pred_check
      _
    $region15: #{tpu_custom_call.1} parent=1 // pred_check_branch
      %54 = sbr.rel (0) target = $region17
    $region16: #{tpu_custom_call.1} parent=1 // pred_region
      %s56 = ssub.s32 16384, 16384
      %57 = vsyncadd [#allocation9], %s56
      %s58 = sshll.u32 [#allocation8], 4
      %s59 = int_to_ptr.vmem [resolvable:$true] %s58
      %64 = dma.hbm_to_vmem [thread:$0]  %s3, 16384, %s59, [#allocation9], 512, 512, 32
    $region17: #{tpu_custom_call.1} parent=1 // pred_fallthru
      _
    // Predicated region
    $region18: #{tpu_custom_call.1} parent=1 // pred_check
      _
    $region19: #{tpu_custom_call.1} parent=1 // pred_check_branch
      %66 = sbr.rel (0) target = $region21
    $region20: #{tpu_custom_call.1} parent=1 // pred_region
      %s68 = ssub.s32 16384, 16384
      %69 = vsyncadd [#allocation9], %s68
      %s70 = sshll.u32 [#allocation10], 4
      %s71 = int_to_ptr.vmem [resolvable:$true] %s70
      %76 = dma.hbm_to_vmem [thread:$0]  %s4, 16384, %s71, [#allocation9], 128, 128, 8
    $region21: #{tpu_custom_call.1} parent=1 // pred_fallthru
      _
    // Predicated region
    $region22: #{tpu_custom_call.1} parent=1 // pred_check
      _
    $region23: #{tpu_custom_call.1} parent=1 // pred_check_branch
      %78 = sbr.rel (0) target = $region25
    $region24: #{tpu_custom_call.1} parent=1 // pred_region
      %s80 = ssub.s32 16384, 16384
      %81 = vsyncadd [#allocation12], %s80
      %s82 = sshll.u32 [#allocation11], 4
      %s83 = int_to_ptr.vmem [resolvable:$true] %s82
      %88 = dma.hbm_to_vmem [thread:$0]  %s5, 16384, %s83, [#allocation12], 128, 128, 8
    $region25: #{tpu_custom_call.1} parent=1 // pred_fallthru
      _
    // Predicated region
    $region26: #{tpu_custom_call.1} parent=1 // pred_check
      _
    $region27: #{tpu_custom_call.1} parent=1 // pred_check_branch
      %90 = sbr.rel (0) target = $region29
    $region28: #{tpu_custom_call.1} parent=1 // pred_region
      _
    $region29: #{tpu_custom_call.1} parent=1 // pred_fallthru
      _
    // Predicated region
    $region30: #{tpu_custom_call.1} parent=1 // pred_check
      _
    $region31: #{tpu_custom_call.1} parent=1 // pred_check_branch
      %92 = sbr.rel (0) target = $region33
    $region32: #{tpu_custom_call.1} parent=1 // pred_region
      %93 = dma.done [#allocation3], 128
    $region33: #{tpu_custom_call.1} parent=1 // pred_fallthru
      _
    // Predicated region
    $region34: #{tpu_custom_call.1} parent=1 // pred_check
      _
    $region35: #{tpu_custom_call.1} parent=1 // pred_check_branch
      %95 = sbr.rel (0) target = $region37
    $region36: #{tpu_custom_call.1} parent=1 // pred_region
      %96 = dma.done [#allocation6], 128
    $region37: #{tpu_custom_call.1} parent=1 // pred_fallthru
      _
    // Predicated region
    $region38: #{tpu_custom_call.1} parent=1 // pred_check
      _
    $region39: #{tpu_custom_call.1} parent=1 // pred_check_branch
      %98 = sbr.rel (0) target = $region41
    $region40: #{tpu_custom_call.1} parent=1 // pred_region
      %99 = dma.done [#allocation6], 2048
    $region41: #{tpu_custom_call.1} parent=1 // pred_fallthru
      _
    // Predicated region
    $region42: #{tpu_custom_call.1} parent=1 // pred_check
      _
    $region43: #{tpu_custom_call.1} parent=1 // pred_check_branch
      %101 = sbr.rel (0) target = $region45
    $region44: #{tpu_custom_call.1} parent=1 // pred_region
      %102 = dma.done [#allocation9], 16384
    $region45: #{tpu_custom_call.1} parent=1 // pred_fallthru
      _
    // Predicated region
    $region46: #{tpu_custom_call.1} parent=1 // pred_check
      _
    $region47: #{tpu_custom_call.1} parent=1 // pred_check_branch
      %104 = sbr.rel (0) target = $region49
    $region48: #{tpu_custom_call.1} parent=1 // pred_region
      %105 = dma.done [#allocation9], 16384
    $region49: #{tpu_custom_call.1} parent=1 // pred_fallthru
      _
    // Predicated region
    $region50: #{tpu_custom_call.1} parent=1 // pred_check
      _
    $region51: #{tpu_custom_call.1} parent=1 // pred_check_branch
      %107 = sbr.rel (0) target = $region53
    $region52: #{tpu_custom_call.1} parent=1 // pred_region
      %108 = dma.done [#allocation12], 16384
    $region53: #{tpu_custom_call.1} parent=1 // pred_fallthru
      _
    %v109 = vld [vmem:[#allocation2] sm:$0xff]
    %v110 = vld [vmem:[#allocation7] sm:$0xff]
    %v111 = vld [vmem:[#allocation7 + $0x8] sm:$0xff]
    %v112 = vld [vmem:[#allocation7 + $0x10] sm:$0xff]
    %v113 = vld [vmem:[#allocation7 + $0x18] sm:$0xff]
    %v114 = vld [vmem:[#allocation7 + $0x20] sm:$0xff]
    %v115 = vld [vmem:[#allocation7 + $0x28] sm:$0xff]
    %v116 = vld [vmem:[#allocation7 + $0x30] sm:$0xff]
    %v117 = vld [vmem:[#allocation7 + $0x38] sm:$0xff]
    %v118 = vld [vmem:[#allocation7 + $0x40] sm:$0xff]
    %v119 = vld [vmem:[#allocation7 + $0x48] sm:$0xff]
    %v120 = vld [vmem:[#allocation7 + $0x50] sm:$0xff]
    %v121 = vld [vmem:[#allocation7 + $0x58] sm:$0xff]
    %v122 = vld [vmem:[#allocation7 + $0x60] sm:$0xff]
    %v123 = vld [vmem:[#allocation7 + $0x68] sm:$0xff]
    %v124 = vld [vmem:[#allocation7 + $0x70] sm:$0xff]
    %v125 = vld [vmem:[#allocation7 + $0x78] sm:$0xff]
    %126 = vmatprep.subr.mxu0 0.0
    %127 = vmatpush1.msra.mxu0 %v110
    %128 = vmatprep.subr.mxu0 0.0
    %129 = vmatpush1.msra.mxu0 %v111
    %130 = vmatprep.subr.mxu0 0.0
    %131 = vmatpush1.msra.mxu0 %v112
    %132 = vmatprep.subr.mxu0 0.0
    %133 = vmatpush1.msra.mxu0 %v113
    %134 = vmatprep.subr.mxu0 0.0
    %135 = vmatpush1.msra.mxu0 %v114
    %136 = vmatprep.subr.mxu0 0.0
    %137 = vmatpush1.msra.mxu0 %v115
    %138 = vmatprep.subr.mxu0 0.0
    %139 = vmatpush1.msra.mxu0 %v116
    %140 = vmatprep.subr.mxu0 0.0
    %141 = vmatpush1.msra.mxu0 %v117
    %142 = vmatprep.subr.mxu0 0.0
    %143 = vmatpush1.msra.mxu0 %v118
    %144 = vmatprep.subr.mxu0 0.0
    %145 = vmatpush1.msra.mxu0 %v119
    %146 = vmatprep.subr.mxu0 0.0
    %147 = vmatpush1.msra.mxu0 %v120
    %148 = vmatprep.subr.mxu0 0.0
    %149 = vmatpush1.msra.mxu0 %v121
    %150 = vmatprep.subr.mxu0 0.0
    %151 = vmatpush1.msra.mxu0 %v122
    %152 = vmatprep.subr.mxu0 0.0
    %153 = vmatpush1.msra.mxu0 %v123
    %154 = vmatprep.subr.mxu0 0.0
    %155 = vmatpush1.msra.mxu0 %v124
    %156 = vmatprep.subr.mxu0 0.0
    %157 = vmatpush1.msra.mxu0 %v125
    %158 = vmatprep.subr.mxu0 0.0
    %159 = vmatpush1.msra.mxu0 0.0
    %160 = vmatprep.subr.mxu0 0.0
    %161 = vmatpush1.msra.mxu0 0.0
    %162 = vmatprep.subr.mxu0 0.0
    %163 = vmatpush1.msra.mxu0 0.0
    %164 = vmatprep.subr.mxu0 0.0
    %165 = vmatpush1.msra.mxu0 0.0
    %166 = vmatprep.subr.mxu0 0.0
    %167 = vmatpush1.msra.mxu0 0.0
    %168 = vmatprep.subr.mxu0 0.0
    %169 = vmatpush1.msra.mxu0 0.0
    %170 = vmatprep.subr.mxu0 0.0
    %171 = vmatpush1.msra.mxu0 0.0
    %172 = vmatprep.subr.mxu0 0.0
    %173 = vmatpush1.msra.mxu0 0.0
    %174 = vmatprep.subr.mxu0 0.0
    %175 = vmatpush1.msra.mxu0 0.0
    %176 = vmatprep.subr.mxu0 0.0
    %177 = vmatpush1.msra.mxu0 0.0
    %178 = vmatprep.subr.mxu0 0.0
    %179 = vmatpush1.msra.mxu0 0.0
    %180 = vmatprep.subr.mxu0 0.0
    %181 = vmatpush1.msra.mxu0 0.0
    %182 = vmatprep.subr.mxu0 0.0
    %183 = vmatpush1.msra.mxu0 0.0
    %184 = vmatprep.subr.mxu0 0.0
    %185 = vmatpush1.msra.mxu0 0.0
    %186 = vmatprep.subr.mxu0 0.0
    %187 = vmatpush1.msra.mxu0 0.0
    %188 = vmatprep.subr.mxu0 0.0
    %189 = vmatpush1.msra.mxu0 0.0
    %190 = vmatprep.mubr.f32.mxu0 0.0
    %191 = vmatmul.mubr.f32.gmra.mrb[0].mxu0 %v109
    %v192 = vpop.f32.mrb[0].mxu0
    %v193 = vadd.f32 0.0, %v192
    %v194 = vpop.f32.mrb[0].mxu0
    %195 = vdwg.mxu0
    %v196 = vlaneseq
    %v197 = vand.u32 %v196, 127
    %v198 = vld [vmem:[#allocation8] sm:$0xff]
    %v199 = vld [vmem:[#allocation8 + $0x8] sm:$0xff]
    %v200 = vld [vmem:[#allocation8 + $0x10] sm:$0xff]
    %v201 = vld [vmem:[#allocation8 + $0x18] sm:$0xff]
    %v202 = vld [vmem:[#allocation8 + $0x20] sm:$0xff]
    %v203 = vld [vmem:[#allocation8 + $0x28] sm:$0xff]
    %v204 = vld [vmem:[#allocation8 + $0x30] sm:$0xff]
    %v205 = vld [vmem:[#allocation8 + $0x38] sm:$0xff]
    %v206 = vld [vmem:[#allocation8 + $0x40] sm:$0xff]
    %v207 = vld [vmem:[#allocation8 + $0x48] sm:$0xff]
    %v208 = vld [vmem:[#allocation8 + $0x50] sm:$0xff]
    %v209 = vld [vmem:[#allocation8 + $0x58] sm:$0xff]
    %v210 = vld [vmem:[#allocation8 + $0x60] sm:$0xff]
    %v211 = vld [vmem:[#allocation8 + $0x68] sm:$0xff]
    %v212 = vld [vmem:[#allocation8 + $0x70] sm:$0xff]
    %v213 = vld [vmem:[#allocation8 + $0x78] sm:$0xff]
    %v214 = vld [vmem:[#allocation8 + $0x80] sm:$0xff]
    %v215 = vld [vmem:[#allocation8 + $0x88] sm:$0xff]
    %v216 = vld [vmem:[#allocation8 + $0x90] sm:$0xff]
    %v217 = vld [vmem:[#allocation8 + $0x98] sm:$0xff]
    %v218 = vld [vmem:[#allocation8 + $0xa0] sm:$0xff]
    %v219 = vld [vmem:[#allocation8 + $0xa8] sm:$0xff]
    %v220 = vld [vmem:[#allocation8 + $0xb0] sm:$0xff]
    %v221 = vld [vmem:[#allocation8 + $0xb8] sm:$0xff]
    %v222 = vld [vmem:[#allocation8 + $0xc0] sm:$0xff]
    %v223 = vld [vmem:[#allocation8 + $0xc8] sm:$0xff]
    %v224 = vld [vmem:[#allocation8 + $0xd0] sm:$0xff]
    %v225 = vld [vmem:[#allocation8 + $0xd8] sm:$0xff]
    %v226 = vld [vmem:[#allocation8 + $0xe0] sm:$0xff]
    %v227 = vld [vmem:[#allocation8 + $0xe8] sm:$0xff]
    %v228 = vld [vmem:[#allocation8 + $0xf0] sm:$0xff]
    %v229 = vld [vmem:[#allocation8 + $0xf8] sm:$0xff]
    %v230 = vld [vmem:[#allocation8 + $0x100] sm:$0xff]
    %v231 = vld [vmem:[#allocation8 + $0x108] sm:$0xff]
    %v232 = vld [vmem:[#allocation8 + $0x110] sm:$0xff]
    %v233 = vld [vmem:[#allocation8 + $0x118] sm:$0xff]
    %v234 = vld [vmem:[#allocation8 + $0x120] sm:$0xff]
    %v235 = vld [vmem:[#allocation8 + $0x128] sm:$0xff]
    %v236 = vld [vmem:[#allocation8 + $0x130] sm:$0xff]
    %v237 = vld [vmem:[#allocation8 + $0x138] sm:$0xff]
    %v238 = vld [vmem:[#allocation8 + $0x140] sm:$0xff]
    %v239 = vld [vmem:[#allocation8 + $0x148] sm:$0xff]
    %v240 = vld [vmem:[#allocation8 + $0x150] sm:$0xff]
    %v241 = vld [vmem:[#allocation8 + $0x158] sm:$0xff]
    %v242 = vld [vmem:[#allocation8 + $0x160] sm:$0xff]
    %v243 = vld [vmem:[#allocation8 + $0x168] sm:$0xff]
    %v244 = vld [vmem:[#allocation8 + $0x170] sm:$0xff]
    %v245 = vld [vmem:[#allocation8 + $0x178] sm:$0xff]
    %v246 = vld [vmem:[#allocation8 + $0x180] sm:$0xff]
    %v247 = vld [vmem:[#allocation8 + $0x188] sm:$0xff]
    %v248 = vld [vmem:[#allocation8 + $0x190] sm:$0xff]
    %v249 = vld [vmem:[#allocation8 + $0x198] sm:$0xff]
    %v250 = vld [vmem:[#allocation8 + $0x1a0] sm:$0xff]
    %v251 = vld [vmem:[#allocation8 + $0x1a8] sm:$0xff]
    %v252 = vld [vmem:[#allocation8 + $0x1b0] sm:$0xff]
    %v253 = vld [vmem:[#allocation8 + $0x1b8] sm:$0xff]
    %v254 = vld [vmem:[#allocation8 + $0x1c0] sm:$0xff]
    %v255 = vld [vmem:[#allocation8 + $0x1c8] sm:$0xff]
    %v256 = vld [vmem:[#allocation8 + $0x1d0] sm:$0xff]
    %v257 = vld [vmem:[#allocation8 + $0x1d8] sm:$0xff]
    %v258 = vld [vmem:[#allocation8 + $0x1e0] sm:$0xff]
    %v259 = vld [vmem:[#allocation8 + $0x1e8] sm:$0xff]
    %v260 = vld [vmem:[#allocation8 + $0x1f0] sm:$0xff]
    %v261 = vld [vmem:[#allocation8 + $0x1f8] sm:$0xff]
    %262 = vmatprep.subr.mxu0 %v199
    %263 = vmatpush1.msra.mxu0 %v198
    %264 = vmatprep.subr.mxu0 %v203
    %265 = vmatpush1.msra.mxu0 %v202
    %266 = vmatprep.subr.mxu0 %v207
    %267 = vmatpush1.msra.mxu0 %v206
    %268 = vmatprep.subr.mxu0 %v211
    %269 = vmatpush1.msra.mxu0 %v210
    %270 = vmatprep.subr.mxu0 %v215
    %271 = vmatpush1.msra.mxu0 %v214
    %272 = vmatprep.subr.mxu0 %v219
    %273 = vmatpush1.msra.mxu0 %v218
    %274 = vmatprep.subr.mxu0 %v223
    %275 = vmatpush1.msra.mxu0 %v222
    %276 = vmatprep.subr.mxu0 %v227
    %277 = vmatpush1.msra.mxu0 %v226
    %278 = vmatprep.subr.mxu0 %v231
    %279 = vmatpush1.msra.mxu0 %v230
    %280 = vmatprep.subr.mxu0 %v235
    %281 = vmatpush1.msra.mxu0 %v234
    %282 = vmatprep.subr.mxu0 %v239
    %283 = vmatpush1.msra.mxu0 %v238
    %284 = vmatprep.subr.mxu0 %v243
    %285 = vmatpush1.msra.mxu0 %v242
    %286 = vmatprep.subr.mxu0 %v247
    %287 = vmatpush1.msra.mxu0 %v246
    %288 = vmatprep.subr.mxu0 %v251
    %289 = vmatpush1.msra.mxu0 %v250
    %290 = vmatprep.subr.mxu0 %v255
    %291 = vmatpush1.msra.mxu0 %v254
    %292 = vmatprep.subr.mxu0 %v259
    %293 = vmatpush1.msra.mxu0 %v258
    %294 = vmatprep.subr.mxu0 0.0
    %295 = vmatpush1.msra.mxu0 0.0
    %296 = vmatprep.subr.mxu0 0.0
    %297 = vmatpush1.msra.mxu0 0.0
    %298 = vmatprep.subr.mxu0 0.0
    %299 = vmatpush1.msra.mxu0 0.0
    %300 = vmatprep.subr.mxu0 0.0
    %301 = vmatpush1.msra.mxu0 0.0
    %302 = vmatprep.subr.mxu0 0.0
    %303 = vmatpush1.msra.mxu0 0.0
    %304 = vmatprep.subr.mxu0 0.0
    %305 = vmatpush1.msra.mxu0 0.0
    %306 = vmatprep.subr.mxu0 0.0
    %307 = vmatpush1.msra.mxu0 0.0
    %308 = vmatprep.subr.mxu0 0.0
    %309 = vmatpush1.msra.mxu0 0.0
    %310 = vmatprep.subr.mxu0 0.0
    %311 = vmatpush1.msra.mxu0 0.0
    %312 = vmatprep.subr.mxu0 0.0
    %313 = vmatpush1.msra.mxu0 0.0
    %314 = vmatprep.subr.mxu0 0.0
    %315 = vmatpush1.msra.mxu0 0.0
    %316 = vmatprep.subr.mxu0 0.0
    %317 = vmatpush1.msra.mxu0 0.0
    %318 = vmatprep.subr.mxu0 0.0
    %319 = vmatpush1.msra.mxu0 0.0
    %320 = vmatprep.subr.mxu0 0.0
    %321 = vmatpush1.msra.mxu0 0.0
    %322 = vmatprep.subr.mxu0 0.0
    %323 = vmatpush1.msra.mxu0 0.0
    %324 = vmatprep.subr.mxu0 0.0
    %325 = vmatpush1.msra.mxu0 0.0
    %326 = vmatprep.mubr.f32.mxu0 0.0
    %327 = vmatmul.mubr.f32.gmra.mrb[0].mxu0 %v193
    %v328 = vpop.f32.mrb[0].mxu0
    %v329 = vadd.f32 0.0, %v328
    %v330 = vpop.f32.mrb[0].mxu0
    %v331 = vadd.f32 0.0, %v330
    %332 = vdwg.mxu0
    %333 = vmatprep.subr.mxu0 %v201
    %334 = vmatpush1.msra.mxu0 %v200
    %335 = vmatprep.subr.mxu0 %v205
    %336 = vmatpush1.msra.mxu0 %v204
    %337 = vmatprep.subr.mxu0 %v209
    %338 = vmatpush1.msra.mxu0 %v208
    %339 = vmatprep.subr.mxu0 %v213
    %340 = vmatpush1.msra.mxu0 %v212
    %341 = vmatprep.subr.mxu0 %v217
    %342 = vmatpush1.msra.mxu0 %v216
    %343 = vmatprep.subr.mxu0 %v221
    %344 = vmatpush1.msra.mxu0 %v220
    %345 = vmatprep.subr.mxu0 %v225
    %346 = vmatpush1.msra.mxu0 %v224
    %347 = vmatprep.subr.mxu0 %v229
    %348 = vmatpush1.msra.mxu0 %v228
    %349 = vmatprep.subr.mxu0 %v233
    %350 = vmatpush1.msra.mxu0 %v232
    %351 = vmatprep.subr.mxu0 %v237
    %352 = vmatpush1.msra.mxu0 %v236
    %353 = vmatprep.subr.mxu0 %v241
    %354 = vmatpush1.msra.mxu0 %v240
    %355 = vmatprep.subr.mxu0 %v245
    %356 = vmatpush1.msra.mxu0 %v244
    %357 = vmatprep.subr.mxu0 %v249
    %358 = vmatpush1.msra.mxu0 %v248
    %359 = vmatprep.subr.mxu0 %v253
    %360 = vmatpush1.msra.mxu0 %v252
    %361 = vmatprep.subr.mxu0 %v257
    %362 = vmatpush1.msra.mxu0 %v256
    %363 = vmatprep.subr.mxu0 %v261
    %364 = vmatpush1.msra.mxu0 %v260
    %365 = vmatprep.subr.mxu0 0.0
    %366 = vmatpush1.msra.mxu0 0.0
    %367 = vmatprep.subr.mxu0 0.0
    %368 = vmatpush1.msra.mxu0 0.0
    %369 = vmatprep.subr.mxu0 0.0
    %370 = vmatpush1.msra.mxu0 0.0
    %371 = vmatprep.subr.mxu0 0.0
    %372 = vmatpush1.msra.mxu0 0.0
    %373 = vmatprep.subr.mxu0 0.0
    %374 = vmatpush1.msra.mxu0 0.0
    %375 = vmatprep.subr.mxu0 0.0
    %376 = vmatpush1.msra.mxu0 0.0
    %377 = vmatprep.subr.mxu0 0.0
    %378 = vmatpush1.msra.mxu0 0.0
    %379 = vmatprep.subr.mxu0 0.0
    %380 = vmatpush1.msra.mxu0 0.0
    %381 = vmatprep.subr.mxu0 0.0
    %382 = vmatpush1.msra.mxu0 0.0
    %383 = vmatprep.subr.mxu0 0.0
    %384 = vmatpush1.msra.mxu0 0.0
    %385 = vmatprep.subr.mxu0 0.0
    %386 = vmatpush1.msra.mxu0 0.0
    %387 = vmatprep.subr.mxu0 0.0
    %388 = vmatpush1.msra.mxu0 0.0
    %389 = vmatprep.subr.mxu0 0.0
    %390 = vmatpush1.msra.mxu0 0.0
    %391 = vmatprep.subr.mxu0 0.0
    %392 = vmatpush1.msra.mxu0 0.0
    %393 = vmatprep.subr.mxu0 0.0
    %394 = vmatpush1.msra.mxu0 0.0
    %395 = vmatprep.subr.mxu0 0.0
    %396 = vmatpush1.msra.mxu0 0.0
    %397 = vmatprep.mubr.f32.mxu0 0.0
    %398 = vmatmul.mubr.f32.gmra.mrb[0].mxu0 %v193
    %v399 = vpop.f32.mrb[0].mxu0
    %v400 = vadd.f32 0.0, %v399
    %v401 = vpop.f32.mrb[0].mxu0
    %v402 = vadd.f32 0.0, %v401
    %403 = vdwg.mxu0
    %v404 = vld [vmem:[%s6] sm:$0x1]
    %v405 = vmul.f32 %v329, 2.0
    %v407 = vlaneseq
    %v408 = vshrl.u32 %v407, 7
    %v409 = vsub.s32 0, %v408
    %v410 = vrot.slane %v404, %v409
    %v412 = vsub.f32 %v410, %v405
    %413 = vmin.xlane.f32.xlu0 %v412
    %v414 = vpop.xlane.xlu0 %413
    %vm415 = vcmp.eq.f32.partialorder %v412, %v414
    %v416 = vsel %vm415, %v197, 128
    %v417 = vand.u32 %v416, 65535
    %v418 = vshra.s32 %v416, 16
    %v419 = vcvt.s32.f32 %v417
    %v420 = vcvt.s32.f32 %v418
    %421 = vmin.xlane.f32.xlu0 %v420
    %v422 = vpop.xlane.xlu0 %421
    %vm423 = vcmp.eq.f32.partialorder %v420, %v422
    %v424 = vsel %vm423, %v419, inf
    %425 = vmin.xlane.f32.xlu0 %v424
    %v426 = vpop.xlane.xlu0 %425
    %v427 = vcvt.f32.s32 %v426
    %v428 = vcvt.f32.s32 %v422
    %v429 = vshll.u32 %v428, 16
    %v430 = vadd.s32 %v429, %v427
    %vm431 = vcmp.eq.s32.totalorder %v197, %v430
    %v432 = vsel %vm431, 1, 0
    %v433 = vcvt.s32.f32 %v432
    %v434 = vld [vmem:[#allocation10] sm:$0xff]
    %v435 = vld [vmem:[#allocation10 + $0x8] sm:$0xff]
    %v436 = vld [vmem:[#allocation10 + $0x10] sm:$0xff]
    %v437 = vld [vmem:[#allocation10 + $0x18] sm:$0xff]
    %v438 = vld [vmem:[#allocation10 + $0x20] sm:$0xff]
    %v439 = vld [vmem:[#allocation10 + $0x28] sm:$0xff]
    %v440 = vld [vmem:[#allocation10 + $0x30] sm:$0xff]
    %v441 = vld [vmem:[#allocation10 + $0x38] sm:$0xff]
    %v442 = vld [vmem:[#allocation10 + $0x40] sm:$0xff]
    %v443 = vld [vmem:[#allocation10 + $0x48] sm:$0xff]
    %v444 = vld [vmem:[#allocation10 + $0x50] sm:$0xff]
    %v445 = vld [vmem:[#allocation10 + $0x58] sm:$0xff]
    %v446 = vld [vmem:[#allocation10 + $0x60] sm:$0xff]
    %v447 = vld [vmem:[#allocation10 + $0x68] sm:$0xff]
    %v448 = vld [vmem:[#allocation10 + $0x70] sm:$0xff]
    %v449 = vld [vmem:[#allocation10 + $0x78] sm:$0xff]
    %v450 = vld [vmem:[#allocation11] sm:$0xff]
    %v451 = vld [vmem:[#allocation11 + $0x8] sm:$0xff]
    %v452 = vld [vmem:[#allocation11 + $0x10] sm:$0xff]
    %v453 = vld [vmem:[#allocation11 + $0x18] sm:$0xff]
    %v454 = vld [vmem:[#allocation11 + $0x20] sm:$0xff]
    %v455 = vld [vmem:[#allocation11 + $0x28] sm:$0xff]
    %v456 = vld [vmem:[#allocation11 + $0x30] sm:$0xff]
    %v457 = vld [vmem:[#allocation11 + $0x38] sm:$0xff]
    %v458 = vld [vmem:[#allocation11 + $0x40] sm:$0xff]
    %v459 = vld [vmem:[#allocation11 + $0x48] sm:$0xff]
    %v460 = vld [vmem:[#allocation11 + $0x50] sm:$0xff]
    %v461 = vld [vmem:[#allocation11 + $0x58] sm:$0xff]
    %v462 = vld [vmem:[#allocation11 + $0x60] sm:$0xff]
    %v463 = vld [vmem:[#allocation11 + $0x68] sm:$0xff]
    %v464 = vld [vmem:[#allocation11 + $0x70] sm:$0xff]
    %v465 = vld [vmem:[#allocation11 + $0x78] sm:$0xff]
    %466 = vmatprep.subr.mxu0 0.0
    %467 = vmatpush1.msra.mxu0 %v450
    %468 = vmatprep.subr.mxu0 0.0
    %469 = vmatpush1.msra.mxu0 %v451
    %470 = vmatprep.subr.mxu0 0.0
    %471 = vmatpush1.msra.mxu0 %v452
    %472 = vmatprep.subr.mxu0 0.0
    %473 = vmatpush1.msra.mxu0 %v453
    %474 = vmatprep.subr.mxu0 0.0
    %475 = vmatpush1.msra.mxu0 %v454
    %476 = vmatprep.subr.mxu0 0.0
    %477 = vmatpush1.msra.mxu0 %v455
    %478 = vmatprep.subr.mxu0 0.0
    %479 = vmatpush1.msra.mxu0 %v456
    %480 = vmatprep.subr.mxu0 0.0
    %481 = vmatpush1.msra.mxu0 %v457
    %482 = vmatprep.subr.mxu0 0.0
    %483 = vmatpush1.msra.mxu0 %v458
    %484 = vmatprep.subr.mxu0 0.0
    %485 = vmatpush1.msra.mxu0 %v459
    %486 = vmatprep.subr.mxu0 0.0
    %487 = vmatpush1.msra.mxu0 %v460
    %488 = vmatprep.subr.mxu0 0.0
    %489 = vmatpush1.msra.mxu0 %v461
    %490 = vmatprep.subr.mxu0 0.0
    %491 = vmatpush1.msra.mxu0 %v462
    %492 = vmatprep.subr.mxu0 0.0
    %493 = vmatpush1.msra.mxu0 %v463
    %494 = vmatprep.subr.mxu0 0.0
    %495 = vmatpush1.msra.mxu0 %v464
    %496 = vmatprep.subr.mxu0 0.0
    %497 = vmatpush1.msra.mxu0 %v465
    %498 = vmatprep.subr.mxu0 0.0
    %499 = vmatpush1.msra.mxu0 0.0
    %500 = vmatprep.subr.mxu0 0.0
    %501 = vmatpush1.msra.mxu0 0.0
    %502 = vmatprep.subr.mxu0 0.0
    %503 = vmatpush1.msra.mxu0 0.0
    %504 = vmatprep.subr.mxu0 0.0
    %505 = vmatpush1.msra.mxu0 0.0
    %506 = vmatprep.subr.mxu0 0.0
    %507 = vmatpush1.msra.mxu0 0.0
    %508 = vmatprep.subr.mxu0 0.0
    %509 = vmatpush1.msra.mxu0 0.0
    %510 = vmatprep.subr.mxu0 0.0
    %511 = vmatpush1.msra.mxu0 0.0
    %512 = vmatprep.subr.mxu0 0.0
    %513 = vmatpush1.msra.mxu0 0.0
    %514 = vmatprep.subr.mxu0 0.0
    %515 = vmatpush1.msra.mxu0 0.0
    %516 = vmatprep.subr.mxu0 0.0
    %517 = vmatpush1.msra.mxu0 0.0
    %518 = vmatprep.subr.mxu0 0.0
    %519 = vmatpush1.msra.mxu0 0.0
    %520 = vmatprep.subr.mxu0 0.0
    %521 = vmatpush1.msra.mxu0 0.0
    %522 = vmatprep.subr.mxu0 0.0
    %523 = vmatpush1.msra.mxu0 0.0
    %524 = vmatprep.subr.mxu0 0.0
    %525 = vmatpush1.msra.mxu0 0.0
    %526 = vmatprep.subr.mxu0 0.0
    %527 = vmatpush1.msra.mxu0 0.0
    %528 = vmatprep.subr.mxu0 0.0
    %529 = vmatpush1.msra.mxu0 0.0
    %530 = vmatprep.mubr.f32.mxu0 0.0
    %531 = vmatmul.mubr.f32.gmra.mrb[0].mxu0 %v433
    %v532 = vpop.f32.mrb[0].mxu0
    %v533 = vadd.f32 0.0, %v532
    %v534 = vpop.f32.mrb[0].mxu0
    %535 = vdwg.mxu0
    %536 = vmatprep.subr.mxu0 0.0
    %537 = vmatpush1.msra.mxu0 %v434
    %538 = vmatprep.subr.mxu0 0.0
    %539 = vmatpush1.msra.mxu0 %v435
    %540 = vmatprep.subr.mxu0 0.0
    %541 = vmatpush1.msra.mxu0 %v436
    %542 = vmatprep.subr.mxu0 0.0
    %543 = vmatpush1.msra.mxu0 %v437
    %544 = vmatprep.subr.mxu0 0.0
    %545 = vmatpush1.msra.mxu0 %v438
    %546 = vmatprep.subr.mxu0 0.0
    %547 = vmatpush1.msra.mxu0 %v439
    %548 = vmatprep.subr.mxu0 0.0
    %549 = vmatpush1.msra.mxu0 %v440
    %550 = vmatprep.subr.mxu0 0.0
    %551 = vmatpush1.msra.mxu0 %v441
    %552 = vmatprep.subr.mxu0 0.0
    %553 = vmatpush1.msra.mxu0 %v442
    %554 = vmatprep.subr.mxu0 0.0
    %555 = vmatpush1.msra.mxu0 %v443
    %556 = vmatprep.subr.mxu0 0.0
    %557 = vmatpush1.msra.mxu0 %v444
    %558 = vmatprep.subr.mxu0 0.0
    %559 = vmatpush1.msra.mxu0 %v445
    %560 = vmatprep.subr.mxu0 0.0
    %561 = vmatpush1.msra.mxu0 %v446
    %562 = vmatprep.subr.mxu0 0.0
    %563 = vmatpush1.msra.mxu0 %v447
    %564 = vmatprep.subr.mxu0 0.0
    %565 = vmatpush1.msra.mxu0 %v448
    %566 = vmatprep.subr.mxu0 0.0
    %567 = vmatpush1.msra.mxu0 %v449
    %568 = vmatprep.subr.mxu0 0.0
    %569 = vmatpush1.msra.mxu0 0.0
    %570 = vmatprep.subr.mxu0 0.0
    %571 = vmatpush1.msra.mxu0 0.0
    %572 = vmatprep.subr.mxu0 0.0
    %573 = vmatpush1.msra.mxu0 0.0
    %574 = vmatprep.subr.mxu0 0.0
    %575 = vmatpush1.msra.mxu0 0.0
    %576 = vmatprep.subr.mxu0 0.0
    %577 = vmatpush1.msra.mxu0 0.0
    %578 = vmatprep.subr.mxu0 0.0
    %579 = vmatpush1.msra.mxu0 0.0
    %580 = vmatprep.subr.mxu0 0.0
    %581 = vmatpush1.msra.mxu0 0.0
    %582 = vmatprep.subr.mxu0 0.0
    %583 = vmatpush1.msra.mxu0 0.0
    %584 = vmatprep.subr.mxu0 0.0
    %585 = vmatpush1.msra.mxu0 0.0
    %586 = vmatprep.subr.mxu0 0.0
    %587 = vmatpush1.msra.mxu0 0.0
    %588 = vmatprep.subr.mxu0 0.0
    %589 = vmatpush1.msra.mxu0 0.0
    %590 = vmatprep.subr.mxu0 0.0
    %591 = vmatpush1.msra.mxu0 0.0
    %592 = vmatprep.subr.mxu0 0.0
    %593 = vmatpush1.msra.mxu0 0.0
    %594 = vmatprep.subr.mxu0 0.0
    %595 = vmatpush1.msra.mxu0 0.0
    %596 = vmatprep.subr.mxu0 0.0
    %597 = vmatpush1.msra.mxu0 0.0
    %598 = vmatprep.subr.mxu0 0.0
    %599 = vmatpush1.msra.mxu0 0.0
    %600 = vmatprep.mubr.f32.mxu0 0.0
    %601 = vmatmul.mubr.f32.gmra.mrb[0].mxu0 %v433
    %v602 = vpop.f32.mrb[0].mxu0
    %v603 = vadd.f32 %v533, %v602
    %v604 = vpop.f32.mrb[0].mxu0
    %605 = vdwg.mxu0
    %vm606 = vcmp.eq.s32.totalorder %v197, 0
    %v607 = vsel %vm606, %v430, 0
    %v608 = vmul.f32 %v331, 2.0
    %v609 = vsub.f32 %v410, %v608
    %610 = vmin.xlane.f32.xlu0 %v609
    %v611 = vpop.xlane.xlu0 %610
    %vm612 = vcmp.eq.f32.partialorder %v609, %v611
    %v613 = vsel %vm612, %v197, 128
    %v614 = vand.u32 %v613, 65535
    %v615 = vshra.s32 %v613, 16
    %v616 = vcvt.s32.f32 %v614
    %v617 = vcvt.s32.f32 %v615
    %618 = vmin.xlane.f32.xlu0 %v617
    %v619 = vpop.xlane.xlu0 %618
    %vm620 = vcmp.eq.f32.partialorder %v617, %v619
    %v621 = vsel %vm620, %v616, inf
    %622 = vmin.xlane.f32.xlu0 %v621
    %v623 = vpop.xlane.xlu0 %622
    %v624 = vcvt.f32.s32 %v623
    %v625 = vcvt.f32.s32 %v619
    %v626 = vshll.u32 %v625, 16
    %v627 = vadd.s32 %v626, %v624
    %vm628 = vcmp.eq.s32.totalorder %v197, %v627
    %v629 = vsel %vm628, 1, 0
    %v630 = vcvt.s32.f32 %v629
    %s631 = scalar_lea.vmem [#allocation10], 128
    %v632 = vld [vmem:[%s631] sm:$0xff]
    %v633 = vld [vmem:[%s631 + $0x8] sm:$0xff]
    %v634 = vld [vmem:[%s631 + $0x10] sm:$0xff]
    %v635 = vld [vmem:[%s631 + $0x18] sm:$0xff]
    %v636 = vld [vmem:[%s631 + $0x20] sm:$0xff]
    %v637 = vld [vmem:[%s631 + $0x28] sm:$0xff]
    %v638 = vld [vmem:[%s631 + $0x30] sm:$0xff]
    %v639 = vld [vmem:[%s631 + $0x38] sm:$0xff]
    %v640 = vld [vmem:[%s631 + $0x40] sm:$0xff]
    %v641 = vld [vmem:[%s631 + $0x48] sm:$0xff]
    %v642 = vld [vmem:[%s631 + $0x50] sm:$0xff]
    %v643 = vld [vmem:[%s631 + $0x58] sm:$0xff]
    %v644 = vld [vmem:[%s631 + $0x60] sm:$0xff]
    %v645 = vld [vmem:[%s631 + $0x68] sm:$0xff]
    %v646 = vld [vmem:[%s631 + $0x70] sm:$0xff]
    %v647 = vld [vmem:[%s631 + $0x78] sm:$0xff]
    %648 = vmatprep.subr.mxu0 0.0
    %649 = vmatpush1.msra.mxu0 %v632
    %650 = vmatprep.subr.mxu0 0.0
    %651 = vmatpush1.msra.mxu0 %v633
    %652 = vmatprep.subr.mxu0 0.0
    %653 = vmatpush1.msra.mxu0 %v634
    %654 = vmatprep.subr.mxu0 0.0
    %655 = vmatpush1.msra.mxu0 %v635
    %656 = vmatprep.subr.mxu0 0.0
    %657 = vmatpush1.msra.mxu0 %v636
    %658 = vmatprep.subr.mxu0 0.0
    %659 = vmatpush1.msra.mxu0 %v637
    %660 = vmatprep.subr.mxu0 0.0
    %661 = vmatpush1.msra.mxu0 %v638
    %662 = vmatprep.subr.mxu0 0.0
    %663 = vmatpush1.msra.mxu0 %v639
    %664 = vmatprep.subr.mxu0 0.0
    %665 = vmatpush1.msra.mxu0 %v640
    %666 = vmatprep.subr.mxu0 0.0
    %667 = vmatpush1.msra.mxu0 %v641
    %668 = vmatprep.subr.mxu0 0.0
    %669 = vmatpush1.msra.mxu0 %v642
    %670 = vmatprep.subr.mxu0 0.0
    %671 = vmatpush1.msra.mxu0 %v643
    %672 = vmatprep.subr.mxu0 0.0
    %673 = vmatpush1.msra.mxu0 %v644
    %674 = vmatprep.subr.mxu0 0.0
    %675 = vmatpush1.msra.mxu0 %v645
    %676 = vmatprep.subr.mxu0 0.0
    %677 = vmatpush1.msra.mxu0 %v646
    %678 = vmatprep.subr.mxu0 0.0
    %679 = vmatpush1.msra.mxu0 %v647
    %680 = vmatprep.subr.mxu0 0.0
    %681 = vmatpush1.msra.mxu0 0.0
    %682 = vmatprep.subr.mxu0 0.0
    %683 = vmatpush1.msra.mxu0 0.0
    %684 = vmatprep.subr.mxu0 0.0
    %685 = vmatpush1.msra.mxu0 0.0
    %686 = vmatprep.subr.mxu0 0.0
    %687 = vmatpush1.msra.mxu0 0.0
    %688 = vmatprep.subr.mxu0 0.0
    %689 = vmatpush1.msra.mxu0 0.0
    %690 = vmatprep.subr.mxu0 0.0
    %691 = vmatpush1.msra.mxu0 0.0
    %692 = vmatprep.subr.mxu0 0.0
    %693 = vmatpush1.msra.mxu0 0.0
    %694 = vmatprep.subr.mxu0 0.0
    %695 = vmatpush1.msra.mxu0 0.0
    %696 = vmatprep.subr.mxu0 0.0
    %697 = vmatpush1.msra.mxu0 0.0
    %698 = vmatprep.subr.mxu0 0.0
    %699 = vmatpush1.msra.mxu0 0.0
    %700 = vmatprep.subr.mxu0 0.0
    %701 = vmatpush1.msra.mxu0 0.0
    %702 = vmatprep.subr.mxu0 0.0
    %703 = vmatpush1.msra.mxu0 0.0
    %704 = vmatprep.subr.mxu0 0.0
    %705 = vmatpush1.msra.mxu0 0.0
    %706 = vmatprep.subr.mxu0 0.0
    %707 = vmatpush1.msra.mxu0 0.0
    %708 = vmatprep.subr.mxu0 0.0
    %709 = vmatpush1.msra.mxu0 0.0
    %710 = vmatprep.subr.mxu0 0.0
    %711 = vmatpush1.msra.mxu0 0.0
    %712 = vmatprep.mubr.f32.mxu0 0.0
    %713 = vmatmul.mubr.f32.gmra.mrb[0].mxu0 %v630
    %v714 = vpop.f32.mrb[0].mxu0
    %v715 = vadd.f32 0.0, %v714
    %v716 = vpop.f32.mrb[0].mxu0
    %717 = vdwg.mxu0
    %v718 = vadd.f32 %v603, %v715
    %s719 = scalar_lea.vmem [#allocation11], 128
    %v720 = vld [vmem:[%s719] sm:$0xff]
    %v721 = vld [vmem:[%s719 + $0x8] sm:$0xff]
    %v722 = vld [vmem:[%s719 + $0x10] sm:$0xff]
    %v723 = vld [vmem:[%s719 + $0x18] sm:$0xff]
    %v724 = vld [vmem:[%s719 + $0x20] sm:$0xff]
    %v725 = vld [vmem:[%s719 + $0x28] sm:$0xff]
    %v726 = vld [vmem:[%s719 + $0x30] sm:$0xff]
    %v727 = vld [vmem:[%s719 + $0x38] sm:$0xff]
    %v728 = vld [vmem:[%s719 + $0x40] sm:$0xff]
    %v729 = vld [vmem:[%s719 + $0x48] sm:$0xff]
    %v730 = vld [vmem:[%s719 + $0x50] sm:$0xff]
    %v731 = vld [vmem:[%s719 + $0x58] sm:$0xff]
    %v732 = vld [vmem:[%s719 + $0x60] sm:$0xff]
    %v733 = vld [vmem:[%s719 + $0x68] sm:$0xff]
    %v734 = vld [vmem:[%s719 + $0x70] sm:$0xff]
    %v735 = vld [vmem:[%s719 + $0x78] sm:$0xff]
    %736 = vmatprep.subr.mxu0 0.0
    %737 = vmatpush1.msra.mxu0 %v720
    %738 = vmatprep.subr.mxu0 0.0
    %739 = vmatpush1.msra.mxu0 %v721
    %740 = vmatprep.subr.mxu0 0.0
    %741 = vmatpush1.msra.mxu0 %v722
    %742 = vmatprep.subr.mxu0 0.0
    %743 = vmatpush1.msra.mxu0 %v723
    %744 = vmatprep.subr.mxu0 0.0
    %745 = vmatpush1.msra.mxu0 %v724
    %746 = vmatprep.subr.mxu0 0.0
    %747 = vmatpush1.msra.mxu0 %v725
    %748 = vmatprep.subr.mxu0 0.0
    %749 = vmatpush1.msra.mxu0 %v726
    %750 = vmatprep.subr.mxu0 0.0
    %751 = vmatpush1.msra.mxu0 %v727
    %752 = vmatprep.subr.mxu0 0.0
    %753 = vmatpush1.msra.mxu0 %v728
    %754 = vmatprep.subr.mxu0 0.0
    %755 = vmatpush1.msra.mxu0 %v729
    %756 = vmatprep.subr.mxu0 0.0
    %757 = vmatpush1.msra.mxu0 %v730
    %758 = vmatprep.subr.mxu0 0.0
    %759 = vmatpush1.msra.mxu0 %v731
    %760 = vmatprep.subr.mxu0 0.0
    %761 = vmatpush1.msra.mxu0 %v732
    %762 = vmatprep.subr.mxu0 0.0
    %763 = vmatpush1.msra.mxu0 %v733
    %764 = vmatprep.subr.mxu0 0.0
    %765 = vmatpush1.msra.mxu0 %v734
    %766 = vmatprep.subr.mxu0 0.0
    %767 = vmatpush1.msra.mxu0 %v735
    %768 = vmatprep.subr.mxu0 0.0
    %769 = vmatpush1.msra.mxu0 0.0
    %770 = vmatprep.subr.mxu0 0.0
    %771 = vmatpush1.msra.mxu0 0.0
    %772 = vmatprep.subr.mxu0 0.0
    %773 = vmatpush1.msra.mxu0 0.0
    %774 = vmatprep.subr.mxu0 0.0
    %775 = vmatpush1.msra.mxu0 0.0
    %776 = vmatprep.subr.mxu0 0.0
    %777 = vmatpush1.msra.mxu0 0.0
    %778 = vmatprep.subr.mxu0 0.0
    %779 = vmatpush1.msra.mxu0 0.0
    %780 = vmatprep.subr.mxu0 0.0
    %781 = vmatpush1.msra.mxu0 0.0
    %782 = vmatprep.subr.mxu0 0.0
    %783 = vmatpush1.msra.mxu0 0.0
    %784 = vmatprep.subr.mxu0 0.0
    %785 = vmatpush1.msra.mxu0 0.0
    %786 = vmatprep.subr.mxu0 0.0
    %787 = vmatpush1.msra.mxu0 0.0
    %788 = vmatprep.subr.mxu0 0.0
    %789 = vmatpush1.msra.mxu0 0.0
    %790 = vmatprep.subr.mxu0 0.0
    %791 = vmatpush1.msra.mxu0 0.0
    %792 = vmatprep.subr.mxu0 0.0
    %793 = vmatpush1.msra.mxu0 0.0
    %794 = vmatprep.subr.mxu0 0.0
    %795 = vmatpush1.msra.mxu0 0.0
    %796 = vmatprep.subr.mxu0 0.0
    %797 = vmatpush1.msra.mxu0 0.0
    %798 = vmatprep.subr.mxu0 0.0
    %799 = vmatpush1.msra.mxu0 0.0
    %800 = vmatprep.mubr.f32.mxu0 0.0
    %801 = vmatmul.mubr.f32.gmra.mrb[0].mxu0 %v630
    %v802 = vpop.f32.mrb[0].mxu0
    %v803 = vadd.f32 0.0, %v802
    %v804 = vpop.f32.mrb[0].mxu0
    %805 = vdwg.mxu0
    %v806 = vadd.f32 %v718, %v803
    %vm807 = vcmp.eq.s32.totalorder %v197, 1
    %v808 = vsel %vm807, %v627, %v607
    %v809 = vmul.f32 %v400, 2.0
    %v810 = vsub.f32 %v410, %v809
    %811 = vmin.xlane.f32.xlu0 %v810
    %v812 = vpop.xlane.xlu0 %811
    %vm813 = vcmp.eq.f32.partialorder %v810, %v812
    %v814 = vsel %vm813, %v197, 128
    %v815 = vand.u32 %v814, 65535
    %v816 = vshra.s32 %v814, 16
    %v817 = vcvt.s32.f32 %v815
    %v818 = vcvt.s32.f32 %v816
    %819 = vmin.xlane.f32.xlu0 %v818
    %v820 = vpop.xlane.xlu0 %819
    %vm821 = vcmp.eq.f32.partialorder %v818, %v820
    %v822 = vsel %vm821, %v817, inf
    %823 = vmin.xlane.f32.xlu0 %v822
    %v824 = vpop.xlane.xlu0 %823
    %v825 = vcvt.f32.s32 %v824
    %v826 = vcvt.f32.s32 %v820
    %v827 = vshll.u32 %v826, 16
    %v828 = vadd.s32 %v827, %v825
    %vm829 = vcmp.eq.s32.totalorder %v197, %v828
    %v830 = vsel %vm829, 1, 0
    %v831 = vcvt.s32.f32 %v830
    %s832 = scalar_lea.vmem [#allocation10], 256
    %v833 = vld [vmem:[%s832] sm:$0xff]
    %v834 = vld [vmem:[%s832 + $0x8] sm:$0xff]
    %v835 = vld [vmem:[%s832 + $0x10] sm:$0xff]
    %v836 = vld [vmem:[%s832 + $0x18] sm:$0xff]
    %v837 = vld [vmem:[%s832 + $0x20] sm:$0xff]
    %v838 = vld [vmem:[%s832 + $0x28] sm:$0xff]
    %v839 = vld [vmem:[%s832 + $0x30] sm:$0xff]
    %v840 = vld [vmem:[%s832 + $0x38] sm:$0xff]
    %v841 = vld [vmem:[%s832 + $0x40] sm:$0xff]
    %v842 = vld [vmem:[%s832 + $0x48] sm:$0xff]
    %v843 = vld [vmem:[%s832 + $0x50] sm:$0xff]
    %v844 = vld [vmem:[%s832 + $0x58] sm:$0xff]
    %v845 = vld [vmem:[%s832 + $0x60] sm:$0xff]
    %v846 = vld [vmem:[%s832 + $0x68] sm:$0xff]
    %v847 = vld [vmem:[%s832 + $0x70] sm:$0xff]
    %v848 = vld [vmem:[%s832 + $0x78] sm:$0xff]
    %849 = vmatprep.subr.mxu0 0.0
    %850 = vmatpush1.msra.mxu0 %v833
    %851 = vmatprep.subr.mxu0 0.0
    %852 = vmatpush1.msra.mxu0 %v834
    %853 = vmatprep.subr.mxu0 0.0
    %854 = vmatpush1.msra.mxu0 %v835
    %855 = vmatprep.subr.mxu0 0.0
    %856 = vmatpush1.msra.mxu0 %v836
    %857 = vmatprep.subr.mxu0 0.0
    %858 = vmatpush1.msra.mxu0 %v837
    %859 = vmatprep.subr.mxu0 0.0
    %860 = vmatpush1.msra.mxu0 %v838
    %861 = vmatprep.subr.mxu0 0.0
    %862 = vmatpush1.msra.mxu0 %v839
    %863 = vmatprep.subr.mxu0 0.0
    %864 = vmatpush1.msra.mxu0 %v840
    %865 = vmatprep.subr.mxu0 0.0
    %866 = vmatpush1.msra.mxu0 %v841
    %867 = vmatprep.subr.mxu0 0.0
    %868 = vmatpush1.msra.mxu0 %v842
    %869 = vmatprep.subr.mxu0 0.0
    %870 = vmatpush1.msra.mxu0 %v843
    %871 = vmatprep.subr.mxu0 0.0
    %872 = vmatpush1.msra.mxu0 %v844
    %873 = vmatprep.subr.mxu0 0.0
    %874 = vmatpush1.msra.mxu0 %v845
    %875 = vmatprep.subr.mxu0 0.0
    %876 = vmatpush1.msra.mxu0 %v846
    %877 = vmatprep.subr.mxu0 0.0
    %878 = vmatpush1.msra.mxu0 %v847
    %879 = vmatprep.subr.mxu0 0.0
    %880 = vmatpush1.msra.mxu0 %v848
    %881 = vmatprep.subr.mxu0 0.0
    %882 = vmatpush1.msra.mxu0 0.0
    %883 = vmatprep.subr.mxu0 0.0
    %884 = vmatpush1.msra.mxu0 0.0
    %885 = vmatprep.subr.mxu0 0.0
    %886 = vmatpush1.msra.mxu0 0.0
    %887 = vmatprep.subr.mxu0 0.0
    %888 = vmatpush1.msra.mxu0 0.0
    %889 = vmatprep.subr.mxu0 0.0
    %890 = vmatpush1.msra.mxu0 0.0
    %891 = vmatprep.subr.mxu0 0.0
    %892 = vmatpush1.msra.mxu0 0.0
    %893 = vmatprep.subr.mxu0 0.0
    %894 = vmatpush1.msra.mxu0 0.0
    %895 = vmatprep.subr.mxu0 0.0
    %896 = vmatpush1.msra.mxu0 0.0
    %897 = vmatprep.subr.mxu0 0.0
    %898 = vmatpush1.msra.mxu0 0.0
    %899 = vmatprep.subr.mxu0 0.0
    %900 = vmatpush1.msra.mxu0 0.0
    %901 = vmatprep.subr.mxu0 0.0
    %902 = vmatpush1.msra.mxu0 0.0
    %903 = vmatprep.subr.mxu0 0.0
    %904 = vmatpush1.msra.mxu0 0.0
    %905 = vmatprep.subr.mxu0 0.0
    %906 = vmatpush1.msra.mxu0 0.0
    %907 = vmatprep.subr.mxu0 0.0
    %908 = vmatpush1.msra.mxu0 0.0
    %909 = vmatprep.subr.mxu0 0.0
    %910 = vmatpush1.msra.mxu0 0.0
    %911 = vmatprep.subr.mxu0 0.0
    %912 = vmatpush1.msra.mxu0 0.0
    %913 = vmatprep.mubr.f32.mxu0 0.0
    %914 = vmatmul.mubr.f32.gmra.mrb[0].mxu0 %v831
    %v915 = vpop.f32.mrb[0].mxu0
    %v916 = vadd.f32 0.0, %v915
    %v917 = vpop.f32.mrb[0].mxu0
    %918 = vdwg.mxu0
    %v919 = vadd.f32 %v806, %v916
    %s920 = scalar_lea.vmem [#allocation11], 256
    %v921 = vld [vmem:[%s920] sm:$0xff]
    %v922 = vld [vmem:[%s920 + $0x8] sm:$0xff]
    %v923 = vld [vmem:[%s920 + $0x10] sm:$0xff]
    %v924 = vld [vmem:[%s920 + $0x18] sm:$0xff]
    %v925 = vld [vmem:[%s920 + $0x20] sm:$0xff]
    %v926 = vld [vmem:[%s920 + $0x28] sm:$0xff]
    %v927 = vld [vmem:[%s920 + $0x30] sm:$0xff]
    %v928 = vld [vmem:[%s920 + $0x38] sm:$0xff]
    %v929 = vld [vmem:[%s920 + $0x40] sm:$0xff]
    %v930 = vld [vmem:[%s920 + $0x48] sm:$0xff]
    %v931 = vld [vmem:[%s920 + $0x50] sm:$0xff]
    %v932 = vld [vmem:[%s920 + $0x58] sm:$0xff]
    %v933 = vld [vmem:[%s920 + $0x60] sm:$0xff]
    %v934 = vld [vmem:[%s920 + $0x68] sm:$0xff]
    %v935 = vld [vmem:[%s920 + $0x70] sm:$0xff]
    %v936 = vld [vmem:[%s920 + $0x78] sm:$0xff]
    %937 = vmatprep.subr.mxu0 0.0
    %938 = vmatpush1.msra.mxu0 %v921
    %939 = vmatprep.subr.mxu0 0.0
    %940 = vmatpush1.msra.mxu0 %v922
    %941 = vmatprep.subr.mxu0 0.0
    %942 = vmatpush1.msra.mxu0 %v923
    %943 = vmatprep.subr.mxu0 0.0
    %944 = vmatpush1.msra.mxu0 %v924
    %945 = vmatprep.subr.mxu0 0.0
    %946 = vmatpush1.msra.mxu0 %v925
    %947 = vmatprep.subr.mxu0 0.0
    %948 = vmatpush1.msra.mxu0 %v926
    %949 = vmatprep.subr.mxu0 0.0
    %950 = vmatpush1.msra.mxu0 %v927
    %951 = vmatprep.subr.mxu0 0.0
    %952 = vmatpush1.msra.mxu0 %v928
    %953 = vmatprep.subr.mxu0 0.0
    %954 = vmatpush1.msra.mxu0 %v929
    %955 = vmatprep.subr.mxu0 0.0
    %956 = vmatpush1.msra.mxu0 %v930
    %957 = vmatprep.subr.mxu0 0.0
    %958 = vmatpush1.msra.mxu0 %v931
    %959 = vmatprep.subr.mxu0 0.0
    %960 = vmatpush1.msra.mxu0 %v932
    %961 = vmatprep.subr.mxu0 0.0
    %962 = vmatpush1.msra.mxu0 %v933
    %963 = vmatprep.subr.mxu0 0.0
    %964 = vmatpush1.msra.mxu0 %v934
    %965 = vmatprep.subr.mxu0 0.0
    %966 = vmatpush1.msra.mxu0 %v935
    %967 = vmatprep.subr.mxu0 0.0
    %968 = vmatpush1.msra.mxu0 %v936
    %969 = vmatprep.subr.mxu0 0.0
    %970 = vmatpush1.msra.mxu0 0.0
    %971 = vmatprep.subr.mxu0 0.0
    %972 = vmatpush1.msra.mxu0 0.0
    %973 = vmatprep.subr.mxu0 0.0
    %974 = vmatpush1.msra.mxu0 0.0
    %975 = vmatprep.subr.mxu0 0.0
    %976 = vmatpush1.msra.mxu0 0.0
    %977 = vmatprep.subr.mxu0 0.0
    %978 = vmatpush1.msra.mxu0 0.0
    %979 = vmatprep.subr.mxu0 0.0
    %980 = vmatpush1.msra.mxu0 0.0
    %981 = vmatprep.subr.mxu0 0.0
    %982 = vmatpush1.msra.mxu0 0.0
    %983 = vmatprep.subr.mxu0 0.0
    %984 = vmatpush1.msra.mxu0 0.0
    %985 = vmatprep.subr.mxu0 0.0
    %986 = vmatpush1.msra.mxu0 0.0
    %987 = vmatprep.subr.mxu0 0.0
    %988 = vmatpush1.msra.mxu0 0.0
    %989 = vmatprep.subr.mxu0 0.0
    %990 = vmatpush1.msra.mxu0 0.0
    %991 = vmatprep.subr.mxu0 0.0
    %992 = vmatpush1.msra.mxu0 0.0
    %993 = vmatprep.subr.mxu0 0.0
    %994 = vmatpush1.msra.mxu0 0.0
    %995 = vmatprep.subr.mxu0 0.0
    %996 = vmatpush1.msra.mxu0 0.0
    %997 = vmatprep.subr.mxu0 0.0
    %998 = vmatpush1.msra.mxu0 0.0
    %999 = vmatprep.subr.mxu0 0.0
    %1000 = vmatpush1.msra.mxu0 0.0
    %1001 = vmatprep.mubr.f32.mxu0 0.0
    %1002 = vmatmul.mubr.f32.gmra.mrb[0].mxu0 %v831
    %v1003 = vpop.f32.mrb[0].mxu0
    %v1004 = vadd.f32 0.0, %v1003
    %v1005 = vpop.f32.mrb[0].mxu0
    %1006 = vdwg.mxu0
    %v1007 = vadd.f32 %v919, %v1004
    %vm1008 = vcmp.eq.s32.totalorder %v197, 2
    %v1009 = vsel %vm1008, %v828, %v808
    %v1010 = vmul.f32 %v402, 2.0
    %v1011 = vsub.f32 %v410, %v1010
    %1012 = vmin.xlane.f32.xlu0 %v1011
    %v1013 = vpop.xlane.xlu0 %1012
    %vm1014 = vcmp.eq.f32.partialorder %v1011, %v1013
    %v1015 = vsel %vm1014, %v197, 128
    %v1016 = vand.u32 %v1015, 65535
    %v1017 = vshra.s32 %v1015, 16
    %v1018 = vcvt.s32.f32 %v1016
    %v1019 = vcvt.s32.f32 %v1017
    %1020 = vmin.xlane.f32.xlu0 %v1019
    %v1021 = vpop.xlane.xlu0 %1020
    %vm1022 = vcmp.eq.f32.partialorder %v1019, %v1021
    %v1023 = vsel %vm1022, %v1018, inf
    %1024 = vmin.xlane.f32.xlu0 %v1023
    %v1025 = vpop.xlane.xlu0 %1024
    %v1026 = vcvt.f32.s32 %v1025
    %v1027 = vcvt.f32.s32 %v1021
    %v1028 = vshll.u32 %v1027, 16
    %v1029 = vadd.s32 %v1028, %v1026
    %vm1030 = vcmp.eq.s32.totalorder %v197, %v1029
    %v1031 = vsel %vm1030, 1, 0
    %v1032 = vcvt.s32.f32 %v1031
    %s1033 = scalar_lea.vmem [#allocation10], 384
    %v1034 = vld [vmem:[%s1033] sm:$0xff]
    %v1035 = vld [vmem:[%s1033 + $0x8] sm:$0xff]
    %v1036 = vld [vmem:[%s1033 + $0x10] sm:$0xff]
    %v1037 = vld [vmem:[%s1033 + $0x18] sm:$0xff]
    %v1038 = vld [vmem:[%s1033 + $0x20] sm:$0xff]
    %v1039 = vld [vmem:[%s1033 + $0x28] sm:$0xff]
    %v1040 = vld [vmem:[%s1033 + $0x30] sm:$0xff]
    %v1041 = vld [vmem:[%s1033 + $0x38] sm:$0xff]
    %v1042 = vld [vmem:[%s1033 + $0x40] sm:$0xff]
    %v1043 = vld [vmem:[%s1033 + $0x48] sm:$0xff]
    %v1044 = vld [vmem:[%s1033 + $0x50] sm:$0xff]
    %v1045 = vld [vmem:[%s1033 + $0x58] sm:$0xff]
    %v1046 = vld [vmem:[%s1033 + $0x60] sm:$0xff]
    %v1047 = vld [vmem:[%s1033 + $0x68] sm:$0xff]
    %v1048 = vld [vmem:[%s1033 + $0x70] sm:$0xff]
    %v1049 = vld [vmem:[%s1033 + $0x78] sm:$0xff]
    %1050 = vmatprep.subr.mxu0 0.0
    %1051 = vmatpush1.msra.mxu0 %v1034
    %1052 = vmatprep.subr.mxu0 0.0
    %1053 = vmatpush1.msra.mxu0 %v1035
    %1054 = vmatprep.subr.mxu0 0.0
    %1055 = vmatpush1.msra.mxu0 %v1036
    %1056 = vmatprep.subr.mxu0 0.0
    %1057 = vmatpush1.msra.mxu0 %v1037
    %1058 = vmatprep.subr.mxu0 0.0
    %1059 = vmatpush1.msra.mxu0 %v1038
    %1060 = vmatprep.subr.mxu0 0.0
    %1061 = vmatpush1.msra.mxu0 %v1039
    %1062 = vmatprep.subr.mxu0 0.0
    %1063 = vmatpush1.msra.mxu0 %v1040
    %1064 = vmatprep.subr.mxu0 0.0
    %1065 = vmatpush1.msra.mxu0 %v1041
    %1066 = vmatprep.subr.mxu0 0.0
    %1067 = vmatpush1.msra.mxu0 %v1042
    %1068 = vmatprep.subr.mxu0 0.0
    %1069 = vmatpush1.msra.mxu0 %v1043
    %1070 = vmatprep.subr.mxu0 0.0
    %1071 = vmatpush1.msra.mxu0 %v1044
    %1072 = vmatprep.subr.mxu0 0.0
    %1073 = vmatpush1.msra.mxu0 %v1045
    %1074 = vmatprep.subr.mxu0 0.0
    %1075 = vmatpush1.msra.mxu0 %v1046
    %1076 = vmatprep.subr.mxu0 0.0
    %1077 = vmatpush1.msra.mxu0 %v1047
    %1078 = vmatprep.subr.mxu0 0.0
    %1079 = vmatpush1.msra.mxu0 %v1048
    %1080 = vmatprep.subr.mxu0 0.0
    %1081 = vmatpush1.msra.mxu0 %v1049
    %1082 = vmatprep.subr.mxu0 0.0
    %1083 = vmatpush1.msra.mxu0 0.0
    %1084 = vmatprep.subr.mxu0 0.0
    %1085 = vmatpush1.msra.mxu0 0.0
    %1086 = vmatprep.subr.mxu0 0.0
    %1087 = vmatpush1.msra.mxu0 0.0
    %1088 = vmatprep.subr.mxu0 0.0
    %1089 = vmatpush1.msra.mxu0 0.0
    %1090 = vmatprep.subr.mxu0 0.0
    %1091 = vmatpush1.msra.mxu0 0.0
    %1092 = vmatprep.subr.mxu0 0.0
    %1093 = vmatpush1.msra.mxu0 0.0
    %1094 = vmatprep.subr.mxu0 0.0
    %1095 = vmatpush1.msra.mxu0 0.0
    %1096 = vmatprep.subr.mxu0 0.0
    %1097 = vmatpush1.msra.mxu0 0.0
    %1098 = vmatprep.subr.mxu0 0.0
    %1099 = vmatpush1.msra.mxu0 0.0
    %1100 = vmatprep.subr.mxu0 0.0
    %1101 = vmatpush1.msra.mxu0 0.0
    %1102 = vmatprep.subr.mxu0 0.0
    %1103 = vmatpush1.msra.mxu0 0.0
    %1104 = vmatprep.subr.mxu0 0.0
    %1105 = vmatpush1.msra.mxu0 0.0
    %1106 = vmatprep.subr.mxu0 0.0
    %1107 = vmatpush1.msra.mxu0 0.0
    %1108 = vmatprep.subr.mxu0 0.0
    %1109 = vmatpush1.msra.mxu0 0.0
    %1110 = vmatprep.subr.mxu0 0.0
    %1111 = vmatpush1.msra.mxu0 0.0
    %1112 = vmatprep.subr.mxu0 0.0
    %1113 = vmatpush1.msra.mxu0 0.0
    %1114 = vmatprep.mubr.f32.mxu0 0.0
    %1115 = vmatmul.mubr.f32.gmra.mrb[0].mxu0 %v1032
    %v1116 = vpop.f32.mrb[0].mxu0
    %v1117 = vadd.f32 0.0, %v1116
    %v1118 = vpop.f32.mrb[0].mxu0
    %1119 = vdwg.mxu0
    %v1120 = vadd.f32 %v1007, %v1117
    %s1121 = scalar_lea.vmem [#allocation11], 384
    %v1122 = vld [vmem:[%s1121] sm:$0xff]
    %v1123 = vld [vmem:[%s1121 + $0x8] sm:$0xff]
    %v1124 = vld [vmem:[%s1121 + $0x10] sm:$0xff]
    %v1125 = vld [vmem:[%s1121 + $0x18] sm:$0xff]
    %v1126 = vld [vmem:[%s1121 + $0x20] sm:$0xff]
    %v1127 = vld [vmem:[%s1121 + $0x28] sm:$0xff]
    %v1128 = vld [vmem:[%s1121 + $0x30] sm:$0xff]
    %v1129 = vld [vmem:[%s1121 + $0x38] sm:$0xff]
    %v1130 = vld [vmem:[%s1121 + $0x40] sm:$0xff]
    %v1131 = vld [vmem:[%s1121 + $0x48] sm:$0xff]
    %v1132 = vld [vmem:[%s1121 + $0x50] sm:$0xff]
    %v1133 = vld [vmem:[%s1121 + $0x58] sm:$0xff]
    %v1134 = vld [vmem:[%s1121 + $0x60] sm:$0xff]
    %v1135 = vld [vmem:[%s1121 + $0x68] sm:$0xff]
    %v1136 = vld [vmem:[%s1121 + $0x70] sm:$0xff]
    %v1137 = vld [vmem:[%s1121 + $0x78] sm:$0xff]
    %1138 = vmatprep.subr.mxu0 0.0
    %1139 = vmatpush1.msra.mxu0 %v1122
    %1140 = vmatprep.subr.mxu0 0.0
    %1141 = vmatpush1.msra.mxu0 %v1123
    %1142 = vmatprep.subr.mxu0 0.0
    %1143 = vmatpush1.msra.mxu0 %v1124
    %1144 = vmatprep.subr.mxu0 0.0
    %1145 = vmatpush1.msra.mxu0 %v1125
    %1146 = vmatprep.subr.mxu0 0.0
    %1147 = vmatpush1.msra.mxu0 %v1126
    %1148 = vmatprep.subr.mxu0 0.0
    %1149 = vmatpush1.msra.mxu0 %v1127
    %1150 = vmatprep.subr.mxu0 0.0
    %1151 = vmatpush1.msra.mxu0 %v1128
    %1152 = vmatprep.subr.mxu0 0.0
    %1153 = vmatpush1.msra.mxu0 %v1129
    %1154 = vmatprep.subr.mxu0 0.0
    %1155 = vmatpush1.msra.mxu0 %v1130
    %1156 = vmatprep.subr.mxu0 0.0
    %1157 = vmatpush1.msra.mxu0 %v1131
    %1158 = vmatprep.subr.mxu0 0.0
    %1159 = vmatpush1.msra.mxu0 %v1132
    %1160 = vmatprep.subr.mxu0 0.0
    %1161 = vmatpush1.msra.mxu0 %v1133
    %1162 = vmatprep.subr.mxu0 0.0
    %1163 = vmatpush1.msra.mxu0 %v1134
    %1164 = vmatprep.subr.mxu0 0.0
    %1165 = vmatpush1.msra.mxu0 %v1135
    %1166 = vmatprep.subr.mxu0 0.0
    %1167 = vmatpush1.msra.mxu0 %v1136
    %1168 = vmatprep.subr.mxu0 0.0
    %1169 = vmatpush1.msra.mxu0 %v1137
    %1170 = vmatprep.subr.mxu0 0.0
    %1171 = vmatpush1.msra.mxu0 0.0
    %1172 = vmatprep.subr.mxu0 0.0
    %1173 = vmatpush1.msra.mxu0 0.0
    %1174 = vmatprep.subr.mxu0 0.0
    %1175 = vmatpush1.msra.mxu0 0.0
    %1176 = vmatprep.subr.mxu0 0.0
    %1177 = vmatpush1.msra.mxu0 0.0
    %1178 = vmatprep.subr.mxu0 0.0
    %1179 = vmatpush1.msra.mxu0 0.0
    %1180 = vmatprep.subr.mxu0 0.0
    %1181 = vmatpush1.msra.mxu0 0.0
    %1182 = vmatprep.subr.mxu0 0.0
    %1183 = vmatpush1.msra.mxu0 0.0
    %1184 = vmatprep.subr.mxu0 0.0
    %1185 = vmatpush1.msra.mxu0 0.0
    %1186 = vmatprep.subr.mxu0 0.0
    %1187 = vmatpush1.msra.mxu0 0.0
    %1188 = vmatprep.subr.mxu0 0.0
    %1189 = vmatpush1.msra.mxu0 0.0
    %1190 = vmatprep.subr.mxu0 0.0
    %1191 = vmatpush1.msra.mxu0 0.0
    %1192 = vmatprep.subr.mxu0 0.0
    %1193 = vmatpush1.msra.mxu0 0.0
    %1194 = vmatprep.subr.mxu0 0.0
    %1195 = vmatpush1.msra.mxu0 0.0
    %1196 = vmatprep.subr.mxu0 0.0
    %1197 = vmatpush1.msra.mxu0 0.0
    %1198 = vmatprep.subr.mxu0 0.0
    %1199 = vmatpush1.msra.mxu0 0.0
    %1200 = vmatprep.subr.mxu0 0.0
    %1201 = vmatpush1.msra.mxu0 0.0
    %1202 = vmatprep.mubr.f32.mxu0 0.0
    %1203 = vmatmul.mubr.f32.gmra.mrb[0].mxu0 %v1032
    %v1204 = vpop.f32.mrb[0].mxu0
    %v1205 = vadd.f32 0.0, %v1204
    %v1206 = vpop.f32.mrb[0].mxu0
    %1207 = vdwg.mxu0
    %v1208 = vadd.f32 %v1120, %v1205
    %vm1209 = vcmp.eq.s32.totalorder %v197, 3
    %v1210 = vsel %vm1209, %v1029, %v1009
    %v1211 = vadd.f32 %v1208, 0.0
    %v1212 = vsub.f32 %v193, %v1208
    %vm1213 = vcmask 31744
    %1214 = vst.msk [vmem:[%s8] sm:$0xff] %vm1213, %v1210
    %s1215 = scalar_lea.vmem [#allocation8], 512
    %v1216 = vld [vmem:[%s1215] sm:$0xff]
    %v1217 = vld [vmem:[%s1215 + $0x8] sm:$0xff]
    %v1218 = vld [vmem:[%s1215 + $0x10] sm:$0xff]
    %v1219 = vld [vmem:[%s1215 + $0x18] sm:$0xff]
    %v1220 = vld [vmem:[%s1215 + $0x20] sm:$0xff]
    %v1221 = vld [vmem:[%s1215 + $0x28] sm:$0xff]
    %v1222 = vld [vmem:[%s1215 + $0x30] sm:$0xff]
    %v1223 = vld [vmem:[%s1215 + $0x38] sm:$0xff]
    %v1224 = vld [vmem:[%s1215 + $0x40] sm:$0xff]
    %v1225 = vld [vmem:[%s1215 + $0x48] sm:$0xff]
    %v1226 = vld [vmem:[%s1215 + $0x50] sm:$0xff]
    %v1227 = vld [vmem:[%s1215 + $0x58] sm:$0xff]
    %v1228 = vld [vmem:[%s1215 + $0x60] sm:$0xff]
    %v1229 = vld [vmem:[%s1215 + $0x68] sm:$0xff]
    %v1230 = vld [vmem:[%s1215 + $0x70] sm:$0xff]
    %v1231 = vld [vmem:[%s1215 + $0x78] sm:$0xff]
    %v1232 = vld [vmem:[%s1215 + $0x80] sm:$0xff]
    %v1233 = vld [vmem:[%s1215 + $0x88] sm:$0xff]
    %v1234 = vld [vmem:[%s1215 + $0x90] sm:$0xff]
    %v1235 = vld [vmem:[%s1215 + $0x98] sm:$0xff]
    %v1236 = vld [vmem:[%s1215 + $0xa0] sm:$0xff]
    %v1237 = vld [vmem:[%s1215 + $0xa8] sm:$0xff]
    %v1238 = vld [vmem:[%s1215 + $0xb0] sm:$0xff]
    %v1239 = vld [vmem:[%s1215 + $0xb8] sm:$0xff]
    %v1240 = vld [vmem:[%s1215 + $0xc0] sm:$0xff]
    %v1241 = vld [vmem:[%s1215 + $0xc8] sm:$0xff]
    %v1242 = vld [vmem:[%s1215 + $0xd0] sm:$0xff]
    %v1243 = vld [vmem:[%s1215 + $0xd8] sm:$0xff]
    %v1244 = vld [vmem:[%s1215 + $0xe0] sm:$0xff]
    %v1245 = vld [vmem:[%s1215 + $0xe8] sm:$0xff]
    %v1246 = vld [vmem:[%s1215 + $0xf0] sm:$0xff]
    %v1247 = vld [vmem:[%s1215 + $0xf8] sm:$0xff]
    %v1248 = vld [vmem:[%s1215 + $0x100] sm:$0xff]
    %v1249 = vld [vmem:[%s1215 + $0x108] sm:$0xff]
    %v1250 = vld [vmem:[%s1215 + $0x110] sm:$0xff]
    %v1251 = vld [vmem:[%s1215 + $0x118] sm:$0xff]
    %v1252 = vld [vmem:[%s1215 + $0x120] sm:$0xff]
    %v1253 = vld [vmem:[%s1215 + $0x128] sm:$0xff]
    %v1254 = vld [vmem:[%s1215 + $0x130] sm:$0xff]
    %v1255 = vld [vmem:[%s1215 + $0x138] sm:$0xff]
    %v1256 = vld [vmem:[%s1215 + $0x140] sm:$0xff]
    %v1257 = vld [vmem:[%s1215 + $0x148] sm:$0xff]
    %v1258 = vld [vmem:[%s1215 + $0x150] sm:$0xff]
    %v1259 = vld [vmem:[%s1215 + $0x158] sm:$0xff]
    %v1260 = vld [vmem:[%s1215 + $0x160] sm:$0xff]
    %v1261 = vld [vmem:[%s1215 + $0x168] sm:$0xff]
    %v1262 = vld [vmem:[%s1215 + $0x170] sm:$0xff]
    %v1263 = vld [vmem:[%s1215 + $0x178] sm:$0xff]
    %v1264 = vld [vmem:[%s1215 + $0x180] sm:$0xff]
    %v1265 = vld [vmem:[%s1215 + $0x188] sm:$0xff]
    %v1266 = vld [vmem:[%s1215 + $0x190] sm:$0xff]
    %v1267 = vld [vmem:[%s1215 + $0x198] sm:$0xff]
    %v1268 = vld [vmem:[%s1215 + $0x1a0] sm:$0xff]
    %v1269 = vld [vmem:[%s1215 + $0x1a8] sm:$0xff]
    %v1270 = vld [vmem:[%s1215 + $0x1b0] sm:$0xff]
    %v1271 = vld [vmem:[%s1215 + $0x1b8] sm:$0xff]
    %v1272 = vld [vmem:[%s1215 + $0x1c0] sm:$0xff]
    %v1273 = vld [vmem:[%s1215 + $0x1c8] sm:$0xff]
    %v1274 = vld [vmem:[%s1215 + $0x1d0] sm:$0xff]
    %v1275 = vld [vmem:[%s1215 + $0x1d8] sm:$0xff]
    %v1276 = vld [vmem:[%s1215 + $0x1e0] sm:$0xff]
    %v1277 = vld [vmem:[%s1215 + $0x1e8] sm:$0xff]
    %v1278 = vld [vmem:[%s1215 + $0x1f0] sm:$0xff]
    %v1279 = vld [vmem:[%s1215 + $0x1f8] sm:$0xff]
    %1280 = vmatprep.subr.mxu0 %v1217
    %1281 = vmatpush1.msra.mxu0 %v1216
    %1282 = vmatprep.subr.mxu0 %v1221
    %1283 = vmatpush1.msra.mxu0 %v1220
    %1284 = vmatprep.subr.mxu0 %v1225
    %1285 = vmatpush1.msra.mxu0 %v1224
    %1286 = vmatprep.subr.mxu0 %v1229
    %1287 = vmatpush1.msra.mxu0 %v1228
    %1288 = vmatprep.subr.mxu0 %v1233
    %1289 = vmatpush1.msra.mxu0 %v1232
    %1290 = vmatprep.subr.mxu0 %v1237
    %1291 = vmatpush1.msra.mxu0 %v1236
    %1292 = vmatprep.subr.mxu0 %v1241
    %1293 = vmatpush1.msra.mxu0 %v1240
    %1294 = vmatprep.subr.mxu0 %v1245
    %1295 = vmatpush1.msra.mxu0 %v1244
    %1296 = vmatprep.subr.mxu0 %v1249
    %1297 = vmatpush1.msra.mxu0 %v1248
    %1298 = vmatprep.subr.mxu0 %v1253
    %1299 = vmatpush1.msra.mxu0 %v1252
    %1300 = vmatprep.subr.mxu0 %v1257
    %1301 = vmatpush1.msra.mxu0 %v1256
    %1302 = vmatprep.subr.mxu0 %v1261
    %1303 = vmatpush1.msra.mxu0 %v1260
    %1304 = vmatprep.subr.mxu0 %v1265
    %1305 = vmatpush1.msra.mxu0 %v1264
    %1306 = vmatprep.subr.mxu0 %v1269
    %1307 = vmatpush1.msra.mxu0 %v1268
    %1308 = vmatprep.subr.mxu0 %v1273
    %1309 = vmatpush1.msra.mxu0 %v1272
    %1310 = vmatprep.subr.mxu0 %v1277
    %1311 = vmatpush1.msra.mxu0 %v1276
    %1312 = vmatprep.subr.mxu0 0.0
    %1313 = vmatpush1.msra.mxu0 0.0
    %1314 = vmatprep.subr.mxu0 0.0
    %1315 = vmatpush1.msra.mxu0 0.0
    %1316 = vmatprep.subr.mxu0 0.0
    %1317 = vmatpush1.msra.mxu0 0.0
    %1318 = vmatprep.subr.mxu0 0.0
    %1319 = vmatpush1.msra.mxu0 0.0
    %1320 = vmatprep.subr.mxu0 0.0
    %1321 = vmatpush1.msra.mxu0 0.0
    %1322 = vmatprep.subr.mxu0 0.0
    %1323 = vmatpush1.msra.mxu0 0.0
    %1324 = vmatprep.subr.mxu0 0.0
    %1325 = vmatpush1.msra.mxu0 0.0
    %1326 = vmatprep.subr.mxu0 0.0
    %1327 = vmatpush1.msra.mxu0 0.0
    %1328 = vmatprep.subr.mxu0 0.0
    %1329 = vmatpush1.msra.mxu0 0.0
    %1330 = vmatprep.subr.mxu0 0.0
    %1331 = vmatpush1.msra.mxu0 0.0
    %1332 = vmatprep.subr.mxu0 0.0
    %1333 = vmatpush1.msra.mxu0 0.0
    %1334 = vmatprep.subr.mxu0 0.0
    %1335 = vmatpush1.msra.mxu0 0.0
    %1336 = vmatprep.subr.mxu0 0.0
    %1337 = vmatpush1.msra.mxu0 0.0
    %1338 = vmatprep.subr.mxu0 0.0
    %1339 = vmatpush1.msra.mxu0 0.0
    %1340 = vmatprep.subr.mxu0 0.0
    %1341 = vmatpush1.msra.mxu0 0.0
    %1342 = vmatprep.subr.mxu0 0.0
    %1343 = vmatpush1.msra.mxu0 0.0
    %1344 = vmatprep.mubr.f32.mxu0 0.0
    %1345 = vmatmul.mubr.f32.gmra.mrb[0].mxu0 %v1212
    %v1346 = vpop.f32.mrb[0].mxu0
    %v1347 = vadd.f32 0.0, %v1346
    %v1348 = vpop.f32.mrb[0].mxu0
    %v1349 = vadd.f32 0.0, %v1348
    %1350 = vdwg.mxu0
    %1351 = vmatprep.subr.mxu0 %v1219
    %1352 = vmatpush1.msra.mxu0 %v1218
    %1353 = vmatprep.subr.mxu0 %v1223
    %1354 = vmatpush1.msra.mxu0 %v1222
    %1355 = vmatprep.subr.mxu0 %v1227
    %1356 = vmatpush1.msra.mxu0 %v1226
    %1357 = vmatprep.subr.mxu0 %v1231
    %1358 = vmatpush1.msra.mxu0 %v1230
    %1359 = vmatprep.subr.mxu0 %v1235
    %1360 = vmatpush1.msra.mxu0 %v1234
    %1361 = vmatprep.subr.mxu0 %v1239
    %1362 = vmatpush1.msra.mxu0 %v1238
    %1363 = vmatprep.subr.mxu0 %v1243
    %1364 = vmatpush1.msra.mxu0 %v1242
    %1365 = vmatprep.subr.mxu0 %v1247
    %1366 = vmatpush1.msra.mxu0 %v1246
    %1367 = vmatprep.subr.mxu0 %v1251
    %1368 = vmatpush1.msra.mxu0 %v1250
    %1369 = vmatprep.subr.mxu0 %v1255
    %1370 = vmatpush1.msra.mxu0 %v1254
    %1371 = vmatprep.subr.mxu0 %v1259
    %1372 = vmatpush1.msra.mxu0 %v1258
    %1373 = vmatprep.subr.mxu0 %v1263
    %1374 = vmatpush1.msra.mxu0 %v1262
    %1375 = vmatprep.subr.mxu0 %v1267
    %1376 = vmatpush1.msra.mxu0 %v1266
    %1377 = vmatprep.subr.mxu0 %v1271
    %1378 = vmatpush1.msra.mxu0 %v1270
    %1379 = vmatprep.subr.mxu0 %v1275
    %1380 = vmatpush1.msra.mxu0 %v1274
    %1381 = vmatprep.subr.mxu0 %v1279
    %1382 = vmatpush1.msra.mxu0 %v1278
    %1383 = vmatprep.subr.mxu0 0.0
    %1384 = vmatpush1.msra.mxu0 0.0
    %1385 = vmatprep.subr.mxu0 0.0
    %1386 = vmatpush1.msra.mxu0 0.0
    %1387 = vmatprep.subr.mxu0 0.0
    %1388 = vmatpush1.msra.mxu0 0.0
    %1389 = vmatprep.subr.mxu0 0.0
    %1390 = vmatpush1.msra.mxu0 0.0
    %1391 = vmatprep.subr.mxu0 0.0
    %1392 = vmatpush1.msra.mxu0 0.0
    %1393 = vmatprep.subr.mxu0 0.0
    %1394 = vmatpush1.msra.mxu0 0.0
    %1395 = vmatprep.subr.mxu0 0.0
    %1396 = vmatpush1.msra.mxu0 0.0
    %1397 = vmatprep.subr.mxu0 0.0
    %1398 = vmatpush1.msra.mxu0 0.0
    %1399 = vmatprep.subr.mxu0 0.0
    %1400 = vmatpush1.msra.mxu0 0.0
    %1401 = vmatprep.subr.mxu0 0.0
    %1402 = vmatpush1.msra.mxu0 0.0
    %1403 = vmatprep.subr.mxu0 0.0
    %1404 = vmatpush1.msra.mxu0 0.0
    %1405 = vmatprep.subr.mxu0 0.0
    %1406 = vmatpush1.msra.mxu0 0.0
    %1407 = vmatprep.subr.mxu0 0.0
    %1408 = vmatpush1.msra.mxu0 0.0
    %1409 = vmatprep.subr.mxu0 0.0
    %1410 = vmatpush1.msra.mxu0 0.0
    %1411 = vmatprep.subr.mxu0 0.0
    %1412 = vmatpush1.msra.mxu0 0.0
    %1413 = vmatprep.subr.mxu0 0.0
    %1414 = vmatpush1.msra.mxu0 0.0
    %1415 = vmatprep.mubr.f32.mxu0 0.0
    %1416 = vmatmul.mubr.f32.gmra.mrb[0].mxu0 %v1212
    %v1417 = vpop.f32.mrb[0].mxu0
    %v1418 = vadd.f32 0.0, %v1417
    %v1419 = vpop.f32.mrb[0].mxu0
    %v1420 = vadd.f32 0.0, %v1419
    %1421 = vdwg.mxu0
    %s1422 = scalar_lea.vmem %s6, 1
    %v1423 = vld [vmem:[%s1422] sm:$0x1]
    %v1424 = vmul.f32 %v1347, 2.0
    %v1426 = vlaneseq
    %v1427 = vshrl.u32 %v1426, 7
    %v1428 = vsub.s32 0, %v1427
    %v1429 = vrot.slane %v1423, %v1428
    %v1431 = vsub.f32 %v1429, %v1424
    %1432 = vmin.xlane.f32.xlu0 %v1431
    %v1433 = vpop.xlane.xlu0 %1432
    %vm1434 = vcmp.eq.f32.partialorder %v1431, %v1433
    %v1435 = vsel %vm1434, %v197, 128
    %v1436 = vand.u32 %v1435, 65535
    %v1437 = vshra.s32 %v1435, 16
    %v1438 = vcvt.s32.f32 %v1436
    %v1439 = vcvt.s32.f32 %v1437
    %1440 = vmin.xlane.f32.xlu0 %v1439
    %v1441 = vpop.xlane.xlu0 %1440
    %vm1442 = vcmp.eq.f32.partialorder %v1439, %v1441
    %v1443 = vsel %vm1442, %v1438, inf
    %1444 = vmin.xlane.f32.xlu0 %v1443
    %v1445 = vpop.xlane.xlu0 %1444
    %v1446 = vcvt.f32.s32 %v1445
    %v1447 = vcvt.f32.s32 %v1441
    %v1448 = vshll.u32 %v1447, 16
    %v1449 = vadd.s32 %v1448, %v1446
    %vm1450 = vcmp.eq.s32.totalorder %v197, %v1449
    %v1451 = vsel %vm1450, 1, 0
    %v1452 = vcvt.s32.f32 %v1451
    %s1453 = scalar_lea.vmem [#allocation10], 512
    %v1454 = vld [vmem:[%s1453] sm:$0xff]
    %v1455 = vld [vmem:[%s1453 + $0x8] sm:$0xff]
    %v1456 = vld [vmem:[%s1453 + $0x10] sm:$0xff]
    %v1457 = vld [vmem:[%s1453 + $0x18] sm:$0xff]
    %v1458 = vld [vmem:[%s1453 + $0x20] sm:$0xff]
    %v1459 = vld [vmem:[%s1453 + $0x28] sm:$0xff]
    %v1460 = vld [vmem:[%s1453 + $0x30] sm:$0xff]
    %v1461 = vld [vmem:[%s1453 + $0x38] sm:$0xff]
    %v1462 = vld [vmem:[%s1453 + $0x40] sm:$0xff]
    %v1463 = vld [vmem:[%s1453 + $0x48] sm:$0xff]
    %v1464 = vld [vmem:[%s1453 + $0x50] sm:$0xff]
    %v1465 = vld [vmem:[%s1453 + $0x58] sm:$0xff]
    %v1466 = vld [vmem:[%s1453 + $0x60] sm:$0xff]
    %v1467 = vld [vmem:[%s1453 + $0x68] sm:$0xff]
    %v1468 = vld [vmem:[%s1453 + $0x70] sm:$0xff]
    %v1469 = vld [vmem:[%s1453 + $0x78] sm:$0xff]
    %s1470 = scalar_lea.vmem [#allocation11], 512
    %v1471 = vld [vmem:[%s1470] sm:$0xff]
    %v1472 = vld [vmem:[%s1470 + $0x8] sm:$0xff]
    %v1473 = vld [vmem:[%s1470 + $0x10] sm:$0xff]
    %v1474 = vld [vmem:[%s1470 + $0x18] sm:$0xff]
    %v1475 = vld [vmem:[%s1470 + $0x20] sm:$0xff]
    %v1476 = vld [vmem:[%s1470 + $0x28] sm:$0xff]
    %v1477 = vld [vmem:[%s1470 + $0x30] sm:$0xff]
    %v1478 = vld [vmem:[%s1470 + $0x38] sm:$0xff]
    %v1479 = vld [vmem:[%s1470 + $0x40] sm:$0xff]
    %v1480 = vld [vmem:[%s1470 + $0x48] sm:$0xff]
    %v1481 = vld [vmem:[%s1470 + $0x50] sm:$0xff]
    %v1482 = vld [vmem:[%s1470 + $0x58] sm:$0xff]
    %v1483 = vld [vmem:[%s1470 + $0x60] sm:$0xff]
    %v1484 = vld [vmem:[%s1470 + $0x68] sm:$0xff]
    %v1485 = vld [vmem:[%s1470 + $0x70] sm:$0xff]
    %v1486 = vld [vmem:[%s1470 + $0x78] sm:$0xff]
    %1487 = vmatprep.subr.mxu0 0.0
    %1488 = vmatpush1.msra.mxu0 %v1471
    %1489 = vmatprep.subr.mxu0 0.0
    %1490 = vmatpush1.msra.mxu0 %v1472
    %1491 = vmatprep.subr.mxu0 0.0
    %1492 = vmatpush1.msra.mxu0 %v1473
    %1493 = vmatprep.subr.mxu0 0.0
    %1494 = vmatpush1.msra.mxu0 %v1474
    %1495 = vmatprep.subr.mxu0 0.0
    %1496 = vmatpush1.msra.mxu0 %v1475
    %1497 = vmatprep.subr.mxu0 0.0
    %1498 = vmatpush1.msra.mxu0 %v1476
    %1499 = vmatprep.subr.mxu0 0.0
    %1500 = vmatpush1.msra.mxu0 %v1477
    %1501 = vmatprep.subr.mxu0 0.0
    %1502 = vmatpush1.msra.mxu0 %v1478
    %1503 = vmatprep.subr.mxu0 0.0
    %1504 = vmatpush1.msra.mxu0 %v1479
    %1505 = vmatprep.subr.mxu0 0.0
    %1506 = vmatpush1.msra.mxu0 %v1480
    %1507 = vmatprep.subr.mxu0 0.0
    %1508 = vmatpush1.msra.mxu0 %v1481
    %1509 = vmatprep.subr.mxu0 0.0
    %1510 = vmatpush1.msra.mxu0 %v1482
    %1511 = vmatprep.subr.mxu0 0.0
    %1512 = vmatpush1.msra.mxu0 %v1483
    %1513 = vmatprep.subr.mxu0 0.0
    %1514 = vmatpush1.msra.mxu0 %v1484
    %1515 = vmatprep.subr.mxu0 0.0
    %1516 = vmatpush1.msra.mxu0 %v1485
    %1517 = vmatprep.subr.mxu0 0.0
    %1518 = vmatpush1.msra.mxu0 %v1486
    %1519 = vmatprep.subr.mxu0 0.0
    %1520 = vmatpush1.msra.mxu0 0.0
    %1521 = vmatprep.subr.mxu0 0.0
    %1522 = vmatpush1.msra.mxu0 0.0
    %1523 = vmatprep.subr.mxu0 0.0
    %1524 = vmatpush1.msra.mxu0 0.0
    %1525 = vmatprep.subr.mxu0 0.0
    %1526 = vmatpush1.msra.mxu0 0.0
    %1527 = vmatprep.subr.mxu0 0.0
    %1528 = vmatpush1.msra.mxu0 0.0
    %1529 = vmatprep.subr.mxu0 0.0
    %1530 = vmatpush1.msra.mxu0 0.0
    %1531 = vmatprep.subr.mxu0 0.0
    %1532 = vmatpush1.msra.mxu0 0.0
    %1533 = vmatprep.subr.mxu0 0.0
    %1534 = vmatpush1.msra.mxu0 0.0
    %1535 = vmatprep.subr.mxu0 0.0
    %1536 = vmatpush1.msra.mxu0 0.0
    %1537 = vmatprep.subr.mxu0 0.0
    %1538 = vmatpush1.msra.mxu0 0.0
    %1539 = vmatprep.subr.mxu0 0.0
    %1540 = vmatpush1.msra.mxu0 0.0
    %1541 = vmatprep.subr.mxu0 0.0
    %1542 = vmatpush1.msra.mxu0 0.0
    %1543 = vmatprep.subr.mxu0 0.0
    %1544 = vmatpush1.msra.mxu0 0.0
    %1545 = vmatprep.subr.mxu0 0.0
    %1546 = vmatpush1.msra.mxu0 0.0
    %1547 = vmatprep.subr.mxu0 0.0
    %1548 = vmatpush1.msra.mxu0 0.0
    %1549 = vmatprep.subr.mxu0 0.0
    %1550 = vmatpush1.msra.mxu0 0.0
    %1551 = vmatprep.mubr.f32.mxu0 0.0
    %1552 = vmatmul.mubr.f32.gmra.mrb[0].mxu0 %v1452
    %v1553 = vpop.f32.mrb[0].mxu0
    %v1554 = vadd.f32 0.0, %v1553
    %v1555 = vpop.f32.mrb[0].mxu0
    %1556 = vdwg.mxu0
    %1557 = vmatprep.subr.mxu0 0.0
    %1558 = vmatpush1.msra.mxu0 %v1454
    %1559 = vmatprep.subr.mxu0 0.0
    %1560 = vmatpush1.msra.mxu0 %v1455
    %1561 = vmatprep.subr.mxu0 0.0
    %1562 = vmatpush1.msra.mxu0 %v1456
    %1563 = vmatprep.subr.mxu0 0.0
    %1564 = vmatpush1.msra.mxu0 %v1457
    %1565 = vmatprep.subr.mxu0 0.0
    %1566 = vmatpush1.msra.mxu0 %v1458
    %1567 = vmatprep.subr.mxu0 0.0
    %1568 = vmatpush1.msra.mxu0 %v1459
    %1569 = vmatprep.subr.mxu0 0.0
    %1570 = vmatpush1.msra.mxu0 %v1460
    %1571 = vmatprep.subr.mxu0 0.0
    %1572 = vmatpush1.msra.mxu0 %v1461
    %1573 = vmatprep.subr.mxu0 0.0
    %1574 = vmatpush1.msra.mxu0 %v1462
    %1575 = vmatprep.subr.mxu0 0.0
    %1576 = vmatpush1.msra.mxu0 %v1463
    %1577 = vmatprep.subr.mxu0 0.0
    %1578 = vmatpush1.msra.mxu0 %v1464
    %1579 = vmatprep.subr.mxu0 0.0
    %1580 = vmatpush1.msra.mxu0 %v1465
    %1581 = vmatprep.subr.mxu0 0.0
    %1582 = vmatpush1.msra.mxu0 %v1466
    %1583 = vmatprep.subr.mxu0 0.0
    %1584 = vmatpush1.msra.mxu0 %v1467
    %1585 = vmatprep.subr.mxu0 0.0
    %1586 = vmatpush1.msra.mxu0 %v1468
    %1587 = vmatprep.subr.mxu0 0.0
    %1588 = vmatpush1.msra.mxu0 %v1469
    %1589 = vmatprep.subr.mxu0 0.0
    %1590 = vmatpush1.msra.mxu0 0.0
    %1591 = vmatprep.subr.mxu0 0.0
    %1592 = vmatpush1.msra.mxu0 0.0
    %1593 = vmatprep.subr.mxu0 0.0
    %1594 = vmatpush1.msra.mxu0 0.0
    %1595 = vmatprep.subr.mxu0 0.0
    %1596 = vmatpush1.msra.mxu0 0.0
    %1597 = vmatprep.subr.mxu0 0.0
    %1598 = vmatpush1.msra.mxu0 0.0
    %1599 = vmatprep.subr.mxu0 0.0
    %1600 = vmatpush1.msra.mxu0 0.0
    %1601 = vmatprep.subr.mxu0 0.0
    %1602 = vmatpush1.msra.mxu0 0.0
    %1603 = vmatprep.subr.mxu0 0.0
    %1604 = vmatpush1.msra.mxu0 0.0
    %1605 = vmatprep.subr.mxu0 0.0
    %1606 = vmatpush1.msra.mxu0 0.0
    %1607 = vmatprep.subr.mxu0 0.0
    %1608 = vmatpush1.msra.mxu0 0.0
    %1609 = vmatprep.subr.mxu0 0.0
    %1610 = vmatpush1.msra.mxu0 0.0
    %1611 = vmatprep.subr.mxu0 0.0
    %1612 = vmatpush1.msra.mxu0 0.0
    %1613 = vmatprep.subr.mxu0 0.0
    %1614 = vmatpush1.msra.mxu0 0.0
    %1615 = vmatprep.subr.mxu0 0.0
    %1616 = vmatpush1.msra.mxu0 0.0
    %1617 = vmatprep.subr.mxu0 0.0
    %1618 = vmatpush1.msra.mxu0 0.0
    %1619 = vmatprep.subr.mxu0 0.0
    %1620 = vmatpush1.msra.mxu0 0.0
    %1621 = vmatprep.mubr.f32.mxu0 0.0
    %1622 = vmatmul.mubr.f32.gmra.mrb[0].mxu0 %v1452
    %v1623 = vpop.f32.mrb[0].mxu0
    %v1624 = vadd.f32 %v1554, %v1623
    %v1625 = vpop.f32.mrb[0].mxu0
    %1626 = vdwg.mxu0
    %v1627 = vsel %vm606, %v1449, 0
    %v1628 = vmul.f32 %v1349, 2.0
    %v1629 = vsub.f32 %v1429, %v1628
    %1630 = vmin.xlane.f32.xlu0 %v1629
    %v1631 = vpop.xlane.xlu0 %1630
    %vm1632 = vcmp.eq.f32.partialorder %v1629, %v1631
    %v1633 = vsel %vm1632, %v197, 128
    %v1634 = vand.u32 %v1633, 65535
    %v1635 = vshra.s32 %v1633, 16
    %v1636 = vcvt.s32.f32 %v1634
    %v1637 = vcvt.s32.f32 %v1635
    %1638 = vmin.xlane.f32.xlu0 %v1637
    %v1639 = vpop.xlane.xlu0 %1638
    %vm1640 = vcmp.eq.f32.partialorder %v1637, %v1639
    %v1641 = vsel %vm1640, %v1636, inf
    %1642 = vmin.xlane.f32.xlu0 %v1641
    %v1643 = vpop.xlane.xlu0 %1642
    %v1644 = vcvt.f32.s32 %v1643
    %v1645 = vcvt.f32.s32 %v1639
    %v1646 = vshll.u32 %v1645, 16
    %v1647 = vadd.s32 %v1646, %v1644
    %vm1648 = vcmp.eq.s32.totalorder %v197, %v1647
    %v1649 = vsel %vm1648, 1, 0
    %v1650 = vcvt.s32.f32 %v1649
    %s1651 = scalar_lea.vmem [#allocation10], 640
    %v1652 = vld [vmem:[%s1651] sm:$0xff]
    %v1653 = vld [vmem:[%s1651 + $0x8] sm:$0xff]
    %v1654 = vld [vmem:[%s1651 + $0x10] sm:$0xff]
    %v1655 = vld [vmem:[%s1651 + $0x18] sm:$0xff]
    %v1656 = vld [vmem:[%s1651 + $0x20] sm:$0xff]
    %v1657 = vld [vmem:[%s1651 + $0x28] sm:$0xff]
    %v1658 = vld [vmem:[%s1651 + $0x30] sm:$0xff]
    %v1659 = vld [vmem:[%s1651 + $0x38] sm:$0xff]
    %v1660 = vld [vmem:[%s1651 + $0x40] sm:$0xff]
    %v1661 = vld [vmem:[%s1651 + $0x48] sm:$0xff]
    %v1662 = vld [vmem:[%s1651 + $0x50] sm:$0xff]
    %v1663 = vld [vmem:[%s1651 + $0x58] sm:$0xff]
    %v1664 = vld [vmem:[%s1651 + $0x60] sm:$0xff]
    %v1665 = vld [vmem:[%s1651 + $0x68] sm:$0xff]
    %v1666 = vld [vmem:[%s1651 + $0x70] sm:$0xff]
    %v1667 = vld [vmem:[%s1651 + $0x78] sm:$0xff]
    %1668 = vmatprep.subr.mxu0 0.0
    %1669 = vmatpush1.msra.mxu0 %v1652
    %1670 = vmatprep.subr.mxu0 0.0
    %1671 = vmatpush1.msra.mxu0 %v1653
    %1672 = vmatprep.subr.mxu0 0.0
    %1673 = vmatpush1.msra.mxu0 %v1654
    %1674 = vmatprep.subr.mxu0 0.0
    %1675 = vmatpush1.msra.mxu0 %v1655
    %1676 = vmatprep.subr.mxu0 0.0
    %1677 = vmatpush1.msra.mxu0 %v1656
    %1678 = vmatprep.subr.mxu0 0.0
    %1679 = vmatpush1.msra.mxu0 %v1657
    %1680 = vmatprep.subr.mxu0 0.0
    %1681 = vmatpush1.msra.mxu0 %v1658
    %1682 = vmatprep.subr.mxu0 0.0
    %1683 = vmatpush1.msra.mxu0 %v1659
    %1684 = vmatprep.subr.mxu0 0.0
    %1685 = vmatpush1.msra.mxu0 %v1660
    %1686 = vmatprep.subr.mxu0 0.0
    %1687 = vmatpush1.msra.mxu0 %v1661
    %1688 = vmatprep.subr.mxu0 0.0
    %1689 = vmatpush1.msra.mxu0 %v1662
    %1690 = vmatprep.subr.mxu0 0.0
    %1691 = vmatpush1.msra.mxu0 %v1663
    %1692 = vmatprep.subr.mxu0 0.0
    %1693 = vmatpush1.msra.mxu0 %v1664
    %1694 = vmatprep.subr.mxu0 0.0
    %1695 = vmatpush1.msra.mxu0 %v1665
    %1696 = vmatprep.subr.mxu0 0.0
    %1697 = vmatpush1.msra.mxu0 %v1666
    %1698 = vmatprep.subr.mxu0 0.0
    %1699 = vmatpush1.msra.mxu0 %v1667
    %1700 = vmatprep.subr.mxu0 0.0
    %1701 = vmatpush1.msra.mxu0 0.0
    %1702 = vmatprep.subr.mxu0 0.0
    %1703 = vmatpush1.msra.mxu0 0.0
    %1704 = vmatprep.subr.mxu0 0.0
    %1705 = vmatpush1.msra.mxu0 0.0
    %1706 = vmatprep.subr.mxu0 0.0
    %1707 = vmatpush1.msra.mxu0 0.0
    %1708 = vmatprep.subr.mxu0 0.0
    %1709 = vmatpush1.msra.mxu0 0.0
    %1710 = vmatprep.subr.mxu0 0.0
    %1711 = vmatpush1.msra.mxu0 0.0
    %1712 = vmatprep.subr.mxu0 0.0
    %1713 = vmatpush1.msra.mxu0 0.0
    %1714 = vmatprep.subr.mxu0 0.0
    %1715 = vmatpush1.msra.mxu0 0.0
    %1716 = vmatprep.subr.mxu0 0.0
    %1717 = vmatpush1.msra.mxu0 0.0
    %1718 = vmatprep.subr.mxu0 0.0
    %1719 = vmatpush1.msra.mxu0 0.0
    %1720 = vmatprep.subr.mxu0 0.0
    %1721 = vmatpush1.msra.mxu0 0.0
    %1722 = vmatprep.subr.mxu0 0.0
    %1723 = vmatpush1.msra.mxu0 0.0
    %1724 = vmatprep.subr.mxu0 0.0
    %1725 = vmatpush1.msra.mxu0 0.0
    %1726 = vmatprep.subr.mxu0 0.0
    %1727 = vmatpush1.msra.mxu0 0.0
    %1728 = vmatprep.subr.mxu0 0.0
    %1729 = vmatpush1.msra.mxu0 0.0
    %1730 = vmatprep.subr.mxu0 0.0
    %1731 = vmatpush1.msra.mxu0 0.0
    %1732 = vmatprep.mubr.f32.mxu0 0.0
    %1733 = vmatmul.mubr.f32.gmra.mrb[0].mxu0 %v1650
    %v1734 = vpop.f32.mrb[0].mxu0
    %v1735 = vadd.f32 0.0, %v1734
    %v1736 = vpop.f32.mrb[0].mxu0
    %1737 = vdwg.mxu0
    %v1738 = vadd.f32 %v1624, %v1735
    %s1739 = scalar_lea.vmem [#allocation11], 640
    %v1740 = vld [vmem:[%s1739] sm:$0xff]
    %v1741 = vld [vmem:[%s1739 + $0x8] sm:$0xff]
    %v1742 = vld [vmem:[%s1739 + $0x10] sm:$0xff]
    %v1743 = vld [vmem:[%s1739 + $0x18] sm:$0xff]
    %v1744 = vld [vmem:[%s1739 + $0x20] sm:$0xff]
    %v1745 = vld [vmem:[%s1739 + $0x28] sm:$0xff]
    %v1746 = vld [vmem:[%s1739 + $0x30] sm:$0xff]
    %v1747 = vld [vmem:[%s1739 + $0x38] sm:$0xff]
    %v1748 = vld [vmem:[%s1739 + $0x40] sm:$0xff]
    %v1749 = vld [vmem:[%s1739 + $0x48] sm:$0xff]
    %v1750 = vld [vmem:[%s1739 + $0x50] sm:$0xff]
    %v1751 = vld [vmem:[%s1739 + $0x58] sm:$0xff]
    %v1752 = vld [vmem:[%s1739 + $0x60] sm:$0xff]
    %v1753 = vld [vmem:[%s1739 + $0x68] sm:$0xff]
    %v1754 = vld [vmem:[%s1739 + $0x70] sm:$0xff]
    %v1755 = vld [vmem:[%s1739 + $0x78] sm:$0xff]
    %1756 = vmatprep.subr.mxu0 0.0
    %1757 = vmatpush1.msra.mxu0 %v1740
    %1758 = vmatprep.subr.mxu0 0.0
    %1759 = vmatpush1.msra.mxu0 %v1741
    %1760 = vmatprep.subr.mxu0 0.0
    %1761 = vmatpush1.msra.mxu0 %v1742
    %1762 = vmatprep.subr.mxu0 0.0
    %1763 = vmatpush1.msra.mxu0 %v1743
    %1764 = vmatprep.subr.mxu0 0.0
    %1765 = vmatpush1.msra.mxu0 %v1744
    %1766 = vmatprep.subr.mxu0 0.0
    %1767 = vmatpush1.msra.mxu0 %v1745
    %1768 = vmatprep.subr.mxu0 0.0
    %1769 = vmatpush1.msra.mxu0 %v1746
    %1770 = vmatprep.subr.mxu0 0.0
    %1771 = vmatpush1.msra.mxu0 %v1747
    %1772 = vmatprep.subr.mxu0 0.0
    %1773 = vmatpush1.msra.mxu0 %v1748
    %1774 = vmatprep.subr.mxu0 0.0
    %1775 = vmatpush1.msra.mxu0 %v1749
    %1776 = vmatprep.subr.mxu0 0.0
    %1777 = vmatpush1.msra.mxu0 %v1750
    %1778 = vmatprep.subr.mxu0 0.0
    %1779 = vmatpush1.msra.mxu0 %v1751
    %1780 = vmatprep.subr.mxu0 0.0
    %1781 = vmatpush1.msra.mxu0 %v1752
    %1782 = vmatprep.subr.mxu0 0.0
    %1783 = vmatpush1.msra.mxu0 %v1753
    %1784 = vmatprep.subr.mxu0 0.0
    %1785 = vmatpush1.msra.mxu0 %v1754
    %1786 = vmatprep.subr.mxu0 0.0
    %1787 = vmatpush1.msra.mxu0 %v1755
    %1788 = vmatprep.subr.mxu0 0.0
    %1789 = vmatpush1.msra.mxu0 0.0
    %1790 = vmatprep.subr.mxu0 0.0
    %1791 = vmatpush1.msra.mxu0 0.0
    %1792 = vmatprep.subr.mxu0 0.0
    %1793 = vmatpush1.msra.mxu0 0.0
    %1794 = vmatprep.subr.mxu0 0.0
    %1795 = vmatpush1.msra.mxu0 0.0
    %1796 = vmatprep.subr.mxu0 0.0
    %1797 = vmatpush1.msra.mxu0 0.0
    %1798 = vmatprep.subr.mxu0 0.0
    %1799 = vmatpush1.msra.mxu0 0.0
    %1800 = vmatprep.subr.mxu0 0.0
    %1801 = vmatpush1.msra.mxu0 0.0
    %1802 = vmatprep.subr.mxu0 0.0
    %1803 = vmatpush1.msra.mxu0 0.0
    %1804 = vmatprep.subr.mxu0 0.0
    %1805 = vmatpush1.msra.mxu0 0.0
    %1806 = vmatprep.subr.mxu0 0.0
    %1807 = vmatpush1.msra.mxu0 0.0
    %1808 = vmatprep.subr.mxu0 0.0
    %1809 = vmatpush1.msra.mxu0 0.0
    %1810 = vmatprep.subr.mxu0 0.0
    %1811 = vmatpush1.msra.mxu0 0.0
    %1812 = vmatprep.subr.mxu0 0.0
    %1813 = vmatpush1.msra.mxu0 0.0
    %1814 = vmatprep.subr.mxu0 0.0
    %1815 = vmatpush1.msra.mxu0 0.0
    %1816 = vmatprep.subr.mxu0 0.0
    %1817 = vmatpush1.msra.mxu0 0.0
    %1818 = vmatprep.subr.mxu0 0.0
    %1819 = vmatpush1.msra.mxu0 0.0
    %1820 = vmatprep.mubr.f32.mxu0 0.0
    %1821 = vmatmul.mubr.f32.gmra.mrb[0].mxu0 %v1650
    %v1822 = vpop.f32.mrb[0].mxu0
    %v1823 = vadd.f32 0.0, %v1822
    %v1824 = vpop.f32.mrb[0].mxu0
    %1825 = vdwg.mxu0
    %v1826 = vadd.f32 %v1738, %v1823
    %v1827 = vsel %vm807, %v1647, %v1627
    %v1828 = vmul.f32 %v1418, 2.0
    %v1829 = vsub.f32 %v1429, %v1828
    %1830 = vmin.xlane.f32.xlu0 %v1829
    %v1831 = vpop.xlane.xlu0 %1830
    %vm1832 = vcmp.eq.f32.partialorder %v1829, %v1831
    %v1833 = vsel %vm1832, %v197, 128
    %v1834 = vand.u32 %v1833, 65535
    %v1835 = vshra.s32 %v1833, 16
    %v1836 = vcvt.s32.f32 %v1834
    %v1837 = vcvt.s32.f32 %v1835
    %1838 = vmin.xlane.f32.xlu0 %v1837
    %v1839 = vpop.xlane.xlu0 %1838
    %vm1840 = vcmp.eq.f32.partialorder %v1837, %v1839
    %v1841 = vsel %vm1840, %v1836, inf
    %1842 = vmin.xlane.f32.xlu0 %v1841
    %v1843 = vpop.xlane.xlu0 %1842
    %v1844 = vcvt.f32.s32 %v1843
    %v1845 = vcvt.f32.s32 %v1839
    %v1846 = vshll.u32 %v1845, 16
    %v1847 = vadd.s32 %v1846, %v1844
    %vm1848 = vcmp.eq.s32.totalorder %v197, %v1847
    %v1849 = vsel %vm1848, 1, 0
    %v1850 = vcvt.s32.f32 %v1849
    %s1851 = scalar_lea.vmem [#allocation10], 768
    %v1852 = vld [vmem:[%s1851] sm:$0xff]
    %v1853 = vld [vmem:[%s1851 + $0x8] sm:$0xff]
    %v1854 = vld [vmem:[%s1851 + $0x10] sm:$0xff]
    %v1855 = vld [vmem:[%s1851 + $0x18] sm:$0xff]
    %v1856 = vld [vmem:[%s1851 + $0x20] sm:$0xff]
    %v1857 = vld [vmem:[%s1851 + $0x28] sm:$0xff]
    %v1858 = vld [vmem:[%s1851 + $0x30] sm:$0xff]
    %v1859 = vld [vmem:[%s1851 + $0x38] sm:$0xff]
    %v1860 = vld [vmem:[%s1851 + $0x40] sm:$0xff]
    %v1861 = vld [vmem:[%s1851 + $0x48] sm:$0xff]
    %v1862 = vld [vmem:[%s1851 + $0x50] sm:$0xff]
    %v1863 = vld [vmem:[%s1851 + $0x58] sm:$0xff]
    %v1864 = vld [vmem:[%s1851 + $0x60] sm:$0xff]
    %v1865 = vld [vmem:[%s1851 + $0x68] sm:$0xff]
    %v1866 = vld [vmem:[%s1851 + $0x70] sm:$0xff]
    %v1867 = vld [vmem:[%s1851 + $0x78] sm:$0xff]
    %1868 = vmatprep.subr.mxu0 0.0
    %1869 = vmatpush1.msra.mxu0 %v1852
    %1870 = vmatprep.subr.mxu0 0.0
    %1871 = vmatpush1.msra.mxu0 %v1853
    %1872 = vmatprep.subr.mxu0 0.0
    %1873 = vmatpush1.msra.mxu0 %v1854
    %1874 = vmatprep.subr.mxu0 0.0
    %1875 = vmatpush1.msra.mxu0 %v1855
    %1876 = vmatprep.subr.mxu0 0.0
    %1877 = vmatpush1.msra.mxu0 %v1856
    %1878 = vmatprep.subr.mxu0 0.0
    %1879 = vmatpush1.msra.mxu0 %v1857
    %1880 = vmatprep.subr.mxu0 0.0
    %1881 = vmatpush1.msra.mxu0 %v1858
    %1882 = vmatprep.subr.mxu0 0.0
    %1883 = vmatpush1.msra.mxu0 %v1859
    %1884 = vmatprep.subr.mxu0 0.0
    %1885 = vmatpush1.msra.mxu0 %v1860
    %1886 = vmatprep.subr.mxu0 0.0
    %1887 = vmatpush1.msra.mxu0 %v1861
    %1888 = vmatprep.subr.mxu0 0.0
    %1889 = vmatpush1.msra.mxu0 %v1862
    %1890 = vmatprep.subr.mxu0 0.0
    %1891 = vmatpush1.msra.mxu0 %v1863
    %1892 = vmatprep.subr.mxu0 0.0
    %1893 = vmatpush1.msra.mxu0 %v1864
    %1894 = vmatprep.subr.mxu0 0.0
    %1895 = vmatpush1.msra.mxu0 %v1865
    %1896 = vmatprep.subr.mxu0 0.0
    %1897 = vmatpush1.msra.mxu0 %v1866
    %1898 = vmatprep.subr.mxu0 0.0
    %1899 = vmatpush1.msra.mxu0 %v1867
    %1900 = vmatprep.subr.mxu0 0.0
    %1901 = vmatpush1.msra.mxu0 0.0
    %1902 = vmatprep.subr.mxu0 0.0
    %1903 = vmatpush1.msra.mxu0 0.0
    %1904 = vmatprep.subr.mxu0 0.0
    %1905 = vmatpush1.msra.mxu0 0.0
    %1906 = vmatprep.subr.mxu0 0.0
    %1907 = vmatpush1.msra.mxu0 0.0
    %1908 = vmatprep.subr.mxu0 0.0
    %1909 = vmatpush1.msra.mxu0 0.0
    %1910 = vmatprep.subr.mxu0 0.0
    %1911 = vmatpush1.msra.mxu0 0.0
    %1912 = vmatprep.subr.mxu0 0.0
    %1913 = vmatpush1.msra.mxu0 0.0
    %1914 = vmatprep.subr.mxu0 0.0
    %1915 = vmatpush1.msra.mxu0 0.0
    %1916 = vmatprep.subr.mxu0 0.0
    %1917 = vmatpush1.msra.mxu0 0.0
    %1918 = vmatprep.subr.mxu0 0.0
    %1919 = vmatpush1.msra.mxu0 0.0
    %1920 = vmatprep.subr.mxu0 0.0
    %1921 = vmatpush1.msra.mxu0 0.0
    %1922 = vmatprep.subr.mxu0 0.0
    %1923 = vmatpush1.msra.mxu0 0.0
    %1924 = vmatprep.subr.mxu0 0.0
    %1925 = vmatpush1.msra.mxu0 0.0
    %1926 = vmatprep.subr.mxu0 0.0
    %1927 = vmatpush1.msra.mxu0 0.0
    %1928 = vmatprep.subr.mxu0 0.0
    %1929 = vmatpush1.msra.mxu0 0.0
    %1930 = vmatprep.subr.mxu0 0.0
    %1931 = vmatpush1.msra.mxu0 0.0
    %1932 = vmatprep.mubr.f32.mxu0 0.0
    %1933 = vmatmul.mubr.f32.gmra.mrb[0].mxu0 %v1850
    %v1934 = vpop.f32.mrb[0].mxu0
    %v1935 = vadd.f32 0.0, %v1934
    %v1936 = vpop.f32.mrb[0].mxu0
    %1937 = vdwg.mxu0
    %v1938 = vadd.f32 %v1826, %v1935
    %s1939 = scalar_lea.vmem [#allocation11], 768
    %v1940 = vld [vmem:[%s1939] sm:$0xff]
    %v1941 = vld [vmem:[%s1939 + $0x8] sm:$0xff]
    %v1942 = vld [vmem:[%s1939 + $0x10] sm:$0xff]
    %v1943 = vld [vmem:[%s1939 + $0x18] sm:$0xff]
    %v1944 = vld [vmem:[%s1939 + $0x20] sm:$0xff]
    %v1945 = vld [vmem:[%s1939 + $0x28] sm:$0xff]
    %v1946 = vld [vmem:[%s1939 + $0x30] sm:$0xff]
    %v1947 = vld [vmem:[%s1939 + $0x38] sm:$0xff]
    %v1948 = vld [vmem:[%s1939 + $0x40] sm:$0xff]
    %v1949 = vld [vmem:[%s1939 + $0x48] sm:$0xff]
    %v1950 = vld [vmem:[%s1939 + $0x50] sm:$0xff]
    %v1951 = vld [vmem:[%s1939 + $0x58] sm:$0xff]
    %v1952 = vld [vmem:[%s1939 + $0x60] sm:$0xff]
    %v1953 = vld [vmem:[%s1939 + $0x68] sm:$0xff]
    %v1954 = vld [vmem:[%s1939 + $0x70] sm:$0xff]
    %v1955 = vld [vmem:[%s1939 + $0x78] sm:$0xff]
    %1956 = vmatprep.subr.mxu0 0.0
    %1957 = vmatpush1.msra.mxu0 %v1940
    %1958 = vmatprep.subr.mxu0 0.0
    %1959 = vmatpush1.msra.mxu0 %v1941
    %1960 = vmatprep.subr.mxu0 0.0
    %1961 = vmatpush1.msra.mxu0 %v1942
    %1962 = vmatprep.subr.mxu0 0.0
    %1963 = vmatpush1.msra.mxu0 %v1943
    %1964 = vmatprep.subr.mxu0 0.0
    %1965 = vmatpush1.msra.mxu0 %v1944
    %1966 = vmatprep.subr.mxu0 0.0
    %1967 = vmatpush1.msra.mxu0 %v1945
    %1968 = vmatprep.subr.mxu0 0.0
    %1969 = vmatpush1.msra.mxu0 %v1946
    %1970 = vmatprep.subr.mxu0 0.0
    %1971 = vmatpush1.msra.mxu0 %v1947
    %1972 = vmatprep.subr.mxu0 0.0
    %1973 = vmatpush1.msra.mxu0 %v1948
    %1974 = vmatprep.subr.mxu0 0.0
    %1975 = vmatpush1.msra.mxu0 %v1949
    %1976 = vmatprep.subr.mxu0 0.0
    %1977 = vmatpush1.msra.mxu0 %v1950
    %1978 = vmatprep.subr.mxu0 0.0
    %1979 = vmatpush1.msra.mxu0 %v1951
    %1980 = vmatprep.subr.mxu0 0.0
    %1981 = vmatpush1.msra.mxu0 %v1952
    %1982 = vmatprep.subr.mxu0 0.0
    %1983 = vmatpush1.msra.mxu0 %v1953
    %1984 = vmatprep.subr.mxu0 0.0
    %1985 = vmatpush1.msra.mxu0 %v1954
    %1986 = vmatprep.subr.mxu0 0.0
    %1987 = vmatpush1.msra.mxu0 %v1955
    %1988 = vmatprep.subr.mxu0 0.0
    %1989 = vmatpush1.msra.mxu0 0.0
    %1990 = vmatprep.subr.mxu0 0.0
    %1991 = vmatpush1.msra.mxu0 0.0
    %1992 = vmatprep.subr.mxu0 0.0
    %1993 = vmatpush1.msra.mxu0 0.0
    %1994 = vmatprep.subr.mxu0 0.0
    %1995 = vmatpush1.msra.mxu0 0.0
    %1996 = vmatprep.subr.mxu0 0.0
    %1997 = vmatpush1.msra.mxu0 0.0
    %1998 = vmatprep.subr.mxu0 0.0
    %1999 = vmatpush1.msra.mxu0 0.0
    %2000 = vmatprep.subr.mxu0 0.0
    %2001 = vmatpush1.msra.mxu0 0.0
    %2002 = vmatprep.subr.mxu0 0.0
    %2003 = vmatpush1.msra.mxu0 0.0
    %2004 = vmatprep.subr.mxu0 0.0
    %2005 = vmatpush1.msra.mxu0 0.0
    %2006 = vmatprep.subr.mxu0 0.0
    %2007 = vmatpush1.msra.mxu0 0.0
    %2008 = vmatprep.subr.mxu0 0.0
    %2009 = vmatpush1.msra.mxu0 0.0
    %2010 = vmatprep.subr.mxu0 0.0
    %2011 = vmatpush1.msra.mxu0 0.0
    %2012 = vmatprep.subr.mxu0 0.0
    %2013 = vmatpush1.msra.mxu0 0.0
    %2014 = vmatprep.subr.mxu0 0.0
    %2015 = vmatpush1.msra.mxu0 0.0
    %2016 = vmatprep.subr.mxu0 0.0
    %2017 = vmatpush1.msra.mxu0 0.0
    %2018 = vmatprep.subr.mxu0 0.0
    %2019 = vmatpush1.msra.mxu0 0.0
    %2020 = vmatprep.mubr.f32.mxu0 0.0
    %2021 = vmatmul.mubr.f32.gmra.mrb[0].mxu0 %v1850
    %v2022 = vpop.f32.mrb[0].mxu0
    %v2023 = vadd.f32 0.0, %v2022
    %v2024 = vpop.f32.mrb[0].mxu0
    %2025 = vdwg.mxu0
    %v2026 = vadd.f32 %v1938, %v2023
    %v2027 = vsel %vm1008, %v1847, %v1827
    %v2028 = vmul.f32 %v1420, 2.0
    %v2029 = vsub.f32 %v1429, %v2028
    %2030 = vmin.xlane.f32.xlu0 %v2029
    %v2031 = vpop.xlane.xlu0 %2030
    %vm2032 = vcmp.eq.f32.partialorder %v2029, %v2031
    %v2033 = vsel %vm2032, %v197, 128
    %v2034 = vand.u32 %v2033, 65535
    %v2035 = vshra.s32 %v2033, 16
    %v2036 = vcvt.s32.f32 %v2034
    %v2037 = vcvt.s32.f32 %v2035
    %2038 = vmin.xlane.f32.xlu0 %v2037
    %v2039 = vpop.xlane.xlu0 %2038
    %vm2040 = vcmp.eq.f32.partialorder %v2037, %v2039
    %v2041 = vsel %vm2040, %v2036, inf
    %2042 = vmin.xlane.f32.xlu0 %v2041
    %v2043 = vpop.xlane.xlu0 %2042
    %v2044 = vcvt.f32.s32 %v2043
    %v2045 = vcvt.f32.s32 %v2039
    %v2046 = vshll.u32 %v2045, 16
    %v2047 = vadd.s32 %v2046, %v2044
    %vm2048 = vcmp.eq.s32.totalorder %v197, %v2047
    %v2049 = vsel %vm2048, 1, 0
    %v2050 = vcvt.s32.f32 %v2049
    %s2051 = scalar_lea.vmem [#allocation10], 896
    %v2052 = vld [vmem:[%s2051] sm:$0xff]
    %v2053 = vld [vmem:[%s2051 + $0x8] sm:$0xff]
    %v2054 = vld [vmem:[%s2051 + $0x10] sm:$0xff]
    %v2055 = vld [vmem:[%s2051 + $0x18] sm:$0xff]
    %v2056 = vld [vmem:[%s2051 + $0x20] sm:$0xff]
    %v2057 = vld [vmem:[%s2051 + $0x28] sm:$0xff]
    %v2058 = vld [vmem:[%s2051 + $0x30] sm:$0xff]
    %v2059 = vld [vmem:[%s2051 + $0x38] sm:$0xff]
    %v2060 = vld [vmem:[%s2051 + $0x40] sm:$0xff]
    %v2061 = vld [vmem:[%s2051 + $0x48] sm:$0xff]
    %v2062 = vld [vmem:[%s2051 + $0x50] sm:$0xff]
    %v2063 = vld [vmem:[%s2051 + $0x58] sm:$0xff]
    %v2064 = vld [vmem:[%s2051 + $0x60] sm:$0xff]
    %v2065 = vld [vmem:[%s2051 + $0x68] sm:$0xff]
    %v2066 = vld [vmem:[%s2051 + $0x70] sm:$0xff]
    %v2067 = vld [vmem:[%s2051 + $0x78] sm:$0xff]
    %2068 = vmatprep.subr.mxu0 0.0
    %2069 = vmatpush1.msra.mxu0 %v2052
    %2070 = vmatprep.subr.mxu0 0.0
    %2071 = vmatpush1.msra.mxu0 %v2053
    %2072 = vmatprep.subr.mxu0 0.0
    %2073 = vmatpush1.msra.mxu0 %v2054
    %2074 = vmatprep.subr.mxu0 0.0
    %2075 = vmatpush1.msra.mxu0 %v2055
    %2076 = vmatprep.subr.mxu0 0.0
    %2077 = vmatpush1.msra.mxu0 %v2056
    %2078 = vmatprep.subr.mxu0 0.0
    %2079 = vmatpush1.msra.mxu0 %v2057
    %2080 = vmatprep.subr.mxu0 0.0
    %2081 = vmatpush1.msra.mxu0 %v2058
    %2082 = vmatprep.subr.mxu0 0.0
    %2083 = vmatpush1.msra.mxu0 %v2059
    %2084 = vmatprep.subr.mxu0 0.0
    %2085 = vmatpush1.msra.mxu0 %v2060
    %2086 = vmatprep.subr.mxu0 0.0
    %2087 = vmatpush1.msra.mxu0 %v2061
    %2088 = vmatprep.subr.mxu0 0.0
    %2089 = vmatpush1.msra.mxu0 %v2062
    %2090 = vmatprep.subr.mxu0 0.0
    %2091 = vmatpush1.msra.mxu0 %v2063
    %2092 = vmatprep.subr.mxu0 0.0
    %2093 = vmatpush1.msra.mxu0 %v2064
    %2094 = vmatprep.subr.mxu0 0.0
    %2095 = vmatpush1.msra.mxu0 %v2065
    %2096 = vmatprep.subr.mxu0 0.0
    %2097 = vmatpush1.msra.mxu0 %v2066
    %2098 = vmatprep.subr.mxu0 0.0
    %2099 = vmatpush1.msra.mxu0 %v2067
    %2100 = vmatprep.subr.mxu0 0.0
    %2101 = vmatpush1.msra.mxu0 0.0
    %2102 = vmatprep.subr.mxu0 0.0
    %2103 = vmatpush1.msra.mxu0 0.0
    %2104 = vmatprep.subr.mxu0 0.0
    %2105 = vmatpush1.msra.mxu0 0.0
    %2106 = vmatprep.subr.mxu0 0.0
    %2107 = vmatpush1.msra.mxu0 0.0
    %2108 = vmatprep.subr.mxu0 0.0
    %2109 = vmatpush1.msra.mxu0 0.0
    %2110 = vmatprep.subr.mxu0 0.0
    %2111 = vmatpush1.msra.mxu0 0.0
    %2112 = vmatprep.subr.mxu0 0.0
    %2113 = vmatpush1.msra.mxu0 0.0
    %2114 = vmatprep.subr.mxu0 0.0
    %2115 = vmatpush1.msra.mxu0 0.0
    %2116 = vmatprep.subr.mxu0 0.0
    %2117 = vmatpush1.msra.mxu0 0.0
    %2118 = vmatprep.subr.mxu0 0.0
    %2119 = vmatpush1.msra.mxu0 0.0
    %2120 = vmatprep.subr.mxu0 0.0
    %2121 = vmatpush1.msra.mxu0 0.0
    %2122 = vmatprep.subr.mxu0 0.0
    %2123 = vmatpush1.msra.mxu0 0.0
    %2124 = vmatprep.subr.mxu0 0.0
    %2125 = vmatpush1.msra.mxu0 0.0
    %2126 = vmatprep.subr.mxu0 0.0
    %2127 = vmatpush1.msra.mxu0 0.0
    %2128 = vmatprep.subr.mxu0 0.0
    %2129 = vmatpush1.msra.mxu0 0.0
    %2130 = vmatprep.subr.mxu0 0.0
    %2131 = vmatpush1.msra.mxu0 0.0
    %2132 = vmatprep.mubr.f32.mxu0 0.0
    %2133 = vmatmul.mubr.f32.gmra.mrb[0].mxu0 %v2050
    %v2134 = vpop.f32.mrb[0].mxu0
    %v2135 = vadd.f32 0.0, %v2134
    %v2136 = vpop.f32.mrb[0].mxu0
    %2137 = vdwg.mxu0
    %v2138 = vadd.f32 %v2026, %v2135
    %s2139 = scalar_lea.vmem [#allocation11], 896
    %v2140 = vld [vmem:[%s2139] sm:$0xff]
    %v2141 = vld [vmem:[%s2139 + $0x8] sm:$0xff]
    %v2142 = vld [vmem:[%s2139 + $0x10] sm:$0xff]
    %v2143 = vld [vmem:[%s2139 + $0x18] sm:$0xff]
    %v2144 = vld [vmem:[%s2139 + $0x20] sm:$0xff]
    %v2145 = vld [vmem:[%s2139 + $0x28] sm:$0xff]
    %v2146 = vld [vmem:[%s2139 + $0x30] sm:$0xff]
    %v2147 = vld [vmem:[%s2139 + $0x38] sm:$0xff]
    %v2148 = vld [vmem:[%s2139 + $0x40] sm:$0xff]
    %v2149 = vld [vmem:[%s2139 + $0x48] sm:$0xff]
    %v2150 = vld [vmem:[%s2139 + $0x50] sm:$0xff]
    %v2151 = vld [vmem:[%s2139 + $0x58] sm:$0xff]
    %v2152 = vld [vmem:[%s2139 + $0x60] sm:$0xff]
    %v2153 = vld [vmem:[%s2139 + $0x68] sm:$0xff]
    %v2154 = vld [vmem:[%s2139 + $0x70] sm:$0xff]
    %v2155 = vld [vmem:[%s2139 + $0x78] sm:$0xff]
    %2156 = vmatprep.subr.mxu0 0.0
    %2157 = vmatpush1.msra.mxu0 %v2140
    %2158 = vmatprep.subr.mxu0 0.0
    %2159 = vmatpush1.msra.mxu0 %v2141
    %2160 = vmatprep.subr.mxu0 0.0
    %2161 = vmatpush1.msra.mxu0 %v2142
    %2162 = vmatprep.subr.mxu0 0.0
    %2163 = vmatpush1.msra.mxu0 %v2143
    %2164 = vmatprep.subr.mxu0 0.0
    %2165 = vmatpush1.msra.mxu0 %v2144
    %2166 = vmatprep.subr.mxu0 0.0
    %2167 = vmatpush1.msra.mxu0 %v2145
    %2168 = vmatprep.subr.mxu0 0.0
    %2169 = vmatpush1.msra.mxu0 %v2146
    %2170 = vmatprep.subr.mxu0 0.0
    %2171 = vmatpush1.msra.mxu0 %v2147
    %2172 = vmatprep.subr.mxu0 0.0
    %2173 = vmatpush1.msra.mxu0 %v2148
    %2174 = vmatprep.subr.mxu0 0.0
    %2175 = vmatpush1.msra.mxu0 %v2149
    %2176 = vmatprep.subr.mxu0 0.0
    %2177 = vmatpush1.msra.mxu0 %v2150
    %2178 = vmatprep.subr.mxu0 0.0
    %2179 = vmatpush1.msra.mxu0 %v2151
    %2180 = vmatprep.subr.mxu0 0.0
    %2181 = vmatpush1.msra.mxu0 %v2152
    %2182 = vmatprep.subr.mxu0 0.0
    %2183 = vmatpush1.msra.mxu0 %v2153
    %2184 = vmatprep.subr.mxu0 0.0
    %2185 = vmatpush1.msra.mxu0 %v2154
    %2186 = vmatprep.subr.mxu0 0.0
    %2187 = vmatpush1.msra.mxu0 %v2155
    %2188 = vmatprep.subr.mxu0 0.0
    %2189 = vmatpush1.msra.mxu0 0.0
    %2190 = vmatprep.subr.mxu0 0.0
    %2191 = vmatpush1.msra.mxu0 0.0
    %2192 = vmatprep.subr.mxu0 0.0
    %2193 = vmatpush1.msra.mxu0 0.0
    %2194 = vmatprep.subr.mxu0 0.0
    %2195 = vmatpush1.msra.mxu0 0.0
    %2196 = vmatprep.subr.mxu0 0.0
    %2197 = vmatpush1.msra.mxu0 0.0
    %2198 = vmatprep.subr.mxu0 0.0
    %2199 = vmatpush1.msra.mxu0 0.0
    %2200 = vmatprep.subr.mxu0 0.0
    %2201 = vmatpush1.msra.mxu0 0.0
    %2202 = vmatprep.subr.mxu0 0.0
    %2203 = vmatpush1.msra.mxu0 0.0
    %2204 = vmatprep.subr.mxu0 0.0
    %2205 = vmatpush1.msra.mxu0 0.0
    %2206 = vmatprep.subr.mxu0 0.0
    %2207 = vmatpush1.msra.mxu0 0.0
    %2208 = vmatprep.subr.mxu0 0.0
    %2209 = vmatpush1.msra.mxu0 0.0
    %2210 = vmatprep.subr.mxu0 0.0
    %2211 = vmatpush1.msra.mxu0 0.0
    %2212 = vmatprep.subr.mxu0 0.0
    %2213 = vmatpush1.msra.mxu0 0.0
    %2214 = vmatprep.subr.mxu0 0.0
    %2215 = vmatpush1.msra.mxu0 0.0
    %2216 = vmatprep.subr.mxu0 0.0
    %2217 = vmatpush1.msra.mxu0 0.0
    %2218 = vmatprep.subr.mxu0 0.0
    %2219 = vmatpush1.msra.mxu0 0.0
    %2220 = vmatprep.mubr.f32.mxu0 0.0
    %2221 = vmatmul.mubr.f32.gmra.mrb[0].mxu0 %v2050
    %v2222 = vpop.f32.mrb[0].mxu0
    %v2223 = vadd.f32 0.0, %v2222
    %v2224 = vpop.f32.mrb[0].mxu0
    %2225 = vdwg.mxu0
    %v2226 = vadd.f32 %v2138, %v2223
    %v2227 = vsel %vm1209, %v2047, %v2027
    %v2228 = vadd.f32 %v1211, %v2226
    %s2229 = scalar_lea.vmem %s8, 8
    %2230 = vst.msk [vmem:[%s2229] sm:$0xff] %vm1213, %v2227
    %2231 = vst [vmem:[#allocation13] sm:$0xff] %v2228
    %v2232 = vlaneseq
    %v2233 = vshrl.u32 %v2232, 7
    %s2234 = smul.u32 0, 8
    %v2235 = vstv %s2234
    %v2236 = vadd.s32 %v2235, %v2233
    %v2237 = vmul.u32 %v2236, 4
    %v2238 = vadd.s32 %v2237, %v197
    %vm2239 = vcmp.lt.s32.totalorder %v2238, 32
    %vm2240 = vcmp.eq.s32.totalorder %v1210, %v2227
    %v2241 = vsel %vm2240, 0.0, -0.6931472
    %v2242 = vsel %vm2239, %v2241, 0.0
    %v2243 = vsel %vm1213, %v2242, 0.0
    %2244 = vadd.xlane.f32.xlu0 %v2243
    %v2245 = vpop.xlane.xlu0 %2244
    %v2246 = vrot.slane %v2245, 4
    %v2247 = vadd.f32 %v2245, %v2246
    %v2248 = vrot.slane %v2247, 2
    %v2249 = vadd.f32 %v2247, %v2248
    %v2250 = vrot.slane %v2249, 1
    %v2251 = vadd.f32 %v2249, %v2250
    %s2252 = vtos %v2251
    %v2253 = vmul.u32 %v2236, 128
    %v2254 = vadd.s32 %v2253, %v197
    %vm2255 = vcmp.lt.s32.totalorder %v2254, 1024
    %v2256 = vld [vmem:[#allocation5] sm:$0xff]
    %v2257 = vsub.f32 %v2228, %v2256
    %v2258 = vsel %vm2255, %v2257, 0.0
    %v2259 = vmul.f32 %v2258, %v2258
    %2260 = vadd.xlane.f32.xlu0 %v2259
    %v2261 = vpop.xlane.xlu0 %2260
    %v2262 = vrot.slane %v2261, 4
    %v2263 = vadd.f32 %v2261, %v2262
    %v2264 = vrot.slane %v2263, 2
    %v2265 = vadd.f32 %v2263, %v2264
    %v2266 = vrot.slane %v2265, 1
    %v2267 = vadd.f32 %v2265, %v2266
    %s2268 = vtos %v2267
    %vm2269 = vcmp.eq.s32.totalorder %v2233, 0
    %v2270 = vsel %vm2269, 1, 0
    %v2271 = vcvt.s32.f32 %v2270
    %v2272 = vstv %s2268
    %v2273 = vmul.f32 %v2271, %v2272
    %vm2274 = vcmp.eq.s32.totalorder %v2233, 1
    %v2275 = vsel %vm2274, 1, 0
    %v2276 = vcvt.s32.f32 %v2275
    %v2277 = vstv %s2252
    %v2278 = vmul.f32 %v2276, %v2277
    %v2279 = vadd.f32 %v2273, %v2278
    %2280 = vst [vmem:[#allocation14] sm:$0xff] %v2279
    // Predicated region
    $region54: #{tpu_custom_call.1} parent=1 // pred_check
      _
    $region55: #{tpu_custom_call.1} parent=1 // pred_check_branch
      %2282 = sbr.rel (0) target = $region57
    $region56: #{tpu_custom_call.1} parent=1 // pred_region
      %s2284 = ssub.s32 128, 128
      %2285 = vsyncadd [#allocation4], %s2284
      %s2287 = sshll.u32 [#allocation13], 4
      %s2288 = int_to_ptr.vmem [resolvable:$true] %s2287
      %2290 = dma.vmem_to_hbm [thread:$0]  %s2288, 128, %s7, [#allocation4]
    $region57: #{tpu_custom_call.1} parent=1 // pred_fallthru
      _
    // Predicated region
    $region58: #{tpu_custom_call.1} parent=1 // pred_check
      _
    $region59: #{tpu_custom_call.1} parent=1 // pred_check_branch
      %2292 = sbr.rel (0) target = $region61
    $region60: #{tpu_custom_call.1} parent=1 // pred_region
      _
    $region61: #{tpu_custom_call.1} parent=1 // pred_fallthru
      _
    // Predicated region
    $region62: #{tpu_custom_call.1} parent=1 // pred_check
      _
    $region63: #{tpu_custom_call.1} parent=1 // pred_check_branch
      %2294 = sbr.rel (0) target = $region65
    $region64: #{tpu_custom_call.1} parent=1 // pred_region
      %s2296 = ssub.s32 128, 128
      %2297 = vsyncadd [#allocation15], %s2296
      %s2299 = sshll.u32 [#allocation14], 4
      %s2300 = int_to_ptr.vmem [resolvable:$true] %s2299
      %2302 = dma.vmem_to_hbm [thread:$0]  %s2300, 128, %s9, [#allocation15]
    $region65: #{tpu_custom_call.1} parent=1 // pred_fallthru
      _
    // Predicated region
    $region66: #{tpu_custom_call.1} parent=1 // pred_check
      _
    $region67: #{tpu_custom_call.1} parent=1 // pred_check_branch
      %2304 = sbr.rel (0) target = $region69
    $region68: #{tpu_custom_call.1} parent=1 // pred_region
      %2305 = dma.done [#allocation4], 128
    $region69: #{tpu_custom_call.1} parent=1 // pred_fallthru
      _
    // Predicated region
    $region70: #{tpu_custom_call.1} parent=1 // pred_check
      _
    $region71: #{tpu_custom_call.1} parent=1 // pred_check_branch
      %2307 = sbr.rel (0) target = $region73
    $region72: #{tpu_custom_call.1} parent=1 // pred_region
      _
    $region73: #{tpu_custom_call.1} parent=1 // pred_fallthru
      _
    // Predicated region
    $region74: #{tpu_custom_call.1} parent=1 // pred_check
      _
    $region75: #{tpu_custom_call.1} parent=1 // pred_check_branch
      %2309 = sbr.rel (0) target = $region77
    $region76: #{tpu_custom_call.1} parent=1 // pred_region
      %2310 = dma.done [#allocation15], 128
    $region77: #{tpu_custom_call.1} parent=1 // pred_fallthru
      _
    %2311 = vsyncpa [#allocation3], 1
    %2312 = vsyncpa [#allocation6], 1
    %2313 = vsyncpa [#allocation9], 1
    %2314 = vsyncpa [#allocation12], 1
    %2315 = vsyncpa [#allocation4], 1
    %2316 = vsyncpa [#allocation15], 1

</llo_original>
